<compile_context>
chip_gen: v7x
topology: tpu7x:2x2x1
jax: 0.10.0
libtpu: 0.0.40
codegen_flags: <defaults>
</compile_context>

<pallas_src>
import functools
import math

import jax
import jax.numpy as jnp
import numpy as np
from jax.experimental import pallas as pl
from jax.experimental.pallas import tpu as pltpu


_TB = 8        # batch rows per grid step
_LANES = 128


def _round_up(x, m):
    return (x + m - 1) // m * m


def _gather_dot_kernel(sl_ref, off_ref, embed_ref, w_hbm_ref, out_ref,
                       gbuf, sems, *, S, TB, B_pad):
    """One (batch-tile, partition) step of ParallelSparseLinear.

    sl_ref   : SMEM [P*B_pad*S] int32  flattened shortlist (partition-major)
    off_ref  : SMEM [P] int32          first row of each partition in w_hbm
    embed_ref: VMEM [TB, d_pad] f32    bias-augmented, even|odd arranged embed
    w_hbm_ref: HBM  [L_tot, d_half] u32  bf16-pair-packed stacked weights
    out_ref  : VMEM [TB, S_pad] f32    logits (lane-dense block)
    gbuf     : VMEM [2*S_pad, d_half] u32  double-buffered gathered rows
    sems     : DMA semaphores [2]      one per buffer slot
    """
    bt = pl.program_id(0)
    p = pl.program_id(1)
    S_pad = out_ref.shape[-1]
    d_half = gbuf.shape[-1]
    base = off_ref[p]                       # partition's first stacked row
    sl_tile0 = (p * B_pad + bt * TB) * S    # flat shortlist offset of tile

    lane = jax.lax.broadcasted_iota(jnp.int32, (1, S_pad), 1)
    valid = lane < S

    def issue(t, slot):
        """Start the S row gathers of batch row `t` into buffer `slot`."""
        slot_off = slot * S_pad
        sl_base = sl_tile0 + t * S

        def one(s):
            label = base + sl_ref[sl_base + s]
            pltpu.make_async_copy(
                w_hbm_ref.at[pl.ds(label, 1), :],
                gbuf.at[pl.ds(slot_off + s, 1), :],
                sems.at[slot]).start()

        if S <= 16:
            for s in range(S):
                one(s)
        else:
            def body(s, carry):
                one(s)
                return carry
            jax.lax.fori_loop(0, S, body, 0, unroll=8)

    def wait(slot):
        """Single combined wait for all S row copies of `slot`."""
        slot_off = slot * S_pad
        pltpu.make_async_copy(
            w_hbm_ref.at[pl.ds(0, S), :],
            gbuf.at[pl.ds(slot_off, S), :],
            sems.at[slot]).wait()

    dims = (((1,), (1,)), ((), ()))
    hi_mask = np.uint32(0xFFFF0000)

    issue(0, 0)
    for t in range(TB):
        slot = t & 1
        wait(slot)
        if t + 1 < TB:
            issue(t + 1, 1 - slot)          # overlap next row's gathers

        # Unpack the u32-packed bf16 rows: low 16 bits = even features,
        # high 16 bits = odd features (bf16 bits in the top of an f32 word
        # are that exact value widened to f32).
        g_u32 = gbuf[pl.ds(slot * S_pad, S_pad), :]            # [S_pad, d_half]
        g_even = jax.lax.bitcast_convert_type(g_u32 << 16, jnp.float32)
        g_odd = jax.lax.bitcast_convert_type(g_u32 & hi_mask, jnp.float32)

        e_row = embed_ref[pl.ds(t, 1), :]                      # [1, d_pad]
        e_even = e_row[:, :d_half]
        e_odd = e_row[:, d_half:]

        logits = (
            jax.lax.dot_general(e_even, g_even, dims,
                                preferred_element_type=jnp.float32)
            + jax.lax.dot_general(e_odd, g_odd, dims,
                                  preferred_element_type=jnp.float32))  # [1, S_pad]

        # Mask (don't zero-fill gbuf): pad lanes are garbage, select them out.
        out_ref[pl.ds(t, 1), :] = jnp.where(valid, logits, 0.0)


def parallel_sparse_linear_forward(sl_flat, offsets, embed_arr, w_packed,
                                   *, num_partitions, S, TB=_TB):
    """All partitions of ParallelSparseLinear in a single pallas_call.

    sl_flat  : [P*B_pad*S] int32 (partition-major, batch-padded shortlist)
    offsets  : [P] int32
    embed_arr: [B_pad, d_pad] f32 (bias-augmented, even|odd arranged)
    w_packed : [L_tot, d_half] uint32 (stacked bf16 weights, pair-packed)
    returns  : [P, B_pad, S_pad] f32
    """
    P = num_partitions
    B_pad, d_pad = embed_arr.shape
    d_half = w_packed.shape[1]
    assert d_pad == 2 * d_half
    assert B_pad % TB == 0
    S_pad = _round_up(S, _LANES)
    n_bt = B_pad // TB

    kernel = functools.partial(_gather_dot_kernel, S=S, TB=TB, B_pad=B_pad)

    grid_spec = pltpu.PrefetchScalarGridSpec(
        num_scalar_prefetch=2,
        grid=(n_bt, P),
        in_specs=[
            # embed tile: constant across the inner P axis -> fetched once
            pl.BlockSpec((TB, d_pad), lambda bt, p, sl, off: (bt, 0)),
            # stacked packed weights stay in HBM; rows DMA-gathered in-kernel
            pl.BlockSpec(memory_space=pl.ANY),
        ],
        out_specs=pl.BlockSpec((None, TB, S_pad),
                               lambda bt, p, sl, off: (p, bt, 0)),
        scratch_shapes=[
            pltpu.VMEM((2 * S_pad, d_half), jnp.uint32),
            pltpu.SemaphoreType.DMA((2,)),
        ],
    )
    return pl.pallas_call(
        kernel,
        out_shape=jax.ShapeDtypeStruct((P, B_pad, S_pad), jnp.float32),
        grid_spec=grid_spec,
        compiler_params=pltpu.CompilerParams(
            dimension_semantics=("parallel", "parallel"),
            vmem_limit_bytes=32 * 1024 * 1024),
    )(sl_flat, offsets, embed_arr, w_packed)


class ParallelSparseLinearPallas:
    """JAX/Pallas re-implementation of deepxml's ParallelSparseLinear."""

    def __init__(self, input_size, output_size, padding_idx=None, bias=True,
                 num_partitions=2, key=None):
        if key is None:
            key = jax.random.PRNGKey(0)
        self.input_size = input_size
        self.output_size = output_size
        self.num_partitions = num_partitions
        # Same partition split as np.array_split(np.arange(output_size), P).
        self._output_sizes = [
            item.size for item in
            np.array_split(np.arange(output_size), num_partitions)]
        if padding_idx is None:
            padding_idx = [None] * num_partitions
        if isinstance(bias, bool):
            bias = [bias] * num_partitions
        self.padding_idx = padding_idx
        self.has_bias = bias

        # Per-partition parameters (kept unpadded for the reference check).
        self.weights, self.biases = [], []
        bound = 1.0 / math.sqrt(input_size)   # kaiming_uniform_(a=sqrt(5))
        for p, L in enumerate(self._output_sizes):
            key, kw, kb = jax.random.split(key, 3)
            w = jax.random.uniform(kw, (L, input_size), jnp.float32,
                                   -bound, bound)
            if self.padding_idx[p] is not None:
                w = w.at[self.padding_idx[p]].set(0.0)   # reset_parameters
            b = jax.random.uniform(kb, (L, 1), jnp.float32, -bound, bound)
            if not self.has_bias[p]:
                b = jnp.zeros((L, 1), jnp.float32)
            self.weights.append(w)
            self.biases.append(b)

        # Kernel-side parameters: bias fused as an extra weight column,
        # partitions stacked, features padded to a lane multiple, rounded to
        # bf16 and pair-packed into uint32 so single-row gathers are
        # word-aligned DMAs (half the HBM bytes of f32 rows).
        self.d_pad = _round_up(input_size + 1, _LANES)
        self.d_half = self.d_pad // 2
        w_aug = jnp.concatenate(
            [jnp.concatenate([w, b], axis=1)
             for w, b in zip(self.weights, self.biases)], axis=0)  # [L_tot,D+1]
        w_aug = jnp.pad(w_aug, ((0, 0), (0, self.d_pad - (input_size + 1))))
        w_bits = jax.lax.bitcast_convert_type(
            w_aug.astype(jnp.bfloat16), jnp.uint16).astype(jnp.uint32)
        # feature 2c -> low 16 bits, feature 2c+1 -> high 16 bits
        self.w_packed = w_bits[:, 0::2] | (w_bits[:, 1::2] << 16)  # [L_tot,d_half]
        self.offsets = jnp.asarray(
            np.cumsum([0] + self._output_sizes[:-1]), dtype=jnp.int32)

    def __call__(self, embed, shortlists):
        B, D = embed.shape
        S = shortlists[0].shape[1]
        P = self.num_partitions
        B_pad = _round_up(B, _TB)

        # Clamp (guards against out-of-partition / sentinel indices) and pad
        # the batch dim; flatten to 1-D for a compact SMEM layout.
        sls = []
        for p, sl in enumerate(shortlists):
            assert sl.shape == (B, S)
            sl = jnp.clip(sl.astype(jnp.int32), 0, self._output_sizes[p] - 1)
            sls.append(jnp.pad(sl, ((0, B_pad - B), (0, 0))))
        sl_flat = jnp.concatenate(sls, axis=0).reshape(-1)     # [P*B_pad*S]

        # Bias-augmented embedding, pinned to bf16-representable values and
        # rearranged even|odd to match the uint32 weight packing.
        e = embed.astype(jnp.float32).astype(jnp.bfloat16).astype(jnp.float32)
        e_aug = jnp.concatenate([e, jnp.ones((B, 1), jnp.float32)], axis=1)
        e_aug = jnp.pad(e_aug, ((0, B_pad - B), (0, self.d_pad - (D + 1))))
        e_arr = jnp.concatenate([e_aug[:, 0::2], e_aug[:, 1::2]], axis=1)

        out = parallel_sparse_linear_forward(
            sl_flat, self.offsets, e_arr, self.w_packed,
            num_partitions=P, S=S)                  # [P, B_pad, S_pad]
        # torch returns out.squeeze(); with B>1 and S>1 that is [B, S].
        # TODO(synk): no rank-dropping squeeze for the B==1 or S==1 edge cases.
        return [out[p, :B, :S] for p in range(P)]


def _bf16(x):
    return np.asarray(
        jnp.asarray(x, jnp.float32).astype(jnp.bfloat16).astype(jnp.float32))


def _reference_forward(module, embed, shortlists):
    """Numpy reference (gather-then-dot, bf16-rounded params like the kernel)."""
    out = []
    e = _bf16(embed)
    for p in range(module.num_partitions):
        w = _bf16(module.weights[p])
        b = _bf16(module.biases[p])
        sl = np.asarray(shortlists[p])
        short_w = w[sl]                                    # [B, S, D]
        o = np.einsum('bd,bsd->bs', e, short_w)            # [B, S]
        if module.has_bias[p]:
            o = o + b[sl][:, :, 0]                         # [B, S]
        out.append(o.astype(np.float32))
    return out


if __name__ == "__main__":
    key = jax.random.PRNGKey(0)
    B, D = 2, 32            # batch, input_size (embedding dim)
    OUT, P, S = 24, 2, 8    # total labels, partitions, shortlist length

    module = ParallelSparseLinearPallas(
        input_size=D, output_size=OUT,
        padding_idx=[11, 11],        # local padding row per partition
        bias=[True, True],
        num_partitions=P, key=key)

    key, ke, k0, k1 = jax.random.split(key, 4)
    embed = jax.random.normal(ke, (B, D), jnp.float32)
    shortlists = [
        jax.random.randint(k0, (B, S), 0, module._output_sizes[0],
                           dtype=jnp.int32),
        jax.random.randint(k1, (B, S), 0, module._output_sizes[1],
                           dtype=jnp.int32),
    ]

    outs = module(embed, shortlists)
    outs = [jax.block_until_ready(o) for o in outs]

    refs = _reference_forward(module, embed, shortlists)
    for o, r in zip(outs, refs):
        assert o.shape == r.shape, (o.shape, r.shape)
        np.testing.assert_allclose(np.asarray(o), r, rtol=1e-3, atol=1e-3)

    print("KERNEL_OK")
</pallas_src>

<mosaic_0001>
module attributes {stable_mosaic.version = 11 : i64} {
  func.func @_gather_dot_kernel(%arg0: i32, %arg1: i32, %arg2: memref<128xi32, #tpu.memory_space<smem>>, %arg3: memref<2xi32, #tpu.memory_space<smem>>, %arg4: memref<8x128xf32, #tpu.memory_space<vmem>>, %arg5: memref<24x64xi32, #tpu.memory_space<any>>, %arg6: memref<1x8x128xf32, #tpu.memory_space<vmem>>, %arg7: memref<256x64xi32, #tpu.memory_space<vmem>>, %arg8: memref<2x!tpu.dma_semaphore, #tpu.memory_space<semaphore_mem>>) attributes {dimension_semantics = [#tpu.dimension_semantics<parallel>, #tpu.dimension_semantics<parallel>], iteration_bounds = array<i64: 1, 2>, scalar_prefetch = 2 : i64, scratch_operands = 2 : i64, tpu.core_type = #tpu.core_type<tc>, window_params = [{transform_indices = @transform_0, window_bounds = array<i64: 8, 128>}, {}, {transform_indices = @transform_2, window_bounds = array<i64: 1, 8, 128>}]} {
    %0 = arith.index_cast %arg1 : i32 to index
    %1 = memref.load %arg3[%0] : memref<2xi32, #tpu.memory_space<smem>>
    %c8_i32 = arith.constant 8 : i32
    %2 = arith.muli %arg1, %c8_i32 : i32
    %c8_i32_0 = arith.constant 8 : i32
    %3 = arith.muli %arg0, %c8_i32_0 : i32
    %4 = arith.addi %2, %3 : i32
    %c8_i32_1 = arith.constant 8 : i32
    %5 = arith.muli %4, %c8_i32_1 : i32
    %6 = tpu.iota {dimensions = array<i32: 1>} : vector<1x128xi32>
    %c8_i32_2 = arith.constant 8 : i32
    %7 = vector.broadcast %c8_i32_2 : i32 to vector<1x128xi32>
    %8 = arith.cmpi slt, %6, %7 : vector<1x128xi32>
    %c0_i32 = arith.constant 0 : i32
    %9 = arith.addi %5, %c0_i32 : i32
    %c0_i32_3 = arith.constant 0 : i32
    %10 = arith.addi %9, %c0_i32_3 : i32
    %11 = arith.index_cast %10 : i32 to index
    %12 = memref.load %arg2[%11] : memref<128xi32, #tpu.memory_space<smem>>
    %13 = arith.addi %1, %12 : i32
    %c0_i32_4 = arith.constant 0 : i32
    %c0_i32_5 = arith.constant 0 : i32
    %14 = tpu.memref_slice %arg5[%13, %c0_i32_5] : memref<24x64xi32, #tpu.memory_space<any>> -> memref<1x64xi32, #tpu.memory_space<any>>
    %c0_i32_6 = arith.constant 0 : i32
    %c0_i32_7 = arith.constant 0 : i32
    %15 = tpu.memref_slice %arg7[%c0_i32_6, %c0_i32_7] : memref<256x64xi32, #tpu.memory_space<vmem>> -> memref<1x64xi32, #tpu.memory_space<vmem>>
    %16 = tpu.memref_slice %arg8[%c0_i32_4] : memref<2x!tpu.dma_semaphore, #tpu.memory_space<semaphore_mem>> -> memref<1x!tpu.dma_semaphore, #tpu.memory_space<semaphore_mem>>
    %17 = tpu.memref_squeeze %16 : memref<1x!tpu.dma_semaphore, #tpu.memory_space<semaphore_mem>> -> memref<!tpu.dma_semaphore, #tpu.memory_space<semaphore_mem>>
    tpu.enqueue_dma source(%14 : memref<1x64xi32, #tpu.memory_space<any>>) target(%15 : memref<1x64xi32, #tpu.memory_space<vmem>>) target_semaphore(%17 : memref<!tpu.dma_semaphore, #tpu.memory_space<semaphore_mem>>)
    %c1_i32 = arith.constant 1 : i32
    %18 = arith.addi %9, %c1_i32 : i32
    %19 = arith.index_cast %18 : i32 to index
    %20 = memref.load %arg2[%19] : memref<128xi32, #tpu.memory_space<smem>>
    %21 = arith.addi %1, %20 : i32
    %c0_i32_8 = arith.constant 0 : i32
    %c0_i32_9 = arith.constant 0 : i32
    %22 = tpu.memref_slice %arg5[%21, %c0_i32_9] : memref<24x64xi32, #tpu.memory_space<any>> -> memref<1x64xi32, #tpu.memory_space<any>>
    %c1_i32_10 = arith.constant 1 : i32
    %c0_i32_11 = arith.constant 0 : i32
    %23 = tpu.memref_slice %arg7[%c1_i32_10, %c0_i32_11] : memref<256x64xi32, #tpu.memory_space<vmem>> -> memref<1x64xi32, #tpu.memory_space<vmem>>
    %24 = tpu.memref_slice %arg8[%c0_i32_8] : memref<2x!tpu.dma_semaphore, #tpu.memory_space<semaphore_mem>> -> memref<1x!tpu.dma_semaphore, #tpu.memory_space<semaphore_mem>>
    %25 = tpu.memref_squeeze %24 : memref<1x!tpu.dma_semaphore, #tpu.memory_space<semaphore_mem>> -> memref<!tpu.dma_semaphore, #tpu.memory_space<semaphore_mem>>
    tpu.enqueue_dma source(%22 : memref<1x64xi32, #tpu.memory_space<any>>) target(%23 : memref<1x64xi32, #tpu.memory_space<vmem>>) target_semaphore(%25 : memref<!tpu.dma_semaphore, #tpu.memory_space<semaphore_mem>>)
    %c2_i32 = arith.constant 2 : i32
    %26 = arith.addi %9, %c2_i32 : i32
    %27 = arith.index_cast %26 : i32 to index
    %28 = memref.load %arg2[%27] : memref<128xi32, #tpu.memory_space<smem>>
    %29 = arith.addi %1, %28 : i32
    %c0_i32_12 = arith.constant 0 : i32
    %c0_i32_13 = arith.constant 0 : i32
    %30 = tpu.memref_slice %arg5[%29, %c0_i32_13] : memref<24x64xi32, #tpu.memory_space<any>> -> memref<1x64xi32, #tpu.memory_space<any>>
    %c2_i32_14 = arith.constant 2 : i32
    %c0_i32_15 = arith.constant 0 : i32
    %31 = tpu.memref_slice %arg7[%c2_i32_14, %c0_i32_15] : memref<256x64xi32, #tpu.memory_space<vmem>> -> memref<1x64xi32, #tpu.memory_space<vmem>>
    %32 = tpu.memref_slice %arg8[%c0_i32_12] : memref<2x!tpu.dma_semaphore, #tpu.memory_space<semaphore_mem>> -> memref<1x!tpu.dma_semaphore, #tpu.memory_space<semaphore_mem>>
    %33 = tpu.memref_squeeze %32 : memref<1x!tpu.dma_semaphore, #tpu.memory_space<semaphore_mem>> -> memref<!tpu.dma_semaphore, #tpu.memory_space<semaphore_mem>>
    tpu.enqueue_dma source(%30 : memref<1x64xi32, #tpu.memory_space<any>>) target(%31 : memref<1x64xi32, #tpu.memory_space<vmem>>) target_semaphore(%33 : memref<!tpu.dma_semaphore, #tpu.memory_space<semaphore_mem>>)
    %c3_i32 = arith.constant 3 : i32
    %34 = arith.addi %9, %c3_i32 : i32
    %35 = arith.index_cast %34 : i32 to index
    %36 = memref.load %arg2[%35] : memref<128xi32, #tpu.memory_space<smem>>
    %37 = arith.addi %1, %36 : i32
    %c0_i32_16 = arith.constant 0 : i32
    %c0_i32_17 = arith.constant 0 : i32
    %38 = tpu.memref_slice %arg5[%37, %c0_i32_17] : memref<24x64xi32, #tpu.memory_space<any>> -> memref<1x64xi32, #tpu.memory_space<any>>
    %c3_i32_18 = arith.constant 3 : i32
    %c0_i32_19 = arith.constant 0 : i32
    %39 = tpu.memref_slice %arg7[%c3_i32_18, %c0_i32_19] : memref<256x64xi32, #tpu.memory_space<vmem>> -> memref<1x64xi32, #tpu.memory_space<vmem>>
    %40 = tpu.memref_slice %arg8[%c0_i32_16] : memref<2x!tpu.dma_semaphore, #tpu.memory_space<semaphore_mem>> -> memref<1x!tpu.dma_semaphore, #tpu.memory_space<semaphore_mem>>
    %41 = tpu.memref_squeeze %40 : memref<1x!tpu.dma_semaphore, #tpu.memory_space<semaphore_mem>> -> memref<!tpu.dma_semaphore, #tpu.memory_space<semaphore_mem>>
    tpu.enqueue_dma source(%38 : memref<1x64xi32, #tpu.memory_space<any>>) target(%39 : memref<1x64xi32, #tpu.memory_space<vmem>>) target_semaphore(%41 : memref<!tpu.dma_semaphore, #tpu.memory_space<semaphore_mem>>)
    %c4_i32 = arith.constant 4 : i32
    %42 = arith.addi %9, %c4_i32 : i32
    %43 = arith.index_cast %42 : i32 to index
    %44 = memref.load %arg2[%43] : memref<128xi32, #tpu.memory_space<smem>>
    %45 = arith.addi %1, %44 : i32
    %c0_i32_20 = arith.constant 0 : i32
    %c0_i32_21 = arith.constant 0 : i32
    %46 = tpu.memref_slice %arg5[%45, %c0_i32_21] : memref<24x64xi32, #tpu.memory_space<any>> -> memref<1x64xi32, #tpu.memory_space<any>>
    %c4_i32_22 = arith.constant 4 : i32
    %c0_i32_23 = arith.constant 0 : i32
    %47 = tpu.memref_slice %arg7[%c4_i32_22, %c0_i32_23] : memref<256x64xi32, #tpu.memory_space<vmem>> -> memref<1x64xi32, #tpu.memory_space<vmem>>
    %48 = tpu.memref_slice %arg8[%c0_i32_20] : memref<2x!tpu.dma_semaphore, #tpu.memory_space<semaphore_mem>> -> memref<1x!tpu.dma_semaphore, #tpu.memory_space<semaphore_mem>>
    %49 = tpu.memref_squeeze %48 : memref<1x!tpu.dma_semaphore, #tpu.memory_space<semaphore_mem>> -> memref<!tpu.dma_semaphore, #tpu.memory_space<semaphore_mem>>
    tpu.enqueue_dma source(%46 : memref<1x64xi32, #tpu.memory_space<any>>) target(%47 : memref<1x64xi32, #tpu.memory_space<vmem>>) target_semaphore(%49 : memref<!tpu.dma_semaphore, #tpu.memory_space<semaphore_mem>>)
    %c5_i32 = arith.constant 5 : i32
    %50 = arith.addi %9, %c5_i32 : i32
    %51 = arith.index_cast %50 : i32 to index
    %52 = memref.load %arg2[%51] : memref<128xi32, #tpu.memory_space<smem>>
    %53 = arith.addi %1, %52 : i32
    %c0_i32_24 = arith.constant 0 : i32
    %c0_i32_25 = arith.constant 0 : i32
    %54 = tpu.memref_slice %arg5[%53, %c0_i32_25] : memref<24x64xi32, #tpu.memory_space<any>> -> memref<1x64xi32, #tpu.memory_space<any>>
    %c5_i32_26 = arith.constant 5 : i32
    %c0_i32_27 = arith.constant 0 : i32
    %55 = tpu.memref_slice %arg7[%c5_i32_26, %c0_i32_27] : memref<256x64xi32, #tpu.memory_space<vmem>> -> memref<1x64xi32, #tpu.memory_space<vmem>>
    %56 = tpu.memref_slice %arg8[%c0_i32_24] : memref<2x!tpu.dma_semaphore, #tpu.memory_space<semaphore_mem>> -> memref<1x!tpu.dma_semaphore, #tpu.memory_space<semaphore_mem>>
    %57 = tpu.memref_squeeze %56 : memref<1x!tpu.dma_semaphore, #tpu.memory_space<semaphore_mem>> -> memref<!tpu.dma_semaphore, #tpu.memory_space<semaphore_mem>>
    tpu.enqueue_dma source(%54 : memref<1x64xi32, #tpu.memory_space<any>>) target(%55 : memref<1x64xi32, #tpu.memory_space<vmem>>) target_semaphore(%57 : memref<!tpu.dma_semaphore, #tpu.memory_space<semaphore_mem>>)
    %c6_i32 = arith.constant 6 : i32
    %58 = arith.addi %9, %c6_i32 : i32
    %59 = arith.index_cast %58 : i32 to index
    %60 = memref.load %arg2[%59] : memref<128xi32, #tpu.memory_space<smem>>
    %61 = arith.addi %1, %60 : i32
    %c0_i32_28 = arith.constant 0 : i32
    %c0_i32_29 = arith.constant 0 : i32
    %62 = tpu.memref_slice %arg5[%61, %c0_i32_29] : memref<24x64xi32, #tpu.memory_space<any>> -> memref<1x64xi32, #tpu.memory_space<any>>
    %c6_i32_30 = arith.constant 6 : i32
    %c0_i32_31 = arith.constant 0 : i32
    %63 = tpu.memref_slice %arg7[%c6_i32_30, %c0_i32_31] : memref<256x64xi32, #tpu.memory_space<vmem>> -> memref<1x64xi32, #tpu.memory_space<vmem>>
    %64 = tpu.memref_slice %arg8[%c0_i32_28] : memref<2x!tpu.dma_semaphore, #tpu.memory_space<semaphore_mem>> -> memref<1x!tpu.dma_semaphore, #tpu.memory_space<semaphore_mem>>
    %65 = tpu.memref_squeeze %64 : memref<1x!tpu.dma_semaphore, #tpu.memory_space<semaphore_mem>> -> memref<!tpu.dma_semaphore, #tpu.memory_space<semaphore_mem>>
    tpu.enqueue_dma source(%62 : memref<1x64xi32, #tpu.memory_space<any>>) target(%63 : memref<1x64xi32, #tpu.memory_space<vmem>>) target_semaphore(%65 : memref<!tpu.dma_semaphore, #tpu.memory_space<semaphore_mem>>)
    %c7_i32 = arith.constant 7 : i32
    %66 = arith.addi %9, %c7_i32 : i32
    %67 = arith.index_cast %66 : i32 to index
    %68 = memref.load %arg2[%67] : memref<128xi32, #tpu.memory_space<smem>>
    %69 = arith.addi %1, %68 : i32
    %c0_i32_32 = arith.constant 0 : i32
    %c0_i32_33 = arith.constant 0 : i32
    %70 = tpu.memref_slice %arg5[%69, %c0_i32_33] : memref<24x64xi32, #tpu.memory_space<any>> -> memref<1x64xi32, #tpu.memory_space<any>>
    %c7_i32_34 = arith.constant 7 : i32
    %c0_i32_35 = arith.constant 0 : i32
    %71 = tpu.memref_slice %arg7[%c7_i32_34, %c0_i32_35] : memref<256x64xi32, #tpu.memory_space<vmem>> -> memref<1x64xi32, #tpu.memory_space<vmem>>
    %72 = tpu.memref_slice %arg8[%c0_i32_32] : memref<2x!tpu.dma_semaphore, #tpu.memory_space<semaphore_mem>> -> memref<1x!tpu.dma_semaphore, #tpu.memory_space<semaphore_mem>>
    %73 = tpu.memref_squeeze %72 : memref<1x!tpu.dma_semaphore, #tpu.memory_space<semaphore_mem>> -> memref<!tpu.dma_semaphore, #tpu.memory_space<semaphore_mem>>
    tpu.enqueue_dma source(%70 : memref<1x64xi32, #tpu.memory_space<any>>) target(%71 : memref<1x64xi32, #tpu.memory_space<vmem>>) target_semaphore(%73 : memref<!tpu.dma_semaphore, #tpu.memory_space<semaphore_mem>>)
    %c0_i32_36 = arith.constant 0 : i32
    %c0_i32_37 = arith.constant 0 : i32
    %c0_i32_38 = arith.constant 0 : i32
    %74 = tpu.memref_slice %arg5[%c0_i32_37, %c0_i32_38] : memref<24x64xi32, #tpu.memory_space<any>> -> memref<8x64xi32, #tpu.memory_space<any>>
    %c0_i32_39 = arith.constant 0 : i32
    %c0_i32_40 = arith.constant 0 : i32
    %75 = tpu.memref_slice %arg7[%c0_i32_39, %c0_i32_40] : memref<256x64xi32, #tpu.memory_space<vmem>> -> memref<8x64xi32, #tpu.memory_space<vmem>>
    %76 = tpu.memref_slice %arg8[%c0_i32_36] : memref<2x!tpu.dma_semaphore, #tpu.memory_space<semaphore_mem>> -> memref<1x!tpu.dma_semaphore, #tpu.memory_space<semaphore_mem>>
    %77 = tpu.memref_squeeze %76 : memref<1x!tpu.dma_semaphore, #tpu.memory_space<semaphore_mem>> -> memref<!tpu.dma_semaphore, #tpu.memory_space<semaphore_mem>>
    tpu.wait_dma2 semaphore(%77 : memref<!tpu.dma_semaphore, #tpu.memory_space<semaphore_mem>>) src(%74 : memref<8x64xi32, #tpu.memory_space<any>>) dst(%75 : memref<8x64xi32, #tpu.memory_space<vmem>>)
    %c8_i32_41 = arith.constant 8 : i32
    %78 = arith.addi %5, %c8_i32_41 : i32
    %c0_i32_42 = arith.constant 0 : i32
    %79 = arith.addi %78, %c0_i32_42 : i32
    %80 = arith.index_cast %79 : i32 to index
    %81 = memref.load %arg2[%80] : memref<128xi32, #tpu.memory_space<smem>>
    %82 = arith.addi %1, %81 : i32
    %c1_i32_43 = arith.constant 1 : i32
    %c0_i32_44 = arith.constant 0 : i32
    %83 = tpu.memref_slice %arg5[%82, %c0_i32_44] : memref<24x64xi32, #tpu.memory_space<any>> -> memref<1x64xi32, #tpu.memory_space<any>>
    %c128_i32 = arith.constant 128 : i32
    %c0_i32_45 = arith.constant 0 : i32
    %84 = tpu.memref_slice %arg7[%c128_i32, %c0_i32_45] : memref<256x64xi32, #tpu.memory_space<vmem>> -> memref<1x64xi32, #tpu.memory_space<vmem>>
    %85 = tpu.memref_slice %arg8[%c1_i32_43] : memref<2x!tpu.dma_semaphore, #tpu.memory_space<semaphore_mem>> -> memref<1x!tpu.dma_semaphore, #tpu.memory_space<semaphore_mem>>
    %86 = tpu.memref_squeeze %85 : memref<1x!tpu.dma_semaphore, #tpu.memory_space<semaphore_mem>> -> memref<!tpu.dma_semaphore, #tpu.memory_space<semaphore_mem>>
    tpu.enqueue_dma source(%83 : memref<1x64xi32, #tpu.memory_space<any>>) target(%84 : memref<1x64xi32, #tpu.memory_space<vmem>>) target_semaphore(%86 : memref<!tpu.dma_semaphore, #tpu.memory_space<semaphore_mem>>)
    %c1_i32_46 = arith.constant 1 : i32
    %87 = arith.addi %78, %c1_i32_46 : i32
    %88 = arith.index_cast %87 : i32 to index
    %89 = memref.load %arg2[%88] : memref<128xi32, #tpu.memory_space<smem>>
    %90 = arith.addi %1, %89 : i32
    %c1_i32_47 = arith.constant 1 : i32
    %c0_i32_48 = arith.constant 0 : i32
    %91 = tpu.memref_slice %arg5[%90, %c0_i32_48] : memref<24x64xi32, #tpu.memory_space<any>> -> memref<1x64xi32, #tpu.memory_space<any>>
    %c129_i32 = arith.constant 129 : i32
    %c0_i32_49 = arith.constant 0 : i32
    %92 = tpu.memref_slice %arg7[%c129_i32, %c0_i32_49] : memref<256x64xi32, #tpu.memory_space<vmem>> -> memref<1x64xi32, #tpu.memory_space<vmem>>
    %93 = tpu.memref_slice %arg8[%c1_i32_47] : memref<2x!tpu.dma_semaphore, #tpu.memory_space<semaphore_mem>> -> memref<1x!tpu.dma_semaphore, #tpu.memory_space<semaphore_mem>>
    %94 = tpu.memref_squeeze %93 : memref<1x!tpu.dma_semaphore, #tpu.memory_space<semaphore_mem>> -> memref<!tpu.dma_semaphore, #tpu.memory_space<semaphore_mem>>
    tpu.enqueue_dma source(%91 : memref<1x64xi32, #tpu.memory_space<any>>) target(%92 : memref<1x64xi32, #tpu.memory_space<vmem>>) target_semaphore(%94 : memref<!tpu.dma_semaphore, #tpu.memory_space<semaphore_mem>>)
    %c2_i32_50 = arith.constant 2 : i32
    %95 = arith.addi %78, %c2_i32_50 : i32
    %96 = arith.index_cast %95 : i32 to index
    %97 = memref.load %arg2[%96] : memref<128xi32, #tpu.memory_space<smem>>
    %98 = arith.addi %1, %97 : i32
    %c1_i32_51 = arith.constant 1 : i32
    %c0_i32_52 = arith.constant 0 : i32
    %99 = tpu.memref_slice %arg5[%98, %c0_i32_52] : memref<24x64xi32, #tpu.memory_space<any>> -> memref<1x64xi32, #tpu.memory_space<any>>
    %c130_i32 = arith.constant 130 : i32
    %c0_i32_53 = arith.constant 0 : i32
    %100 = tpu.memref_slice %arg7[%c130_i32, %c0_i32_53] : memref<256x64xi32, #tpu.memory_space<vmem>> -> memref<1x64xi32, #tpu.memory_space<vmem>>
    %101 = tpu.memref_slice %arg8[%c1_i32_51] : memref<2x!tpu.dma_semaphore, #tpu.memory_space<semaphore_mem>> -> memref<1x!tpu.dma_semaphore, #tpu.memory_space<semaphore_mem>>
    %102 = tpu.memref_squeeze %101 : memref<1x!tpu.dma_semaphore, #tpu.memory_space<semaphore_mem>> -> memref<!tpu.dma_semaphore, #tpu.memory_space<semaphore_mem>>
    tpu.enqueue_dma source(%99 : memref<1x64xi32, #tpu.memory_space<any>>) target(%100 : memref<1x64xi32, #tpu.memory_space<vmem>>) target_semaphore(%102 : memref<!tpu.dma_semaphore, #tpu.memory_space<semaphore_mem>>)
    %c3_i32_54 = arith.constant 3 : i32
    %103 = arith.addi %78, %c3_i32_54 : i32
    %104 = arith.index_cast %103 : i32 to index
    %105 = memref.load %arg2[%104] : memref<128xi32, #tpu.memory_space<smem>>
    %106 = arith.addi %1, %105 : i32
    %c1_i32_55 = arith.constant 1 : i32
    %c0_i32_56 = arith.constant 0 : i32
    %107 = tpu.memref_slice %arg5[%106, %c0_i32_56] : memref<24x64xi32, #tpu.memory_space<any>> -> memref<1x64xi32, #tpu.memory_space<any>>
    %c131_i32 = arith.constant 131 : i32
    %c0_i32_57 = arith.constant 0 : i32
    %108 = tpu.memref_slice %arg7[%c131_i32, %c0_i32_57] : memref<256x64xi32, #tpu.memory_space<vmem>> -> memref<1x64xi32, #tpu.memory_space<vmem>>
    %109 = tpu.memref_slice %arg8[%c1_i32_55] : memref<2x!tpu.dma_semaphore, #tpu.memory_space<semaphore_mem>> -> memref<1x!tpu.dma_semaphore, #tpu.memory_space<semaphore_mem>>
    %110 = tpu.memref_squeeze %109 : memref<1x!tpu.dma_semaphore, #tpu.memory_space<semaphore_mem>> -> memref<!tpu.dma_semaphore, #tpu.memory_space<semaphore_mem>>
    tpu.enqueue_dma source(%107 : memref<1x64xi32, #tpu.memory_space<any>>) target(%108 : memref<1x64xi32, #tpu.memory_space<vmem>>) target_semaphore(%110 : memref<!tpu.dma_semaphore, #tpu.memory_space<semaphore_mem>>)
    %c4_i32_58 = arith.constant 4 : i32
    %111 = arith.addi %78, %c4_i32_58 : i32
    %112 = arith.index_cast %111 : i32 to index
    %113 = memref.load %arg2[%112] : memref<128xi32, #tpu.memory_space<smem>>
    %114 = arith.addi %1, %113 : i32
    %c1_i32_59 = arith.constant 1 : i32
    %c0_i32_60 = arith.constant 0 : i32
    %115 = tpu.memref_slice %arg5[%114, %c0_i32_60] : memref<24x64xi32, #tpu.memory_space<any>> -> memref<1x64xi32, #tpu.memory_space<any>>
    %c132_i32 = arith.constant 132 : i32
    %c0_i32_61 = arith.constant 0 : i32
    %116 = tpu.memref_slice %arg7[%c132_i32, %c0_i32_61] : memref<256x64xi32, #tpu.memory_space<vmem>> -> memref<1x64xi32, #tpu.memory_space<vmem>>
    %117 = tpu.memref_slice %arg8[%c1_i32_59] : memref<2x!tpu.dma_semaphore, #tpu.memory_space<semaphore_mem>> -> memref<1x!tpu.dma_semaphore, #tpu.memory_space<semaphore_mem>>
    %118 = tpu.memref_squeeze %117 : memref<1x!tpu.dma_semaphore, #tpu.memory_space<semaphore_mem>> -> memref<!tpu.dma_semaphore, #tpu.memory_space<semaphore_mem>>
    tpu.enqueue_dma source(%115 : memref<1x64xi32, #tpu.memory_space<any>>) target(%116 : memref<1x64xi32, #tpu.memory_space<vmem>>) target_semaphore(%118 : memref<!tpu.dma_semaphore, #tpu.memory_space<semaphore_mem>>)
    %c5_i32_62 = arith.constant 5 : i32
    %119 = arith.addi %78, %c5_i32_62 : i32
    %120 = arith.index_cast %119 : i32 to index
    %121 = memref.load %arg2[%120] : memref<128xi32, #tpu.memory_space<smem>>
    %122 = arith.addi %1, %121 : i32
    %c1_i32_63 = arith.constant 1 : i32
    %c0_i32_64 = arith.constant 0 : i32
    %123 = tpu.memref_slice %arg5[%122, %c0_i32_64] : memref<24x64xi32, #tpu.memory_space<any>> -> memref<1x64xi32, #tpu.memory_space<any>>
    %c133_i32 = arith.constant 133 : i32
    %c0_i32_65 = arith.constant 0 : i32
    %124 = tpu.memref_slice %arg7[%c133_i32, %c0_i32_65] : memref<256x64xi32, #tpu.memory_space<vmem>> -> memref<1x64xi32, #tpu.memory_space<vmem>>
    %125 = tpu.memref_slice %arg8[%c1_i32_63] : memref<2x!tpu.dma_semaphore, #tpu.memory_space<semaphore_mem>> -> memref<1x!tpu.dma_semaphore, #tpu.memory_space<semaphore_mem>>
    %126 = tpu.memref_squeeze %125 : memref<1x!tpu.dma_semaphore, #tpu.memory_space<semaphore_mem>> -> memref<!tpu.dma_semaphore, #tpu.memory_space<semaphore_mem>>
    tpu.enqueue_dma source(%123 : memref<1x64xi32, #tpu.memory_space<any>>) target(%124 : memref<1x64xi32, #tpu.memory_space<vmem>>) target_semaphore(%126 : memref<!tpu.dma_semaphore, #tpu.memory_space<semaphore_mem>>)
    %c6_i32_66 = arith.constant 6 : i32
    %127 = arith.addi %78, %c6_i32_66 : i32
    %128 = arith.index_cast %127 : i32 to index
    %129 = memref.load %arg2[%128] : memref<128xi32, #tpu.memory_space<smem>>
    %130 = arith.addi %1, %129 : i32
    %c1_i32_67 = arith.constant 1 : i32
    %c0_i32_68 = arith.constant 0 : i32
    %131 = tpu.memref_slice %arg5[%130, %c0_i32_68] : memref<24x64xi32, #tpu.memory_space<any>> -> memref<1x64xi32, #tpu.memory_space<any>>
    %c134_i32 = arith.constant 134 : i32
    %c0_i32_69 = arith.constant 0 : i32
    %132 = tpu.memref_slice %arg7[%c134_i32, %c0_i32_69] : memref<256x64xi32, #tpu.memory_space<vmem>> -> memref<1x64xi32, #tpu.memory_space<vmem>>
    %133 = tpu.memref_slice %arg8[%c1_i32_67] : memref<2x!tpu.dma_semaphore, #tpu.memory_space<semaphore_mem>> -> memref<1x!tpu.dma_semaphore, #tpu.memory_space<semaphore_mem>>
    %134 = tpu.memref_squeeze %133 : memref<1x!tpu.dma_semaphore, #tpu.memory_space<semaphore_mem>> -> memref<!tpu.dma_semaphore, #tpu.memory_space<semaphore_mem>>
    tpu.enqueue_dma source(%131 : memref<1x64xi32, #tpu.memory_space<any>>) target(%132 : memref<1x64xi32, #tpu.memory_space<vmem>>) target_semaphore(%134 : memref<!tpu.dma_semaphore, #tpu.memory_space<semaphore_mem>>)
    %c7_i32_70 = arith.constant 7 : i32
    %135 = arith.addi %78, %c7_i32_70 : i32
    %136 = arith.index_cast %135 : i32 to index
    %137 = memref.load %arg2[%136] : memref<128xi32, #tpu.memory_space<smem>>
    %138 = arith.addi %1, %137 : i32
    %c1_i32_71 = arith.constant 1 : i32
    %c0_i32_72 = arith.constant 0 : i32
    %139 = tpu.memref_slice %arg5[%138, %c0_i32_72] : memref<24x64xi32, #tpu.memory_space<any>> -> memref<1x64xi32, #tpu.memory_space<any>>
    %c135_i32 = arith.constant 135 : i32
    %c0_i32_73 = arith.constant 0 : i32
    %140 = tpu.memref_slice %arg7[%c135_i32, %c0_i32_73] : memref<256x64xi32, #tpu.memory_space<vmem>> -> memref<1x64xi32, #tpu.memory_space<vmem>>
    %141 = tpu.memref_slice %arg8[%c1_i32_71] : memref<2x!tpu.dma_semaphore, #tpu.memory_space<semaphore_mem>> -> memref<1x!tpu.dma_semaphore, #tpu.memory_space<semaphore_mem>>
    %142 = tpu.memref_squeeze %141 : memref<1x!tpu.dma_semaphore, #tpu.memory_space<semaphore_mem>> -> memref<!tpu.dma_semaphore, #tpu.memory_space<semaphore_mem>>
    tpu.enqueue_dma source(%139 : memref<1x64xi32, #tpu.memory_space<any>>) target(%140 : memref<1x64xi32, #tpu.memory_space<vmem>>) target_semaphore(%142 : memref<!tpu.dma_semaphore, #tpu.memory_space<semaphore_mem>>)
    %c0 = arith.constant 0 : index
    %c0_74 = arith.constant 0 : index
    %143 = vector.load %arg7[%c0, %c0_74] : memref<256x64xi32, #tpu.memory_space<vmem>>, vector<128x64xi32>
    %c16_i32 = arith.constant 16 : i32
    %144 = vector.broadcast %c16_i32 : i32 to vector<128x64xi32>
    %145 = arith.shli %143, %144 : vector<128x64xi32>
    %146 = tpu.bitcast %145 : vector<128x64xi32> -> vector<128x64xf32>
    %c-65536_i32 = arith.constant -65536 : i32
    %147 = vector.broadcast %c-65536_i32 : i32 to vector<128x64xi32>
    %148 = arith.andi %143, %147 : vector<128x64xi32>
    %149 = tpu.bitcast %148 : vector<128x64xi32> -> vector<128x64xf32>
    %c0_75 = arith.constant 0 : index
    %c0_76 = arith.constant 0 : index
    %150 = vector.load %arg4[%c0_75, %c0_76] : memref<8x128xf32, #tpu.memory_space<vmem>>, vector<1x128xf32>
    %151 = vector.extract_strided_slice %150 {offsets = [0, 0], sizes = [1, 64], strides = [1, 1]} : vector<1x128xf32> to vector<1x64xf32>
    %152 = vector.extract_strided_slice %150 {offsets = [0, 64], sizes = [1, 64], strides = [1, 1]} : vector<1x128xf32> to vector<1x64xf32>
    %cst = arith.constant dense<0.000000e+00> : vector<1x128xf32>
    %153 = tpu.matmul %151, %146, %cst {dimension_numbers = #tpu.dot_dimension_numbers<[1], [1], [0], [0], [0, 0, 1, 0], [], []>} : vector<1x64xf32>, vector<128x64xf32>, vector<1x128xf32> -> vector<1x128xf32>
    %cst_77 = arith.constant dense<0.000000e+00> : vector<1x128xf32>
    %154 = tpu.matmul %152, %149, %cst_77 {dimension_numbers = #tpu.dot_dimension_numbers<[1], [1], [0], [0], [0, 0, 1, 0], [], []>} : vector<1x64xf32>, vector<128x64xf32>, vector<1x128xf32> -> vector<1x128xf32>
    %155 = arith.addf %153, %154 : vector<1x128xf32>
    %cst_78 = arith.constant 0.000000e+00 : f32
    %156 = vector.broadcast %cst_78 : f32 to vector<1x128xf32>
    %157 = arith.select %8, %155, %156 : vector<1x128xi1>, vector<1x128xf32>
    %c0_79 = arith.constant 0 : index
    %c0_80 = arith.constant 0 : index
    %c0_81 = arith.constant 0 : index
    %158 = vector.load %arg6[%c0_79, %c0_80, %c0_81] : memref<1x8x128xf32, #tpu.memory_space<vmem>>, vector<1x1x128xf32>
    %159 = vector.shape_cast %158 : vector<1x1x128xf32> to vector<1x128xf32>
    %160 = vector.shape_cast %157 : vector<1x128xf32> to vector<1x1x128xf32>
    tpu.vector_store %arg6[%c0_79, %c0_80, %c0_81], %160 {strides = array<i32>} : memref<1x8x128xf32, #tpu.memory_space<vmem>>, vector<1x1x128xf32>,
    %c1_i32_82 = arith.constant 1 : i32
    %c0_i32_83 = arith.constant 0 : i32
    %c0_i32_84 = arith.constant 0 : i32
    %161 = tpu.memref_slice %arg5[%c0_i32_83, %c0_i32_84] : memref<24x64xi32, #tpu.memory_space<any>> -> memref<8x64xi32, #tpu.memory_space<any>>
    %c128_i32_85 = arith.constant 128 : i32
    %c0_i32_86 = arith.constant 0 : i32
    %162 = tpu.memref_slice %arg7[%c128_i32_85, %c0_i32_86] : memref<256x64xi32, #tpu.memory_space<vmem>> -> memref<8x64xi32, #tpu.memory_space<vmem>>
    %163 = tpu.memref_slice %arg8[%c1_i32_82] : memref<2x!tpu.dma_semaphore, #tpu.memory_space<semaphore_mem>> -> memref<1x!tpu.dma_semaphore, #tpu.memory_space<semaphore_mem>>
    %164 = tpu.memref_squeeze %163 : memref<1x!tpu.dma_semaphore, #tpu.memory_space<semaphore_mem>> -> memref<!tpu.dma_semaphore, #tpu.memory_space<semaphore_mem>>
    tpu.wait_dma2 semaphore(%164 : memref<!tpu.dma_semaphore, #tpu.memory_space<semaphore_mem>>) src(%161 : memref<8x64xi32, #tpu.memory_space<any>>) dst(%162 : memref<8x64xi32, #tpu.memory_space<vmem>>)
    %c16_i32_87 = arith.constant 16 : i32
    %165 = arith.addi %5, %c16_i32_87 : i32
    %c0_i32_88 = arith.constant 0 : i32
    %166 = arith.addi %165, %c0_i32_88 : i32
    %167 = arith.index_cast %166 : i32 to index
    %168 = memref.load %arg2[%167] : memref<128xi32, #tpu.memory_space<smem>>
    %169 = arith.addi %1, %168 : i32
    %c0_i32_89 = arith.constant 0 : i32
    %c0_i32_90 = arith.constant 0 : i32
    %170 = tpu.memref_slice %arg5[%169, %c0_i32_90] : memref<24x64xi32, #tpu.memory_space<any>> -> memref<1x64xi32, #tpu.memory_space<any>>
    %c0_i32_91 = arith.constant 0 : i32
    %c0_i32_92 = arith.constant 0 : i32
    %171 = tpu.memref_slice %arg7[%c0_i32_91, %c0_i32_92] : memref<256x64xi32, #tpu.memory_space<vmem>> -> memref<1x64xi32, #tpu.memory_space<vmem>>
    %172 = tpu.memref_slice %arg8[%c0_i32_89] : memref<2x!tpu.dma_semaphore, #tpu.memory_space<semaphore_mem>> -> memref<1x!tpu.dma_semaphore, #tpu.memory_space<semaphore_mem>>
    %173 = tpu.memref_squeeze %172 : memref<1x!tpu.dma_semaphore, #tpu.memory_space<semaphore_mem>> -> memref<!tpu.dma_semaphore, #tpu.memory_space<semaphore_mem>>
    tpu.enqueue_dma source(%170 : memref<1x64xi32, #tpu.memory_space<any>>) target(%171 : memref<1x64xi32, #tpu.memory_space<vmem>>) target_semaphore(%173 : memref<!tpu.dma_semaphore, #tpu.memory_space<semaphore_mem>>)
    %c1_i32_93 = arith.constant 1 : i32
    %174 = arith.addi %165, %c1_i32_93 : i32
    %175 = arith.index_cast %174 : i32 to index
    %176 = memref.load %arg2[%175] : memref<128xi32, #tpu.memory_space<smem>>
    %177 = arith.addi %1, %176 : i32
    %c0_i32_94 = arith.constant 0 : i32
    %c0_i32_95 = arith.constant 0 : i32
    %178 = tpu.memref_slice %arg5[%177, %c0_i32_95] : memref<24x64xi32, #tpu.memory_space<any>> -> memref<1x64xi32, #tpu.memory_space<any>>
    %c1_i32_96 = arith.constant 1 : i32
    %c0_i32_97 = arith.constant 0 : i32
    %179 = tpu.memref_slice %arg7[%c1_i32_96, %c0_i32_97] : memref<256x64xi32, #tpu.memory_space<vmem>> -> memref<1x64xi32, #tpu.memory_space<vmem>>
    %180 = tpu.memref_slice %arg8[%c0_i32_94] : memref<2x!tpu.dma_semaphore, #tpu.memory_space<semaphore_mem>> -> memref<1x!tpu.dma_semaphore, #tpu.memory_space<semaphore_mem>>
    %181 = tpu.memref_squeeze %180 : memref<1x!tpu.dma_semaphore, #tpu.memory_space<semaphore_mem>> -> memref<!tpu.dma_semaphore, #tpu.memory_space<semaphore_mem>>
    tpu.enqueue_dma source(%178 : memref<1x64xi32, #tpu.memory_space<any>>) target(%179 : memref<1x64xi32, #tpu.memory_space<vmem>>) target_semaphore(%181 : memref<!tpu.dma_semaphore, #tpu.memory_space<semaphore_mem>>)
    %c2_i32_98 = arith.constant 2 : i32
    %182 = arith.addi %165, %c2_i32_98 : i32
    %183 = arith.index_cast %182 : i32 to index
    %184 = memref.load %arg2[%183] : memref<128xi32, #tpu.memory_space<smem>>
    %185 = arith.addi %1, %184 : i32
    %c0_i32_99 = arith.constant 0 : i32
    %c0_i32_100 = arith.constant 0 : i32
    %186 = tpu.memref_slice %arg5[%185, %c0_i32_100] : memref<24x64xi32, #tpu.memory_space<any>> -> memref<1x64xi32, #tpu.memory_space<any>>
    %c2_i32_101 = arith.constant 2 : i32
    %c0_i32_102 = arith.constant 0 : i32
    %187 = tpu.memref_slice %arg7[%c2_i32_101, %c0_i32_102] : memref<256x64xi32, #tpu.memory_space<vmem>> -> memref<1x64xi32, #tpu.memory_space<vmem>>
    %188 = tpu.memref_slice %arg8[%c0_i32_99] : memref<2x!tpu.dma_semaphore, #tpu.memory_space<semaphore_mem>> -> memref<1x!tpu.dma_semaphore, #tpu.memory_space<semaphore_mem>>
    %189 = tpu.memref_squeeze %188 : memref<1x!tpu.dma_semaphore, #tpu.memory_space<semaphore_mem>> -> memref<!tpu.dma_semaphore, #tpu.memory_space<semaphore_mem>>
    tpu.enqueue_dma source(%186 : memref<1x64xi32, #tpu.memory_space<any>>) target(%187 : memref<1x64xi32, #tpu.memory_space<vmem>>) target_semaphore(%189 : memref<!tpu.dma_semaphore, #tpu.memory_space<semaphore_mem>>)
    %c3_i32_103 = arith.constant 3 : i32
    %190 = arith.addi %165, %c3_i32_103 : i32
    %191 = arith.index_cast %190 : i32 to index
    %192 = memref.load %arg2[%191] : memref<128xi32, #tpu.memory_space<smem>>
    %193 = arith.addi %1, %192 : i32
    %c0_i32_104 = arith.constant 0 : i32
    %c0_i32_105 = arith.constant 0 : i32
    %194 = tpu.memref_slice %arg5[%193, %c0_i32_105] : memref<24x64xi32, #tpu.memory_space<any>> -> memref<1x64xi32, #tpu.memory_space<any>>
    %c3_i32_106 = arith.constant 3 : i32
    %c0_i32_107 = arith.constant 0 : i32
    %195 = tpu.memref_slice %arg7[%c3_i32_106, %c0_i32_107] : memref<256x64xi32, #tpu.memory_space<vmem>> -> memref<1x64xi32, #tpu.memory_space<vmem>>
    %196 = tpu.memref_slice %arg8[%c0_i32_104] : memref<2x!tpu.dma_semaphore, #tpu.memory_space<semaphore_mem>> -> memref<1x!tpu.dma_semaphore, #tpu.memory_space<semaphore_mem>>
    %197 = tpu.memref_squeeze %196 : memref<1x!tpu.dma_semaphore, #tpu.memory_space<semaphore_mem>> -> memref<!tpu.dma_semaphore, #tpu.memory_space<semaphore_mem>>
    tpu.enqueue_dma source(%194 : memref<1x64xi32, #tpu.memory_space<any>>) target(%195 : memref<1x64xi32, #tpu.memory_space<vmem>>) target_semaphore(%197 : memref<!tpu.dma_semaphore, #tpu.memory_space<semaphore_mem>>)
    %c4_i32_108 = arith.constant 4 : i32
    %198 = arith.addi %165, %c4_i32_108 : i32
    %199 = arith.index_cast %198 : i32 to index
    %200 = memref.load %arg2[%199] : memref<128xi32, #tpu.memory_space<smem>>
    %201 = arith.addi %1, %200 : i32
    %c0_i32_109 = arith.constant 0 : i32
    %c0_i32_110 = arith.constant 0 : i32
    %202 = tpu.memref_slice %arg5[%201, %c0_i32_110] : memref<24x64xi32, #tpu.memory_space<any>> -> memref<1x64xi32, #tpu.memory_space<any>>
    %c4_i32_111 = arith.constant 4 : i32
    %c0_i32_112 = arith.constant 0 : i32
    %203 = tpu.memref_slice %arg7[%c4_i32_111, %c0_i32_112] : memref<256x64xi32, #tpu.memory_space<vmem>> -> memref<1x64xi32, #tpu.memory_space<vmem>>
    %204 = tpu.memref_slice %arg8[%c0_i32_109] : memref<2x!tpu.dma_semaphore, #tpu.memory_space<semaphore_mem>> -> memref<1x!tpu.dma_semaphore, #tpu.memory_space<semaphore_mem>>
    %205 = tpu.memref_squeeze %204 : memref<1x!tpu.dma_semaphore, #tpu.memory_space<semaphore_mem>> -> memref<!tpu.dma_semaphore, #tpu.memory_space<semaphore_mem>>
    tpu.enqueue_dma source(%202 : memref<1x64xi32, #tpu.memory_space<any>>) target(%203 : memref<1x64xi32, #tpu.memory_space<vmem>>) target_semaphore(%205 : memref<!tpu.dma_semaphore, #tpu.memory_space<semaphore_mem>>)
    %c5_i32_113 = arith.constant 5 : i32
    %206 = arith.addi %165, %c5_i32_113 : i32
    %207 = arith.index_cast %206 : i32 to index
    %208 = memref.load %arg2[%207] : memref<128xi32, #tpu.memory_space<smem>>
    %209 = arith.addi %1, %208 : i32
    %c0_i32_114 = arith.constant 0 : i32
    %c0_i32_115 = arith.constant 0 : i32
    %210 = tpu.memref_slice %arg5[%209, %c0_i32_115] : memref<24x64xi32, #tpu.memory_space<any>> -> memref<1x64xi32, #tpu.memory_space<any>>
    %c5_i32_116 = arith.constant 5 : i32
    %c0_i32_117 = arith.constant 0 : i32
    %211 = tpu.memref_slice %arg7[%c5_i32_116, %c0_i32_117] : memref<256x64xi32, #tpu.memory_space<vmem>> -> memref<1x64xi32, #tpu.memory_space<vmem>>
    %212 = tpu.memref_slice %arg8[%c0_i32_114] : memref<2x!tpu.dma_semaphore, #tpu.memory_space<semaphore_mem>> -> memref<1x!tpu.dma_semaphore, #tpu.memory_space<semaphore_mem>>
    %213 = tpu.memref_squeeze %212 : memref<1x!tpu.dma_semaphore, #tpu.memory_space<semaphore_mem>> -> memref<!tpu.dma_semaphore, #tpu.memory_space<semaphore_mem>>
    tpu.enqueue_dma source(%210 : memref<1x64xi32, #tpu.memory_space<any>>) target(%211 : memref<1x64xi32, #tpu.memory_space<vmem>>) target_semaphore(%213 : memref<!tpu.dma_semaphore, #tpu.memory_space<semaphore_mem>>)
    %c6_i32_118 = arith.constant 6 : i32
    %214 = arith.addi %165, %c6_i32_118 : i32
    %215 = arith.index_cast %214 : i32 to index
    %216 = memref.load %arg2[%215] : memref<128xi32, #tpu.memory_space<smem>>
    %217 = arith.addi %1, %216 : i32
    %c0_i32_119 = arith.constant 0 : i32
    %c0_i32_120 = arith.constant 0 : i32
    %218 = tpu.memref_slice %arg5[%217, %c0_i32_120] : memref<24x64xi32, #tpu.memory_space<any>> -> memref<1x64xi32, #tpu.memory_space<any>>
    %c6_i32_121 = arith.constant 6 : i32
    %c0_i32_122 = arith.constant 0 : i32
    %219 = tpu.memref_slice %arg7[%c6_i32_121, %c0_i32_122] : memref<256x64xi32, #tpu.memory_space<vmem>> -> memref<1x64xi32, #tpu.memory_space<vmem>>
    %220 = tpu.memref_slice %arg8[%c0_i32_119] : memref<2x!tpu.dma_semaphore, #tpu.memory_space<semaphore_mem>> -> memref<1x!tpu.dma_semaphore, #tpu.memory_space<semaphore_mem>>
    %221 = tpu.memref_squeeze %220 : memref<1x!tpu.dma_semaphore, #tpu.memory_space<semaphore_mem>> -> memref<!tpu.dma_semaphore, #tpu.memory_space<semaphore_mem>>
    tpu.enqueue_dma source(%218 : memref<1x64xi32, #tpu.memory_space<any>>) target(%219 : memref<1x64xi32, #tpu.memory_space<vmem>>) target_semaphore(%221 : memref<!tpu.dma_semaphore, #tpu.memory_space<semaphore_mem>>)
    %c7_i32_123 = arith.constant 7 : i32
    %222 = arith.addi %165, %c7_i32_123 : i32
    %223 = arith.index_cast %222 : i32 to index
    %224 = memref.load %arg2[%223] : memref<128xi32, #tpu.memory_space<smem>>
    %225 = arith.addi %1, %224 : i32
    %c0_i32_124 = arith.constant 0 : i32
    %c0_i32_125 = arith.constant 0 : i32
    %226 = tpu.memref_slice %arg5[%225, %c0_i32_125] : memref<24x64xi32, #tpu.memory_space<any>> -> memref<1x64xi32, #tpu.memory_space<any>>
    %c7_i32_126 = arith.constant 7 : i32
    %c0_i32_127 = arith.constant 0 : i32
    %227 = tpu.memref_slice %arg7[%c7_i32_126, %c0_i32_127] : memref<256x64xi32, #tpu.memory_space<vmem>> -> memref<1x64xi32, #tpu.memory_space<vmem>>
    %228 = tpu.memref_slice %arg8[%c0_i32_124] : memref<2x!tpu.dma_semaphore, #tpu.memory_space<semaphore_mem>> -> memref<1x!tpu.dma_semaphore, #tpu.memory_space<semaphore_mem>>
    %229 = tpu.memref_squeeze %228 : memref<1x!tpu.dma_semaphore, #tpu.memory_space<semaphore_mem>> -> memref<!tpu.dma_semaphore, #tpu.memory_space<semaphore_mem>>
    tpu.enqueue_dma source(%226 : memref<1x64xi32, #tpu.memory_space<any>>) target(%227 : memref<1x64xi32, #tpu.memory_space<vmem>>) target_semaphore(%229 : memref<!tpu.dma_semaphore, #tpu.memory_space<semaphore_mem>>)
    %c128 = arith.constant 128 : index
    %c0_128 = arith.constant 0 : index
    %230 = vector.load %arg7[%c128, %c0_128] : memref<256x64xi32, #tpu.memory_space<vmem>>, vector<128x64xi32>
    %c16_i32_129 = arith.constant 16 : i32
    %231 = vector.broadcast %c16_i32_129 : i32 to vector<128x64xi32>
    %232 = arith.shli %230, %231 : vector<128x64xi32>
    %233 = tpu.bitcast %232 : vector<128x64xi32> -> vector<128x64xf32>
    %c-65536_i32_130 = arith.constant -65536 : i32
    %234 = vector.broadcast %c-65536_i32_130 : i32 to vector<128x64xi32>
    %235 = arith.andi %230, %234 : vector<128x64xi32>
    %236 = tpu.bitcast %235 : vector<128x64xi32> -> vector<128x64xf32>
    %c1 = arith.constant 1 : index
    %c0_131 = arith.constant 0 : index
    %237 = vector.load %arg4[%c1, %c0_131] : memref<8x128xf32, #tpu.memory_space<vmem>>, vector<1x128xf32>
    %238 = vector.extract_strided_slice %237 {offsets = [0, 0], sizes = [1, 64], strides = [1, 1]} : vector<1x128xf32> to vector<1x64xf32>
    %239 = vector.extract_strided_slice %237 {offsets = [0, 64], sizes = [1, 64], strides = [1, 1]} : vector<1x128xf32> to vector<1x64xf32>
    %cst_132 = arith.constant dense<0.000000e+00> : vector<1x128xf32>
    %240 = tpu.matmul %238, %233, %cst_132 {dimension_numbers = #tpu.dot_dimension_numbers<[1], [1], [0], [0], [0, 0, 1, 0], [], []>} : vector<1x64xf32>, vector<128x64xf32>, vector<1x128xf32> -> vector<1x128xf32>
    %cst_133 = arith.constant dense<0.000000e+00> : vector<1x128xf32>
    %241 = tpu.matmul %239, %236, %cst_133 {dimension_numbers = #tpu.dot_dimension_numbers<[1], [1], [0], [0], [0, 0, 1, 0], [], []>} : vector<1x64xf32>, vector<128x64xf32>, vector<1x128xf32> -> vector<1x128xf32>
    %242 = arith.addf %240, %241 : vector<1x128xf32>
    %cst_134 = arith.constant 0.000000e+00 : f32
    %243 = vector.broadcast %cst_134 : f32 to vector<1x128xf32>
    %244 = arith.select %8, %242, %243 : vector<1x128xi1>, vector<1x128xf32>
    %c0_135 = arith.constant 0 : index
    %c1_136 = arith.constant 1 : index
    %c0_137 = arith.constant 0 : index
    %245 = vector.load %arg6[%c0_135, %c1_136, %c0_137] : memref<1x8x128xf32, #tpu.memory_space<vmem>>, vector<1x1x128xf32>
    %246 = vector.shape_cast %245 : vector<1x1x128xf32> to vector<1x128xf32>
    %247 = vector.shape_cast %244 : vector<1x128xf32> to vector<1x1x128xf32>
    tpu.vector_store %arg6[%c0_135, %c1_136, %c0_137], %247 {strides = array<i32>} : memref<1x8x128xf32, #tpu.memory_space<vmem>>, vector<1x1x128xf32>,
    %c0_i32_138 = arith.constant 0 : i32
    %c0_i32_139 = arith.constant 0 : i32
    %c0_i32_140 = arith.constant 0 : i32
    %248 = tpu.memref_slice %arg5[%c0_i32_139, %c0_i32_140] : memref<24x64xi32, #tpu.memory_space<any>> -> memref<8x64xi32, #tpu.memory_space<any>>
    %c0_i32_141 = arith.constant 0 : i32
    %c0_i32_142 = arith.constant 0 : i32
    %249 = tpu.memref_slice %arg7[%c0_i32_141, %c0_i32_142] : memref<256x64xi32, #tpu.memory_space<vmem>> -> memref<8x64xi32, #tpu.memory_space<vmem>>
    %250 = tpu.memref_slice %arg8[%c0_i32_138] : memref<2x!tpu.dma_semaphore, #tpu.memory_space<semaphore_mem>> -> memref<1x!tpu.dma_semaphore, #tpu.memory_space<semaphore_mem>>
    %251 = tpu.memref_squeeze %250 : memref<1x!tpu.dma_semaphore, #tpu.memory_space<semaphore_mem>> -> memref<!tpu.dma_semaphore, #tpu.memory_space<semaphore_mem>>
    tpu.wait_dma2 semaphore(%251 : memref<!tpu.dma_semaphore, #tpu.memory_space<semaphore_mem>>) src(%248 : memref<8x64xi32, #tpu.memory_space<any>>) dst(%249 : memref<8x64xi32, #tpu.memory_space<vmem>>)
    %c24_i32 = arith.constant 24 : i32
    %252 = arith.addi %5, %c24_i32 : i32
    %c0_i32_143 = arith.constant 0 : i32
    %253 = arith.addi %252, %c0_i32_143 : i32
    %254 = arith.index_cast %253 : i32 to index
    %255 = memref.load %arg2[%254] : memref<128xi32, #tpu.memory_space<smem>>
    %256 = arith.addi %1, %255 : i32
    %c1_i32_144 = arith.constant 1 : i32
    %c0_i32_145 = arith.constant 0 : i32
    %257 = tpu.memref_slice %arg5[%256, %c0_i32_145] : memref<24x64xi32, #tpu.memory_space<any>> -> memref<1x64xi32, #tpu.memory_space<any>>
    %c128_i32_146 = arith.constant 128 : i32
    %c0_i32_147 = arith.constant 0 : i32
    %258 = tpu.memref_slice %arg7[%c128_i32_146, %c0_i32_147] : memref<256x64xi32, #tpu.memory_space<vmem>> -> memref<1x64xi32, #tpu.memory_space<vmem>>
    %259 = tpu.memref_slice %arg8[%c1_i32_144] : memref<2x!tpu.dma_semaphore, #tpu.memory_space<semaphore_mem>> -> memref<1x!tpu.dma_semaphore, #tpu.memory_space<semaphore_mem>>
    %260 = tpu.memref_squeeze %259 : memref<1x!tpu.dma_semaphore, #tpu.memory_space<semaphore_mem>> -> memref<!tpu.dma_semaphore, #tpu.memory_space<semaphore_mem>>
    tpu.enqueue_dma source(%257 : memref<1x64xi32, #tpu.memory_space<any>>) target(%258 : memref<1x64xi32, #tpu.memory_space<vmem>>) target_semaphore(%260 : memref<!tpu.dma_semaphore, #tpu.memory_space<semaphore_mem>>)
    %c1_i32_148 = arith.constant 1 : i32
    %261 = arith.addi %252, %c1_i32_148 : i32
    %262 = arith.index_cast %261 : i32 to index
    %263 = memref.load %arg2[%262] : memref<128xi32, #tpu.memory_space<smem>>
    %264 = arith.addi %1, %263 : i32
    %c1_i32_149 = arith.constant 1 : i32
    %c0_i32_150 = arith.constant 0 : i32
    %265 = tpu.memref_slice %arg5[%264, %c0_i32_150] : memref<24x64xi32, #tpu.memory_space<any>> -> memref<1x64xi32, #tpu.memory_space<any>>
    %c129_i32_151 = arith.constant 129 : i32
    %c0_i32_152 = arith.constant 0 : i32
    %266 = tpu.memref_slice %arg7[%c129_i32_151, %c0_i32_152] : memref<256x64xi32, #tpu.memory_space<vmem>> -> memref<1x64xi32, #tpu.memory_space<vmem>>
    %267 = tpu.memref_slice %arg8[%c1_i32_149] : memref<2x!tpu.dma_semaphore, #tpu.memory_space<semaphore_mem>> -> memref<1x!tpu.dma_semaphore, #tpu.memory_space<semaphore_mem>>
    %268 = tpu.memref_squeeze %267 : memref<1x!tpu.dma_semaphore, #tpu.memory_space<semaphore_mem>> -> memref<!tpu.dma_semaphore, #tpu.memory_space<semaphore_mem>>
    tpu.enqueue_dma source(%265 : memref<1x64xi32, #tpu.memory_space<any>>) target(%266 : memref<1x64xi32, #tpu.memory_space<vmem>>) target_semaphore(%268 : memref<!tpu.dma_semaphore, #tpu.memory_space<semaphore_mem>>)
    %c2_i32_153 = arith.constant 2 : i32
    %269 = arith.addi %252, %c2_i32_153 : i32
    %270 = arith.index_cast %269 : i32 to index
    %271 = memref.load %arg2[%270] : memref<128xi32, #tpu.memory_space<smem>>
    %272 = arith.addi %1, %271 : i32
    %c1_i32_154 = arith.constant 1 : i32
    %c0_i32_155 = arith.constant 0 : i32
    %273 = tpu.memref_slice %arg5[%272, %c0_i32_155] : memref<24x64xi32, #tpu.memory_space<any>> -> memref<1x64xi32, #tpu.memory_space<any>>
    %c130_i32_156 = arith.constant 130 : i32
    %c0_i32_157 = arith.constant 0 : i32
    %274 = tpu.memref_slice %arg7[%c130_i32_156, %c0_i32_157] : memref<256x64xi32, #tpu.memory_space<vmem>> -> memref<1x64xi32, #tpu.memory_space<vmem>>
    %275 = tpu.memref_slice %arg8[%c1_i32_154] : memref<2x!tpu.dma_semaphore, #tpu.memory_space<semaphore_mem>> -> memref<1x!tpu.dma_semaphore, #tpu.memory_space<semaphore_mem>>
    %276 = tpu.memref_squeeze %275 : memref<1x!tpu.dma_semaphore, #tpu.memory_space<semaphore_mem>> -> memref<!tpu.dma_semaphore, #tpu.memory_space<semaphore_mem>>
    tpu.enqueue_dma source(%273 : memref<1x64xi32, #tpu.memory_space<any>>) target(%274 : memref<1x64xi32, #tpu.memory_space<vmem>>) target_semaphore(%276 : memref<!tpu.dma_semaphore, #tpu.memory_space<semaphore_mem>>)
    %c3_i32_158 = arith.constant 3 : i32
    %277 = arith.addi %252, %c3_i32_158 : i32
    %278 = arith.index_cast %277 : i32 to index
    %279 = memref.load %arg2[%278] : memref<128xi32, #tpu.memory_space<smem>>
    %280 = arith.addi %1, %279 : i32
    %c1_i32_159 = arith.constant 1 : i32
    %c0_i32_160 = arith.constant 0 : i32
    %281 = tpu.memref_slice %arg5[%280, %c0_i32_160] : memref<24x64xi32, #tpu.memory_space<any>> -> memref<1x64xi32, #tpu.memory_space<any>>
    %c131_i32_161 = arith.constant 131 : i32
    %c0_i32_162 = arith.constant 0 : i32
    %282 = tpu.memref_slice %arg7[%c131_i32_161, %c0_i32_162] : memref<256x64xi32, #tpu.memory_space<vmem>> -> memref<1x64xi32, #tpu.memory_space<vmem>>
    %283 = tpu.memref_slice %arg8[%c1_i32_159] : memref<2x!tpu.dma_semaphore, #tpu.memory_space<semaphore_mem>> -> memref<1x!tpu.dma_semaphore, #tpu.memory_space<semaphore_mem>>
    %284 = tpu.memref_squeeze %283 : memref<1x!tpu.dma_semaphore, #tpu.memory_space<semaphore_mem>> -> memref<!tpu.dma_semaphore, #tpu.memory_space<semaphore_mem>>
    tpu.enqueue_dma source(%281 : memref<1x64xi32, #tpu.memory_space<any>>) target(%282 : memref<1x64xi32, #tpu.memory_space<vmem>>) target_semaphore(%284 : memref<!tpu.dma_semaphore, #tpu.memory_space<semaphore_mem>>)
    %c4_i32_163 = arith.constant 4 : i32
    %285 = arith.addi %252, %c4_i32_163 : i32
    %286 = arith.index_cast %285 : i32 to index
    %287 = memref.load %arg2[%286] : memref<128xi32, #tpu.memory_space<smem>>
    %288 = arith.addi %1, %287 : i32
    %c1_i32_164 = arith.constant 1 : i32
    %c0_i32_165 = arith.constant 0 : i32
    %289 = tpu.memref_slice %arg5[%288, %c0_i32_165] : memref<24x64xi32, #tpu.memory_space<any>> -> memref<1x64xi32, #tpu.memory_space<any>>
    %c132_i32_166 = arith.constant 132 : i32
    %c0_i32_167 = arith.constant 0 : i32
    %290 = tpu.memref_slice %arg7[%c132_i32_166, %c0_i32_167] : memref<256x64xi32, #tpu.memory_space<vmem>> -> memref<1x64xi32, #tpu.memory_space<vmem>>
    %291 = tpu.memref_slice %arg8[%c1_i32_164] : memref<2x!tpu.dma_semaphore, #tpu.memory_space<semaphore_mem>> -> memref<1x!tpu.dma_semaphore, #tpu.memory_space<semaphore_mem>>
    %292 = tpu.memref_squeeze %291 : memref<1x!tpu.dma_semaphore, #tpu.memory_space<semaphore_mem>> -> memref<!tpu.dma_semaphore, #tpu.memory_space<semaphore_mem>>
    tpu.enqueue_dma source(%289 : memref<1x64xi32, #tpu.memory_space<any>>) target(%290 : memref<1x64xi32, #tpu.memory_space<vmem>>) target_semaphore(%292 : memref<!tpu.dma_semaphore, #tpu.memory_space<semaphore_mem>>)
    %c5_i32_168 = arith.constant 5 : i32
    %293 = arith.addi %252, %c5_i32_168 : i32
    %294 = arith.index_cast %293 : i32 to index
    %295 = memref.load %arg2[%294] : memref<128xi32, #tpu.memory_space<smem>>
    %296 = arith.addi %1, %295 : i32
    %c1_i32_169 = arith.constant 1 : i32
    %c0_i32_170 = arith.constant 0 : i32
    %297 = tpu.memref_slice %arg5[%296, %c0_i32_170] : memref<24x64xi32, #tpu.memory_space<any>> -> memref<1x64xi32, #tpu.memory_space<any>>
    %c133_i32_171 = arith.constant 133 : i32
    %c0_i32_172 = arith.constant 0 : i32
    %298 = tpu.memref_slice %arg7[%c133_i32_171, %c0_i32_172] : memref<256x64xi32, #tpu.memory_space<vmem>> -> memref<1x64xi32, #tpu.memory_space<vmem>>
    %299 = tpu.memref_slice %arg8[%c1_i32_169] : memref<2x!tpu.dma_semaphore, #tpu.memory_space<semaphore_mem>> -> memref<1x!tpu.dma_semaphore, #tpu.memory_space<semaphore_mem>>
    %300 = tpu.memref_squeeze %299 : memref<1x!tpu.dma_semaphore, #tpu.memory_space<semaphore_mem>> -> memref<!tpu.dma_semaphore, #tpu.memory_space<semaphore_mem>>
    tpu.enqueue_dma source(%297 : memref<1x64xi32, #tpu.memory_space<any>>) target(%298 : memref<1x64xi32, #tpu.memory_space<vmem>>) target_semaphore(%300 : memref<!tpu.dma_semaphore, #tpu.memory_space<semaphore_mem>>)
    %c6_i32_173 = arith.constant 6 : i32
    %301 = arith.addi %252, %c6_i32_173 : i32
    %302 = arith.index_cast %301 : i32 to index
    %303 = memref.load %arg2[%302] : memref<128xi32, #tpu.memory_space<smem>>
    %304 = arith.addi %1, %303 : i32
    %c1_i32_174 = arith.constant 1 : i32
    %c0_i32_175 = arith.constant 0 : i32
    %305 = tpu.memref_slice %arg5[%304, %c0_i32_175] : memref<24x64xi32, #tpu.memory_space<any>> -> memref<1x64xi32, #tpu.memory_space<any>>
    %c134_i32_176 = arith.constant 134 : i32
    %c0_i32_177 = arith.constant 0 : i32
    %306 = tpu.memref_slice %arg7[%c134_i32_176, %c0_i32_177] : memref<256x64xi32, #tpu.memory_space<vmem>> -> memref<1x64xi32, #tpu.memory_space<vmem>>
    %307 = tpu.memref_slice %arg8[%c1_i32_174] : memref<2x!tpu.dma_semaphore, #tpu.memory_space<semaphore_mem>> -> memref<1x!tpu.dma_semaphore, #tpu.memory_space<semaphore_mem>>
    %308 = tpu.memref_squeeze %307 : memref<1x!tpu.dma_semaphore, #tpu.memory_space<semaphore_mem>> -> memref<!tpu.dma_semaphore, #tpu.memory_space<semaphore_mem>>
    tpu.enqueue_dma source(%305 : memref<1x64xi32, #tpu.memory_space<any>>) target(%306 : memref<1x64xi32, #tpu.memory_space<vmem>>) target_semaphore(%308 : memref<!tpu.dma_semaphore, #tpu.memory_space<semaphore_mem>>)
    %c7_i32_178 = arith.constant 7 : i32
    %309 = arith.addi %252, %c7_i32_178 : i32
    %310 = arith.index_cast %309 : i32 to index
    %311 = memref.load %arg2[%310] : memref<128xi32, #tpu.memory_space<smem>>
    %312 = arith.addi %1, %311 : i32
    %c1_i32_179 = arith.constant 1 : i32
    %c0_i32_180 = arith.constant 0 : i32
    %313 = tpu.memref_slice %arg5[%312, %c0_i32_180] : memref<24x64xi32, #tpu.memory_space<any>> -> memref<1x64xi32, #tpu.memory_space<any>>
    %c135_i32_181 = arith.constant 135 : i32
    %c0_i32_182 = arith.constant 0 : i32
    %314 = tpu.memref_slice %arg7[%c135_i32_181, %c0_i32_182] : memref<256x64xi32, #tpu.memory_space<vmem>> -> memref<1x64xi32, #tpu.memory_space<vmem>>
    %315 = tpu.memref_slice %arg8[%c1_i32_179] : memref<2x!tpu.dma_semaphore, #tpu.memory_space<semaphore_mem>> -> memref<1x!tpu.dma_semaphore, #tpu.memory_space<semaphore_mem>>
    %316 = tpu.memref_squeeze %315 : memref<1x!tpu.dma_semaphore, #tpu.memory_space<semaphore_mem>> -> memref<!tpu.dma_semaphore, #tpu.memory_space<semaphore_mem>>
    tpu.enqueue_dma source(%313 : memref<1x64xi32, #tpu.memory_space<any>>) target(%314 : memref<1x64xi32, #tpu.memory_space<vmem>>) target_semaphore(%316 : memref<!tpu.dma_semaphore, #tpu.memory_space<semaphore_mem>>)
    %c0_183 = arith.constant 0 : index
    %c0_184 = arith.constant 0 : index
    %317 = vector.load %arg7[%c0_183, %c0_184] : memref<256x64xi32, #tpu.memory_space<vmem>>, vector<128x64xi32>
    %c16_i32_185 = arith.constant 16 : i32
    %318 = vector.broadcast %c16_i32_185 : i32 to vector<128x64xi32>
    %319 = arith.shli %317, %318 : vector<128x64xi32>
    %320 = tpu.bitcast %319 : vector<128x64xi32> -> vector<128x64xf32>
    %c-65536_i32_186 = arith.constant -65536 : i32
    %321 = vector.broadcast %c-65536_i32_186 : i32 to vector<128x64xi32>
    %322 = arith.andi %317, %321 : vector<128x64xi32>
    %323 = tpu.bitcast %322 : vector<128x64xi32> -> vector<128x64xf32>
    %c2 = arith.constant 2 : index
    %c0_187 = arith.constant 0 : index
    %324 = vector.load %arg4[%c2, %c0_187] : memref<8x128xf32, #tpu.memory_space<vmem>>, vector<1x128xf32>
    %325 = vector.extract_strided_slice %324 {offsets = [0, 0], sizes = [1, 64], strides = [1, 1]} : vector<1x128xf32> to vector<1x64xf32>
    %326 = vector.extract_strided_slice %324 {offsets = [0, 64], sizes = [1, 64], strides = [1, 1]} : vector<1x128xf32> to vector<1x64xf32>
    %cst_188 = arith.constant dense<0.000000e+00> : vector<1x128xf32>
    %327 = tpu.matmul %325, %320, %cst_188 {dimension_numbers = #tpu.dot_dimension_numbers<[1], [1], [0], [0], [0, 0, 1, 0], [], []>} : vector<1x64xf32>, vector<128x64xf32>, vector<1x128xf32> -> vector<1x128xf32>
    %cst_189 = arith.constant dense<0.000000e+00> : vector<1x128xf32>
    %328 = tpu.matmul %326, %323, %cst_189 {dimension_numbers = #tpu.dot_dimension_numbers<[1], [1], [0], [0], [0, 0, 1, 0], [], []>} : vector<1x64xf32>, vector<128x64xf32>, vector<1x128xf32> -> vector<1x128xf32>
    %329 = arith.addf %327, %328 : vector<1x128xf32>
    %cst_190 = arith.constant 0.000000e+00 : f32
    %330 = vector.broadcast %cst_190 : f32 to vector<1x128xf32>
    %331 = arith.select %8, %329, %330 : vector<1x128xi1>, vector<1x128xf32>
    %c0_191 = arith.constant 0 : index
    %c2_192 = arith.constant 2 : index
    %c0_193 = arith.constant 0 : index
    %332 = vector.load %arg6[%c0_191, %c2_192, %c0_193] : memref<1x8x128xf32, #tpu.memory_space<vmem>>, vector<1x1x128xf32>
    %333 = vector.shape_cast %332 : vector<1x1x128xf32> to vector<1x128xf32>
    %334 = vector.shape_cast %331 : vector<1x128xf32> to vector<1x1x128xf32>
    tpu.vector_store %arg6[%c0_191, %c2_192, %c0_193], %334 {strides = array<i32>} : memref<1x8x128xf32, #tpu.memory_space<vmem>>, vector<1x1x128xf32>,
    %c1_i32_194 = arith.constant 1 : i32
    %c0_i32_195 = arith.constant 0 : i32
    %c0_i32_196 = arith.constant 0 : i32
    %335 = tpu.memref_slice %arg5[%c0_i32_195, %c0_i32_196] : memref<24x64xi32, #tpu.memory_space<any>> -> memref<8x64xi32, #tpu.memory_space<any>>
    %c128_i32_197 = arith.constant 128 : i32
    %c0_i32_198 = arith.constant 0 : i32
    %336 = tpu.memref_slice %arg7[%c128_i32_197, %c0_i32_198] : memref<256x64xi32, #tpu.memory_space<vmem>> -> memref<8x64xi32, #tpu.memory_space<vmem>>
    %337 = tpu.memref_slice %arg8[%c1_i32_194] : memref<2x!tpu.dma_semaphore, #tpu.memory_space<semaphore_mem>> -> memref<1x!tpu.dma_semaphore, #tpu.memory_space<semaphore_mem>>
    %338 = tpu.memref_squeeze %337 : memref<1x!tpu.dma_semaphore, #tpu.memory_space<semaphore_mem>> -> memref<!tpu.dma_semaphore, #tpu.memory_space<semaphore_mem>>
    tpu.wait_dma2 semaphore(%338 : memref<!tpu.dma_semaphore, #tpu.memory_space<semaphore_mem>>) src(%335 : memref<8x64xi32, #tpu.memory_space<any>>) dst(%336 : memref<8x64xi32, #tpu.memory_space<vmem>>)
    %c32_i32 = arith.constant 32 : i32
    %339 = arith.addi %5, %c32_i32 : i32
    %c0_i32_199 = arith.constant 0 : i32
    %340 = arith.addi %339, %c0_i32_199 : i32
    %341 = arith.index_cast %340 : i32 to index
    %342 = memref.load %arg2[%341] : memref<128xi32, #tpu.memory_space<smem>>
    %343 = arith.addi %1, %342 : i32
    %c0_i32_200 = arith.constant 0 : i32
    %c0_i32_201 = arith.constant 0 : i32
    %344 = tpu.memref_slice %arg5[%343, %c0_i32_201] : memref<24x64xi32, #tpu.memory_space<any>> -> memref<1x64xi32, #tpu.memory_space<any>>
    %c0_i32_202 = arith.constant 0 : i32
    %c0_i32_203 = arith.constant 0 : i32
    %345 = tpu.memref_slice %arg7[%c0_i32_202, %c0_i32_203] : memref<256x64xi32, #tpu.memory_space<vmem>> -> memref<1x64xi32, #tpu.memory_space<vmem>>
    %346 = tpu.memref_slice %arg8[%c0_i32_200] : memref<2x!tpu.dma_semaphore, #tpu.memory_space<semaphore_mem>> -> memref<1x!tpu.dma_semaphore, #tpu.memory_space<semaphore_mem>>
    %347 = tpu.memref_squeeze %346 : memref<1x!tpu.dma_semaphore, #tpu.memory_space<semaphore_mem>> -> memref<!tpu.dma_semaphore, #tpu.memory_space<semaphore_mem>>
    tpu.enqueue_dma source(%344 : memref<1x64xi32, #tpu.memory_space<any>>) target(%345 : memref<1x64xi32, #tpu.memory_space<vmem>>) target_semaphore(%347 : memref<!tpu.dma_semaphore, #tpu.memory_space<semaphore_mem>>)
    %c1_i32_204 = arith.constant 1 : i32
    %348 = arith.addi %339, %c1_i32_204 : i32
    %349 = arith.index_cast %348 : i32 to index
    %350 = memref.load %arg2[%349] : memref<128xi32, #tpu.memory_space<smem>>
    %351 = arith.addi %1, %350 : i32
    %c0_i32_205 = arith.constant 0 : i32
    %c0_i32_206 = arith.constant 0 : i32
    %352 = tpu.memref_slice %arg5[%351, %c0_i32_206] : memref<24x64xi32, #tpu.memory_space<any>> -> memref<1x64xi32, #tpu.memory_space<any>>
    %c1_i32_207 = arith.constant 1 : i32
    %c0_i32_208 = arith.constant 0 : i32
    %353 = tpu.memref_slice %arg7[%c1_i32_207, %c0_i32_208] : memref<256x64xi32, #tpu.memory_space<vmem>> -> memref<1x64xi32, #tpu.memory_space<vmem>>
    %354 = tpu.memref_slice %arg8[%c0_i32_205] : memref<2x!tpu.dma_semaphore, #tpu.memory_space<semaphore_mem>> -> memref<1x!tpu.dma_semaphore, #tpu.memory_space<semaphore_mem>>
    %355 = tpu.memref_squeeze %354 : memref<1x!tpu.dma_semaphore, #tpu.memory_space<semaphore_mem>> -> memref<!tpu.dma_semaphore, #tpu.memory_space<semaphore_mem>>
    tpu.enqueue_dma source(%352 : memref<1x64xi32, #tpu.memory_space<any>>) target(%353 : memref<1x64xi32, #tpu.memory_space<vmem>>) target_semaphore(%355 : memref<!tpu.dma_semaphore, #tpu.memory_space<semaphore_mem>>)
    %c2_i32_209 = arith.constant 2 : i32
    %356 = arith.addi %339, %c2_i32_209 : i32
    %357 = arith.index_cast %356 : i32 to index
    %358 = memref.load %arg2[%357] : memref<128xi32, #tpu.memory_space<smem>>
    %359 = arith.addi %1, %358 : i32
    %c0_i32_210 = arith.constant 0 : i32
    %c0_i32_211 = arith.constant 0 : i32
    %360 = tpu.memref_slice %arg5[%359, %c0_i32_211] : memref<24x64xi32, #tpu.memory_space<any>> -> memref<1x64xi32, #tpu.memory_space<any>>
    %c2_i32_212 = arith.constant 2 : i32
    %c0_i32_213 = arith.constant 0 : i32
    %361 = tpu.memref_slice %arg7[%c2_i32_212, %c0_i32_213] : memref<256x64xi32, #tpu.memory_space<vmem>> -> memref<1x64xi32, #tpu.memory_space<vmem>>
    %362 = tpu.memref_slice %arg8[%c0_i32_210] : memref<2x!tpu.dma_semaphore, #tpu.memory_space<semaphore_mem>> -> memref<1x!tpu.dma_semaphore, #tpu.memory_space<semaphore_mem>>
    %363 = tpu.memref_squeeze %362 : memref<1x!tpu.dma_semaphore, #tpu.memory_space<semaphore_mem>> -> memref<!tpu.dma_semaphore, #tpu.memory_space<semaphore_mem>>
    tpu.enqueue_dma source(%360 : memref<1x64xi32, #tpu.memory_space<any>>) target(%361 : memref<1x64xi32, #tpu.memory_space<vmem>>) target_semaphore(%363 : memref<!tpu.dma_semaphore, #tpu.memory_space<semaphore_mem>>)
    %c3_i32_214 = arith.constant 3 : i32
    %364 = arith.addi %339, %c3_i32_214 : i32
    %365 = arith.index_cast %364 : i32 to index
    %366 = memref.load %arg2[%365] : memref<128xi32, #tpu.memory_space<smem>>
    %367 = arith.addi %1, %366 : i32
    %c0_i32_215 = arith.constant 0 : i32
    %c0_i32_216 = arith.constant 0 : i32
    %368 = tpu.memref_slice %arg5[%367, %c0_i32_216] : memref<24x64xi32, #tpu.memory_space<any>> -> memref<1x64xi32, #tpu.memory_space<any>>
    %c3_i32_217 = arith.constant 3 : i32
    %c0_i32_218 = arith.constant 0 : i32
    %369 = tpu.memref_slice %arg7[%c3_i32_217, %c0_i32_218] : memref<256x64xi32, #tpu.memory_space<vmem>> -> memref<1x64xi32, #tpu.memory_space<vmem>>
    %370 = tpu.memref_slice %arg8[%c0_i32_215] : memref<2x!tpu.dma_semaphore, #tpu.memory_space<semaphore_mem>> -> memref<1x!tpu.dma_semaphore, #tpu.memory_space<semaphore_mem>>
    %371 = tpu.memref_squeeze %370 : memref<1x!tpu.dma_semaphore, #tpu.memory_space<semaphore_mem>> -> memref<!tpu.dma_semaphore, #tpu.memory_space<semaphore_mem>>
    tpu.enqueue_dma source(%368 : memref<1x64xi32, #tpu.memory_space<any>>) target(%369 : memref<1x64xi32, #tpu.memory_space<vmem>>) target_semaphore(%371 : memref<!tpu.dma_semaphore, #tpu.memory_space<semaphore_mem>>)
    %c4_i32_219 = arith.constant 4 : i32
    %372 = arith.addi %339, %c4_i32_219 : i32
    %373 = arith.index_cast %372 : i32 to index
    %374 = memref.load %arg2[%373] : memref<128xi32, #tpu.memory_space<smem>>
    %375 = arith.addi %1, %374 : i32
    %c0_i32_220 = arith.constant 0 : i32
    %c0_i32_221 = arith.constant 0 : i32
    %376 = tpu.memref_slice %arg5[%375, %c0_i32_221] : memref<24x64xi32, #tpu.memory_space<any>> -> memref<1x64xi32, #tpu.memory_space<any>>
    %c4_i32_222 = arith.constant 4 : i32
    %c0_i32_223 = arith.constant 0 : i32
    %377 = tpu.memref_slice %arg7[%c4_i32_222, %c0_i32_223] : memref<256x64xi32, #tpu.memory_space<vmem>> -> memref<1x64xi32, #tpu.memory_space<vmem>>
    %378 = tpu.memref_slice %arg8[%c0_i32_220] : memref<2x!tpu.dma_semaphore, #tpu.memory_space<semaphore_mem>> -> memref<1x!tpu.dma_semaphore, #tpu.memory_space<semaphore_mem>>
    %379 = tpu.memref_squeeze %378 : memref<1x!tpu.dma_semaphore, #tpu.memory_space<semaphore_mem>> -> memref<!tpu.dma_semaphore, #tpu.memory_space<semaphore_mem>>
    tpu.enqueue_dma source(%376 : memref<1x64xi32, #tpu.memory_space<any>>) target(%377 : memref<1x64xi32, #tpu.memory_space<vmem>>) target_semaphore(%379 : memref<!tpu.dma_semaphore, #tpu.memory_space<semaphore_mem>>)
    %c5_i32_224 = arith.constant 5 : i32
    %380 = arith.addi %339, %c5_i32_224 : i32
    %381 = arith.index_cast %380 : i32 to index
    %382 = memref.load %arg2[%381] : memref<128xi32, #tpu.memory_space<smem>>
    %383 = arith.addi %1, %382 : i32
    %c0_i32_225 = arith.constant 0 : i32
    %c0_i32_226 = arith.constant 0 : i32
    %384 = tpu.memref_slice %arg5[%383, %c0_i32_226] : memref<24x64xi32, #tpu.memory_space<any>> -> memref<1x64xi32, #tpu.memory_space<any>>
    %c5_i32_227 = arith.constant 5 : i32
    %c0_i32_228 = arith.constant 0 : i32
    %385 = tpu.memref_slice %arg7[%c5_i32_227, %c0_i32_228] : memref<256x64xi32, #tpu.memory_space<vmem>> -> memref<1x64xi32, #tpu.memory_space<vmem>>
    %386 = tpu.memref_slice %arg8[%c0_i32_225] : memref<2x!tpu.dma_semaphore, #tpu.memory_space<semaphore_mem>> -> memref<1x!tpu.dma_semaphore, #tpu.memory_space<semaphore_mem>>
    %387 = tpu.memref_squeeze %386 : memref<1x!tpu.dma_semaphore, #tpu.memory_space<semaphore_mem>> -> memref<!tpu.dma_semaphore, #tpu.memory_space<semaphore_mem>>
    tpu.enqueue_dma source(%384 : memref<1x64xi32, #tpu.memory_space<any>>) target(%385 : memref<1x64xi32, #tpu.memory_space<vmem>>) target_semaphore(%387 : memref<!tpu.dma_semaphore, #tpu.memory_space<semaphore_mem>>)
    %c6_i32_229 = arith.constant 6 : i32
    %388 = arith.addi %339, %c6_i32_229 : i32
    %389 = arith.index_cast %388 : i32 to index
    %390 = memref.load %arg2[%389] : memref<128xi32, #tpu.memory_space<smem>>
    %391 = arith.addi %1, %390 : i32
    %c0_i32_230 = arith.constant 0 : i32
    %c0_i32_231 = arith.constant 0 : i32
    %392 = tpu.memref_slice %arg5[%391, %c0_i32_231] : memref<24x64xi32, #tpu.memory_space<any>> -> memref<1x64xi32, #tpu.memory_space<any>>
    %c6_i32_232 = arith.constant 6 : i32
    %c0_i32_233 = arith.constant 0 : i32
    %393 = tpu.memref_slice %arg7[%c6_i32_232, %c0_i32_233] : memref<256x64xi32, #tpu.memory_space<vmem>> -> memref<1x64xi32, #tpu.memory_space<vmem>>
    %394 = tpu.memref_slice %arg8[%c0_i32_230] : memref<2x!tpu.dma_semaphore, #tpu.memory_space<semaphore_mem>> -> memref<1x!tpu.dma_semaphore, #tpu.memory_space<semaphore_mem>>
    %395 = tpu.memref_squeeze %394 : memref<1x!tpu.dma_semaphore, #tpu.memory_space<semaphore_mem>> -> memref<!tpu.dma_semaphore, #tpu.memory_space<semaphore_mem>>
    tpu.enqueue_dma source(%392 : memref<1x64xi32, #tpu.memory_space<any>>) target(%393 : memref<1x64xi32, #tpu.memory_space<vmem>>) target_semaphore(%395 : memref<!tpu.dma_semaphore, #tpu.memory_space<semaphore_mem>>)
    %c7_i32_234 = arith.constant 7 : i32
    %396 = arith.addi %339, %c7_i32_234 : i32
    %397 = arith.index_cast %396 : i32 to index
    %398 = memref.load %arg2[%397] : memref<128xi32, #tpu.memory_space<smem>>
    %399 = arith.addi %1, %398 : i32
    %c0_i32_235 = arith.constant 0 : i32
    %c0_i32_236 = arith.constant 0 : i32
    %400 = tpu.memref_slice %arg5[%399, %c0_i32_236] : memref<24x64xi32, #tpu.memory_space<any>> -> memref<1x64xi32, #tpu.memory_space<any>>
    %c7_i32_237 = arith.constant 7 : i32
    %c0_i32_238 = arith.constant 0 : i32
    %401 = tpu.memref_slice %arg7[%c7_i32_237, %c0_i32_238] : memref<256x64xi32, #tpu.memory_space<vmem>> -> memref<1x64xi32, #tpu.memory_space<vmem>>
    %402 = tpu.memref_slice %arg8[%c0_i32_235] : memref<2x!tpu.dma_semaphore, #tpu.memory_space<semaphore_mem>> -> memref<1x!tpu.dma_semaphore, #tpu.memory_space<semaphore_mem>>
    %403 = tpu.memref_squeeze %402 : memref<1x!tpu.dma_semaphore, #tpu.memory_space<semaphore_mem>> -> memref<!tpu.dma_semaphore, #tpu.memory_space<semaphore_mem>>
    tpu.enqueue_dma source(%400 : memref<1x64xi32, #tpu.memory_space<any>>) target(%401 : memref<1x64xi32, #tpu.memory_space<vmem>>) target_semaphore(%403 : memref<!tpu.dma_semaphore, #tpu.memory_space<semaphore_mem>>)
    %c128_239 = arith.constant 128 : index
    %c0_240 = arith.constant 0 : index
    %404 = vector.load %arg7[%c128_239, %c0_240] : memref<256x64xi32, #tpu.memory_space<vmem>>, vector<128x64xi32>
    %c16_i32_241 = arith.constant 16 : i32
    %405 = vector.broadcast %c16_i32_241 : i32 to vector<128x64xi32>
    %406 = arith.shli %404, %405 : vector<128x64xi32>
    %407 = tpu.bitcast %406 : vector<128x64xi32> -> vector<128x64xf32>
    %c-65536_i32_242 = arith.constant -65536 : i32
    %408 = vector.broadcast %c-65536_i32_242 : i32 to vector<128x64xi32>
    %409 = arith.andi %404, %408 : vector<128x64xi32>
    %410 = tpu.bitcast %409 : vector<128x64xi32> -> vector<128x64xf32>
    %c3 = arith.constant 3 : index
    %c0_243 = arith.constant 0 : index
    %411 = vector.load %arg4[%c3, %c0_243] : memref<8x128xf32, #tpu.memory_space<vmem>>, vector<1x128xf32>
    %412 = vector.extract_strided_slice %411 {offsets = [0, 0], sizes = [1, 64], strides = [1, 1]} : vector<1x128xf32> to vector<1x64xf32>
    %413 = vector.extract_strided_slice %411 {offsets = [0, 64], sizes = [1, 64], strides = [1, 1]} : vector<1x128xf32> to vector<1x64xf32>
    %cst_244 = arith.constant dense<0.000000e+00> : vector<1x128xf32>
    %414 = tpu.matmul %412, %407, %cst_244 {dimension_numbers = #tpu.dot_dimension_numbers<[1], [1], [0], [0], [0, 0, 1, 0], [], []>} : vector<1x64xf32>, vector<128x64xf32>, vector<1x128xf32> -> vector<1x128xf32>
    %cst_245 = arith.constant dense<0.000000e+00> : vector<1x128xf32>
    %415 = tpu.matmul %413, %410, %cst_245 {dimension_numbers = #tpu.dot_dimension_numbers<[1], [1], [0], [0], [0, 0, 1, 0], [], []>} : vector<1x64xf32>, vector<128x64xf32>, vector<1x128xf32> -> vector<1x128xf32>
    %416 = arith.addf %414, %415 : vector<1x128xf32>
    %cst_246 = arith.constant 0.000000e+00 : f32
    %417 = vector.broadcast %cst_246 : f32 to vector<1x128xf32>
    %418 = arith.select %8, %416, %417 : vector<1x128xi1>, vector<1x128xf32>
    %c0_247 = arith.constant 0 : index
    %c3_248 = arith.constant 3 : index
    %c0_249 = arith.constant 0 : index
    %419 = vector.load %arg6[%c0_247, %c3_248, %c0_249] : memref<1x8x128xf32, #tpu.memory_space<vmem>>, vector<1x1x128xf32>
    %420 = vector.shape_cast %419 : vector<1x1x128xf32> to vector<1x128xf32>
    %421 = vector.shape_cast %418 : vector<1x128xf32> to vector<1x1x128xf32>
    tpu.vector_store %arg6[%c0_247, %c3_248, %c0_249], %421 {strides = array<i32>} : memref<1x8x128xf32, #tpu.memory_space<vmem>>, vector<1x1x128xf32>,
    %c0_i32_250 = arith.constant 0 : i32
    %c0_i32_251 = arith.constant 0 : i32
    %c0_i32_252 = arith.constant 0 : i32
    %422 = tpu.memref_slice %arg5[%c0_i32_251, %c0_i32_252] : memref<24x64xi32, #tpu.memory_space<any>> -> memref<8x64xi32, #tpu.memory_space<any>>
    %c0_i32_253 = arith.constant 0 : i32
    %c0_i32_254 = arith.constant 0 : i32
    %423 = tpu.memref_slice %arg7[%c0_i32_253, %c0_i32_254] : memref<256x64xi32, #tpu.memory_space<vmem>> -> memref<8x64xi32, #tpu.memory_space<vmem>>
    %424 = tpu.memref_slice %arg8[%c0_i32_250] : memref<2x!tpu.dma_semaphore, #tpu.memory_space<semaphore_mem>> -> memref<1x!tpu.dma_semaphore, #tpu.memory_space<semaphore_mem>>
    %425 = tpu.memref_squeeze %424 : memref<1x!tpu.dma_semaphore, #tpu.memory_space<semaphore_mem>> -> memref<!tpu.dma_semaphore, #tpu.memory_space<semaphore_mem>>
    tpu.wait_dma2 semaphore(%425 : memref<!tpu.dma_semaphore, #tpu.memory_space<semaphore_mem>>) src(%422 : memref<8x64xi32, #tpu.memory_space<any>>) dst(%423 : memref<8x64xi32, #tpu.memory_space<vmem>>)
    %c40_i32 = arith.constant 40 : i32
    %426 = arith.addi %5, %c40_i32 : i32
    %c0_i32_255 = arith.constant 0 : i32
    %427 = arith.addi %426, %c0_i32_255 : i32
    %428 = arith.index_cast %427 : i32 to index
    %429 = memref.load %arg2[%428] : memref<128xi32, #tpu.memory_space<smem>>
    %430 = arith.addi %1, %429 : i32
    %c1_i32_256 = arith.constant 1 : i32
    %c0_i32_257 = arith.constant 0 : i32
    %431 = tpu.memref_slice %arg5[%430, %c0_i32_257] : memref<24x64xi32, #tpu.memory_space<any>> -> memref<1x64xi32, #tpu.memory_space<any>>
    %c128_i32_258 = arith.constant 128 : i32
    %c0_i32_259 = arith.constant 0 : i32
    %432 = tpu.memref_slice %arg7[%c128_i32_258, %c0_i32_259] : memref<256x64xi32, #tpu.memory_space<vmem>> -> memref<1x64xi32, #tpu.memory_space<vmem>>
    %433 = tpu.memref_slice %arg8[%c1_i32_256] : memref<2x!tpu.dma_semaphore, #tpu.memory_space<semaphore_mem>> -> memref<1x!tpu.dma_semaphore, #tpu.memory_space<semaphore_mem>>
    %434 = tpu.memref_squeeze %433 : memref<1x!tpu.dma_semaphore, #tpu.memory_space<semaphore_mem>> -> memref<!tpu.dma_semaphore, #tpu.memory_space<semaphore_mem>>
    tpu.enqueue_dma source(%431 : memref<1x64xi32, #tpu.memory_space<any>>) target(%432 : memref<1x64xi32, #tpu.memory_space<vmem>>) target_semaphore(%434 : memref<!tpu.dma_semaphore, #tpu.memory_space<semaphore_mem>>)
    %c1_i32_260 = arith.constant 1 : i32
    %435 = arith.addi %426, %c1_i32_260 : i32
    %436 = arith.index_cast %435 : i32 to index
    %437 = memref.load %arg2[%436] : memref<128xi32, #tpu.memory_space<smem>>
    %438 = arith.addi %1, %437 : i32
    %c1_i32_261 = arith.constant 1 : i32
    %c0_i32_262 = arith.constant 0 : i32
    %439 = tpu.memref_slice %arg5[%438, %c0_i32_262] : memref<24x64xi32, #tpu.memory_space<any>> -> memref<1x64xi32, #tpu.memory_space<any>>
    %c129_i32_263 = arith.constant 129 : i32
    %c0_i32_264 = arith.constant 0 : i32
    %440 = tpu.memref_slice %arg7[%c129_i32_263, %c0_i32_264] : memref<256x64xi32, #tpu.memory_space<vmem>> -> memref<1x64xi32, #tpu.memory_space<vmem>>
    %441 = tpu.memref_slice %arg8[%c1_i32_261] : memref<2x!tpu.dma_semaphore, #tpu.memory_space<semaphore_mem>> -> memref<1x!tpu.dma_semaphore, #tpu.memory_space<semaphore_mem>>
    %442 = tpu.memref_squeeze %441 : memref<1x!tpu.dma_semaphore, #tpu.memory_space<semaphore_mem>> -> memref<!tpu.dma_semaphore, #tpu.memory_space<semaphore_mem>>
    tpu.enqueue_dma source(%439 : memref<1x64xi32, #tpu.memory_space<any>>) target(%440 : memref<1x64xi32, #tpu.memory_space<vmem>>) target_semaphore(%442 : memref<!tpu.dma_semaphore, #tpu.memory_space<semaphore_mem>>)
    %c2_i32_265 = arith.constant 2 : i32
    %443 = arith.addi %426, %c2_i32_265 : i32
    %444 = arith.index_cast %443 : i32 to index
    %445 = memref.load %arg2[%444] : memref<128xi32, #tpu.memory_space<smem>>
    %446 = arith.addi %1, %445 : i32
    %c1_i32_266 = arith.constant 1 : i32
    %c0_i32_267 = arith.constant 0 : i32
    %447 = tpu.memref_slice %arg5[%446, %c0_i32_267] : memref<24x64xi32, #tpu.memory_space<any>> -> memref<1x64xi32, #tpu.memory_space<any>>
    %c130_i32_268 = arith.constant 130 : i32
    %c0_i32_269 = arith.constant 0 : i32
    %448 = tpu.memref_slice %arg7[%c130_i32_268, %c0_i32_269] : memref<256x64xi32, #tpu.memory_space<vmem>> -> memref<1x64xi32, #tpu.memory_space<vmem>>
    %449 = tpu.memref_slice %arg8[%c1_i32_266] : memref<2x!tpu.dma_semaphore, #tpu.memory_space<semaphore_mem>> -> memref<1x!tpu.dma_semaphore, #tpu.memory_space<semaphore_mem>>
    %450 = tpu.memref_squeeze %449 : memref<1x!tpu.dma_semaphore, #tpu.memory_space<semaphore_mem>> -> memref<!tpu.dma_semaphore, #tpu.memory_space<semaphore_mem>>
    tpu.enqueue_dma source(%447 : memref<1x64xi32, #tpu.memory_space<any>>) target(%448 : memref<1x64xi32, #tpu.memory_space<vmem>>) target_semaphore(%450 : memref<!tpu.dma_semaphore, #tpu.memory_space<semaphore_mem>>)
    %c3_i32_270 = arith.constant 3 : i32
    %451 = arith.addi %426, %c3_i32_270 : i32
    %452 = arith.index_cast %451 : i32 to index
    %453 = memref.load %arg2[%452] : memref<128xi32, #tpu.memory_space<smem>>
    %454 = arith.addi %1, %453 : i32
    %c1_i32_271 = arith.constant 1 : i32
    %c0_i32_272 = arith.constant 0 : i32
    %455 = tpu.memref_slice %arg5[%454, %c0_i32_272] : memref<24x64xi32, #tpu.memory_space<any>> -> memref<1x64xi32, #tpu.memory_space<any>>
    %c131_i32_273 = arith.constant 131 : i32
    %c0_i32_274 = arith.constant 0 : i32
    %456 = tpu.memref_slice %arg7[%c131_i32_273, %c0_i32_274] : memref<256x64xi32, #tpu.memory_space<vmem>> -> memref<1x64xi32, #tpu.memory_space<vmem>>
    %457 = tpu.memref_slice %arg8[%c1_i32_271] : memref<2x!tpu.dma_semaphore, #tpu.memory_space<semaphore_mem>> -> memref<1x!tpu.dma_semaphore, #tpu.memory_space<semaphore_mem>>
    %458 = tpu.memref_squeeze %457 : memref<1x!tpu.dma_semaphore, #tpu.memory_space<semaphore_mem>> -> memref<!tpu.dma_semaphore, #tpu.memory_space<semaphore_mem>>
    tpu.enqueue_dma source(%455 : memref<1x64xi32, #tpu.memory_space<any>>) target(%456 : memref<1x64xi32, #tpu.memory_space<vmem>>) target_semaphore(%458 : memref<!tpu.dma_semaphore, #tpu.memory_space<semaphore_mem>>)
    %c4_i32_275 = arith.constant 4 : i32
    %459 = arith.addi %426, %c4_i32_275 : i32
    %460 = arith.index_cast %459 : i32 to index
    %461 = memref.load %arg2[%460] : memref<128xi32, #tpu.memory_space<smem>>
    %462 = arith.addi %1, %461 : i32
    %c1_i32_276 = arith.constant 1 : i32
    %c0_i32_277 = arith.constant 0 : i32
    %463 = tpu.memref_slice %arg5[%462, %c0_i32_277] : memref<24x64xi32, #tpu.memory_space<any>> -> memref<1x64xi32, #tpu.memory_space<any>>
    %c132_i32_278 = arith.constant 132 : i32
    %c0_i32_279 = arith.constant 0 : i32
    %464 = tpu.memref_slice %arg7[%c132_i32_278, %c0_i32_279] : memref<256x64xi32, #tpu.memory_space<vmem>> -> memref<1x64xi32, #tpu.memory_space<vmem>>
    %465 = tpu.memref_slice %arg8[%c1_i32_276] : memref<2x!tpu.dma_semaphore, #tpu.memory_space<semaphore_mem>> -> memref<1x!tpu.dma_semaphore, #tpu.memory_space<semaphore_mem>>
    %466 = tpu.memref_squeeze %465 : memref<1x!tpu.dma_semaphore, #tpu.memory_space<semaphore_mem>> -> memref<!tpu.dma_semaphore, #tpu.memory_space<semaphore_mem>>
    tpu.enqueue_dma source(%463 : memref<1x64xi32, #tpu.memory_space<any>>) target(%464 : memref<1x64xi32, #tpu.memory_space<vmem>>) target_semaphore(%466 : memref<!tpu.dma_semaphore, #tpu.memory_space<semaphore_mem>>)
    %c5_i32_280 = arith.constant 5 : i32
    %467 = arith.addi %426, %c5_i32_280 : i32
    %468 = arith.index_cast %467 : i32 to index
    %469 = memref.load %arg2[%468] : memref<128xi32, #tpu.memory_space<smem>>
    %470 = arith.addi %1, %469 : i32
    %c1_i32_281 = arith.constant 1 : i32
    %c0_i32_282 = arith.constant 0 : i32
    %471 = tpu.memref_slice %arg5[%470, %c0_i32_282] : memref<24x64xi32, #tpu.memory_space<any>> -> memref<1x64xi32, #tpu.memory_space<any>>
    %c133_i32_283 = arith.constant 133 : i32
    %c0_i32_284 = arith.constant 0 : i32
    %472 = tpu.memref_slice %arg7[%c133_i32_283, %c0_i32_284] : memref<256x64xi32, #tpu.memory_space<vmem>> -> memref<1x64xi32, #tpu.memory_space<vmem>>
    %473 = tpu.memref_slice %arg8[%c1_i32_281] : memref<2x!tpu.dma_semaphore, #tpu.memory_space<semaphore_mem>> -> memref<1x!tpu.dma_semaphore, #tpu.memory_space<semaphore_mem>>
    %474 = tpu.memref_squeeze %473 : memref<1x!tpu.dma_semaphore, #tpu.memory_space<semaphore_mem>> -> memref<!tpu.dma_semaphore, #tpu.memory_space<semaphore_mem>>
    tpu.enqueue_dma source(%471 : memref<1x64xi32, #tpu.memory_space<any>>) target(%472 : memref<1x64xi32, #tpu.memory_space<vmem>>) target_semaphore(%474 : memref<!tpu.dma_semaphore, #tpu.memory_space<semaphore_mem>>)
    %c6_i32_285 = arith.constant 6 : i32
    %475 = arith.addi %426, %c6_i32_285 : i32
    %476 = arith.index_cast %475 : i32 to index
    %477 = memref.load %arg2[%476] : memref<128xi32, #tpu.memory_space<smem>>
    %478 = arith.addi %1, %477 : i32
    %c1_i32_286 = arith.constant 1 : i32
    %c0_i32_287 = arith.constant 0 : i32
    %479 = tpu.memref_slice %arg5[%478, %c0_i32_287] : memref<24x64xi32, #tpu.memory_space<any>> -> memref<1x64xi32, #tpu.memory_space<any>>
    %c134_i32_288 = arith.constant 134 : i32
    %c0_i32_289 = arith.constant 0 : i32
    %480 = tpu.memref_slice %arg7[%c134_i32_288, %c0_i32_289] : memref<256x64xi32, #tpu.memory_space<vmem>> -> memref<1x64xi32, #tpu.memory_space<vmem>>
    %481 = tpu.memref_slice %arg8[%c1_i32_286] : memref<2x!tpu.dma_semaphore, #tpu.memory_space<semaphore_mem>> -> memref<1x!tpu.dma_semaphore, #tpu.memory_space<semaphore_mem>>
    %482 = tpu.memref_squeeze %481 : memref<1x!tpu.dma_semaphore, #tpu.memory_space<semaphore_mem>> -> memref<!tpu.dma_semaphore, #tpu.memory_space<semaphore_mem>>
    tpu.enqueue_dma source(%479 : memref<1x64xi32, #tpu.memory_space<any>>) target(%480 : memref<1x64xi32, #tpu.memory_space<vmem>>) target_semaphore(%482 : memref<!tpu.dma_semaphore, #tpu.memory_space<semaphore_mem>>)
    %c7_i32_290 = arith.constant 7 : i32
    %483 = arith.addi %426, %c7_i32_290 : i32
    %484 = arith.index_cast %483 : i32 to index
    %485 = memref.load %arg2[%484] : memref<128xi32, #tpu.memory_space<smem>>
    %486 = arith.addi %1, %485 : i32
    %c1_i32_291 = arith.constant 1 : i32
    %c0_i32_292 = arith.constant 0 : i32
    %487 = tpu.memref_slice %arg5[%486, %c0_i32_292] : memref<24x64xi32, #tpu.memory_space<any>> -> memref<1x64xi32, #tpu.memory_space<any>>
    %c135_i32_293 = arith.constant 135 : i32
    %c0_i32_294 = arith.constant 0 : i32
    %488 = tpu.memref_slice %arg7[%c135_i32_293, %c0_i32_294] : memref<256x64xi32, #tpu.memory_space<vmem>> -> memref<1x64xi32, #tpu.memory_space<vmem>>
    %489 = tpu.memref_slice %arg8[%c1_i32_291] : memref<2x!tpu.dma_semaphore, #tpu.memory_space<semaphore_mem>> -> memref<1x!tpu.dma_semaphore, #tpu.memory_space<semaphore_mem>>
    %490 = tpu.memref_squeeze %489 : memref<1x!tpu.dma_semaphore, #tpu.memory_space<semaphore_mem>> -> memref<!tpu.dma_semaphore, #tpu.memory_space<semaphore_mem>>
    tpu.enqueue_dma source(%487 : memref<1x64xi32, #tpu.memory_space<any>>) target(%488 : memref<1x64xi32, #tpu.memory_space<vmem>>) target_semaphore(%490 : memref<!tpu.dma_semaphore, #tpu.memory_space<semaphore_mem>>)
    %c0_295 = arith.constant 0 : index
    %c0_296 = arith.constant 0 : index
    %491 = vector.load %arg7[%c0_295, %c0_296] : memref<256x64xi32, #tpu.memory_space<vmem>>, vector<128x64xi32>
    %c16_i32_297 = arith.constant 16 : i32
    %492 = vector.broadcast %c16_i32_297 : i32 to vector<128x64xi32>
    %493 = arith.shli %491, %492 : vector<128x64xi32>
    %494 = tpu.bitcast %493 : vector<128x64xi32> -> vector<128x64xf32>
    %c-65536_i32_298 = arith.constant -65536 : i32
    %495 = vector.broadcast %c-65536_i32_298 : i32 to vector<128x64xi32>
    %496 = arith.andi %491, %495 : vector<128x64xi32>
    %497 = tpu.bitcast %496 : vector<128x64xi32> -> vector<128x64xf32>
    %c4 = arith.constant 4 : index
    %c0_299 = arith.constant 0 : index
    %498 = vector.load %arg4[%c4, %c0_299] : memref<8x128xf32, #tpu.memory_space<vmem>>, vector<1x128xf32>
    %499 = vector.extract_strided_slice %498 {offsets = [0, 0], sizes = [1, 64], strides = [1, 1]} : vector<1x128xf32> to vector<1x64xf32>
    %500 = vector.extract_strided_slice %498 {offsets = [0, 64], sizes = [1, 64], strides = [1, 1]} : vector<1x128xf32> to vector<1x64xf32>
    %cst_300 = arith.constant dense<0.000000e+00> : vector<1x128xf32>
    %501 = tpu.matmul %499, %494, %cst_300 {dimension_numbers = #tpu.dot_dimension_numbers<[1], [1], [0], [0], [0, 0, 1, 0], [], []>} : vector<1x64xf32>, vector<128x64xf32>, vector<1x128xf32> -> vector<1x128xf32>
    %cst_301 = arith.constant dense<0.000000e+00> : vector<1x128xf32>
    %502 = tpu.matmul %500, %497, %cst_301 {dimension_numbers = #tpu.dot_dimension_numbers<[1], [1], [0], [0], [0, 0, 1, 0], [], []>} : vector<1x64xf32>, vector<128x64xf32>, vector<1x128xf32> -> vector<1x128xf32>
    %503 = arith.addf %501, %502 : vector<1x128xf32>
    %cst_302 = arith.constant 0.000000e+00 : f32
    %504 = vector.broadcast %cst_302 : f32 to vector<1x128xf32>
    %505 = arith.select %8, %503, %504 : vector<1x128xi1>, vector<1x128xf32>
    %c0_303 = arith.constant 0 : index
    %c4_304 = arith.constant 4 : index
    %c0_305 = arith.constant 0 : index
    %506 = vector.load %arg6[%c0_303, %c4_304, %c0_305] : memref<1x8x128xf32, #tpu.memory_space<vmem>>, vector<1x1x128xf32>
    %507 = vector.shape_cast %506 : vector<1x1x128xf32> to vector<1x128xf32>
    %508 = vector.shape_cast %505 : vector<1x128xf32> to vector<1x1x128xf32>
    tpu.vector_store %arg6[%c0_303, %c4_304, %c0_305], %508 {strides = array<i32>} : memref<1x8x128xf32, #tpu.memory_space<vmem>>, vector<1x1x128xf32>,
    %c1_i32_306 = arith.constant 1 : i32
    %c0_i32_307 = arith.constant 0 : i32
    %c0_i32_308 = arith.constant 0 : i32
    %509 = tpu.memref_slice %arg5[%c0_i32_307, %c0_i32_308] : memref<24x64xi32, #tpu.memory_space<any>> -> memref<8x64xi32, #tpu.memory_space<any>>
    %c128_i32_309 = arith.constant 128 : i32
    %c0_i32_310 = arith.constant 0 : i32
    %510 = tpu.memref_slice %arg7[%c128_i32_309, %c0_i32_310] : memref<256x64xi32, #tpu.memory_space<vmem>> -> memref<8x64xi32, #tpu.memory_space<vmem>>
    %511 = tpu.memref_slice %arg8[%c1_i32_306] : memref<2x!tpu.dma_semaphore, #tpu.memory_space<semaphore_mem>> -> memref<1x!tpu.dma_semaphore, #tpu.memory_space<semaphore_mem>>
    %512 = tpu.memref_squeeze %511 : memref<1x!tpu.dma_semaphore, #tpu.memory_space<semaphore_mem>> -> memref<!tpu.dma_semaphore, #tpu.memory_space<semaphore_mem>>
    tpu.wait_dma2 semaphore(%512 : memref<!tpu.dma_semaphore, #tpu.memory_space<semaphore_mem>>) src(%509 : memref<8x64xi32, #tpu.memory_space<any>>) dst(%510 : memref<8x64xi32, #tpu.memory_space<vmem>>)
    %c48_i32 = arith.constant 48 : i32
    %513 = arith.addi %5, %c48_i32 : i32
    %c0_i32_311 = arith.constant 0 : i32
    %514 = arith.addi %513, %c0_i32_311 : i32
    %515 = arith.index_cast %514 : i32 to index
    %516 = memref.load %arg2[%515] : memref<128xi32, #tpu.memory_space<smem>>
    %517 = arith.addi %1, %516 : i32
    %c0_i32_312 = arith.constant 0 : i32
    %c0_i32_313 = arith.constant 0 : i32
    %518 = tpu.memref_slice %arg5[%517, %c0_i32_313] : memref<24x64xi32, #tpu.memory_space<any>> -> memref<1x64xi32, #tpu.memory_space<any>>
    %c0_i32_314 = arith.constant 0 : i32
    %c0_i32_315 = arith.constant 0 : i32
    %519 = tpu.memref_slice %arg7[%c0_i32_314, %c0_i32_315] : memref<256x64xi32, #tpu.memory_space<vmem>> -> memref<1x64xi32, #tpu.memory_space<vmem>>
    %520 = tpu.memref_slice %arg8[%c0_i32_312] : memref<2x!tpu.dma_semaphore, #tpu.memory_space<semaphore_mem>> -> memref<1x!tpu.dma_semaphore, #tpu.memory_space<semaphore_mem>>
    %521 = tpu.memref_squeeze %520 : memref<1x!tpu.dma_semaphore, #tpu.memory_space<semaphore_mem>> -> memref<!tpu.dma_semaphore, #tpu.memory_space<semaphore_mem>>
    tpu.enqueue_dma source(%518 : memref<1x64xi32, #tpu.memory_space<any>>) target(%519 : memref<1x64xi32, #tpu.memory_space<vmem>>) target_semaphore(%521 : memref<!tpu.dma_semaphore, #tpu.memory_space<semaphore_mem>>)
    %c1_i32_316 = arith.constant 1 : i32
    %522 = arith.addi %513, %c1_i32_316 : i32
    %523 = arith.index_cast %522 : i32 to index
    %524 = memref.load %arg2[%523] : memref<128xi32, #tpu.memory_space<smem>>
    %525 = arith.addi %1, %524 : i32
    %c0_i32_317 = arith.constant 0 : i32
    %c0_i32_318 = arith.constant 0 : i32
    %526 = tpu.memref_slice %arg5[%525, %c0_i32_318] : memref<24x64xi32, #tpu.memory_space<any>> -> memref<1x64xi32, #tpu.memory_space<any>>
    %c1_i32_319 = arith.constant 1 : i32
    %c0_i32_320 = arith.constant 0 : i32
    %527 = tpu.memref_slice %arg7[%c1_i32_319, %c0_i32_320] : memref<256x64xi32, #tpu.memory_space<vmem>> -> memref<1x64xi32, #tpu.memory_space<vmem>>
    %528 = tpu.memref_slice %arg8[%c0_i32_317] : memref<2x!tpu.dma_semaphore, #tpu.memory_space<semaphore_mem>> -> memref<1x!tpu.dma_semaphore, #tpu.memory_space<semaphore_mem>>
    %529 = tpu.memref_squeeze %528 : memref<1x!tpu.dma_semaphore, #tpu.memory_space<semaphore_mem>> -> memref<!tpu.dma_semaphore, #tpu.memory_space<semaphore_mem>>
    tpu.enqueue_dma source(%526 : memref<1x64xi32, #tpu.memory_space<any>>) target(%527 : memref<1x64xi32, #tpu.memory_space<vmem>>) target_semaphore(%529 : memref<!tpu.dma_semaphore, #tpu.memory_space<semaphore_mem>>)
    %c2_i32_321 = arith.constant 2 : i32
    %530 = arith.addi %513, %c2_i32_321 : i32
    %531 = arith.index_cast %530 : i32 to index
    %532 = memref.load %arg2[%531] : memref<128xi32, #tpu.memory_space<smem>>
    %533 = arith.addi %1, %532 : i32
    %c0_i32_322 = arith.constant 0 : i32
    %c0_i32_323 = arith.constant 0 : i32
    %534 = tpu.memref_slice %arg5[%533, %c0_i32_323] : memref<24x64xi32, #tpu.memory_space<any>> -> memref<1x64xi32, #tpu.memory_space<any>>
    %c2_i32_324 = arith.constant 2 : i32
    %c0_i32_325 = arith.constant 0 : i32
    %535 = tpu.memref_slice %arg7[%c2_i32_324, %c0_i32_325] : memref<256x64xi32, #tpu.memory_space<vmem>> -> memref<1x64xi32, #tpu.memory_space<vmem>>
    %536 = tpu.memref_slice %arg8[%c0_i32_322] : memref<2x!tpu.dma_semaphore, #tpu.memory_space<semaphore_mem>> -> memref<1x!tpu.dma_semaphore, #tpu.memory_space<semaphore_mem>>
    %537 = tpu.memref_squeeze %536 : memref<1x!tpu.dma_semaphore, #tpu.memory_space<semaphore_mem>> -> memref<!tpu.dma_semaphore, #tpu.memory_space<semaphore_mem>>
    tpu.enqueue_dma source(%534 : memref<1x64xi32, #tpu.memory_space<any>>) target(%535 : memref<1x64xi32, #tpu.memory_space<vmem>>) target_semaphore(%537 : memref<!tpu.dma_semaphore, #tpu.memory_space<semaphore_mem>>)
    %c3_i32_326 = arith.constant 3 : i32
    %538 = arith.addi %513, %c3_i32_326 : i32
    %539 = arith.index_cast %538 : i32 to index
    %540 = memref.load %arg2[%539] : memref<128xi32, #tpu.memory_space<smem>>
    %541 = arith.addi %1, %540 : i32
    %c0_i32_327 = arith.constant 0 : i32
    %c0_i32_328 = arith.constant 0 : i32
    %542 = tpu.memref_slice %arg5[%541, %c0_i32_328] : memref<24x64xi32, #tpu.memory_space<any>> -> memref<1x64xi32, #tpu.memory_space<any>>
    %c3_i32_329 = arith.constant 3 : i32
    %c0_i32_330 = arith.constant 0 : i32
    %543 = tpu.memref_slice %arg7[%c3_i32_329, %c0_i32_330] : memref<256x64xi32, #tpu.memory_space<vmem>> -> memref<1x64xi32, #tpu.memory_space<vmem>>
    %544 = tpu.memref_slice %arg8[%c0_i32_327] : memref<2x!tpu.dma_semaphore, #tpu.memory_space<semaphore_mem>> -> memref<1x!tpu.dma_semaphore, #tpu.memory_space<semaphore_mem>>
    %545 = tpu.memref_squeeze %544 : memref<1x!tpu.dma_semaphore, #tpu.memory_space<semaphore_mem>> -> memref<!tpu.dma_semaphore, #tpu.memory_space<semaphore_mem>>
    tpu.enqueue_dma source(%542 : memref<1x64xi32, #tpu.memory_space<any>>) target(%543 : memref<1x64xi32, #tpu.memory_space<vmem>>) target_semaphore(%545 : memref<!tpu.dma_semaphore, #tpu.memory_space<semaphore_mem>>)
    %c4_i32_331 = arith.constant 4 : i32
    %546 = arith.addi %513, %c4_i32_331 : i32
    %547 = arith.index_cast %546 : i32 to index
    %548 = memref.load %arg2[%547] : memref<128xi32, #tpu.memory_space<smem>>
    %549 = arith.addi %1, %548 : i32
    %c0_i32_332 = arith.constant 0 : i32
    %c0_i32_333 = arith.constant 0 : i32
    %550 = tpu.memref_slice %arg5[%549, %c0_i32_333] : memref<24x64xi32, #tpu.memory_space<any>> -> memref<1x64xi32, #tpu.memory_space<any>>
    %c4_i32_334 = arith.constant 4 : i32
    %c0_i32_335 = arith.constant 0 : i32
    %551 = tpu.memref_slice %arg7[%c4_i32_334, %c0_i32_335] : memref<256x64xi32, #tpu.memory_space<vmem>> -> memref<1x64xi32, #tpu.memory_space<vmem>>
    %552 = tpu.memref_slice %arg8[%c0_i32_332] : memref<2x!tpu.dma_semaphore, #tpu.memory_space<semaphore_mem>> -> memref<1x!tpu.dma_semaphore, #tpu.memory_space<semaphore_mem>>
    %553 = tpu.memref_squeeze %552 : memref<1x!tpu.dma_semaphore, #tpu.memory_space<semaphore_mem>> -> memref<!tpu.dma_semaphore, #tpu.memory_space<semaphore_mem>>
    tpu.enqueue_dma source(%550 : memref<1x64xi32, #tpu.memory_space<any>>) target(%551 : memref<1x64xi32, #tpu.memory_space<vmem>>) target_semaphore(%553 : memref<!tpu.dma_semaphore, #tpu.memory_space<semaphore_mem>>)
    %c5_i32_336 = arith.constant 5 : i32
    %554 = arith.addi %513, %c5_i32_336 : i32
    %555 = arith.index_cast %554 : i32 to index
    %556 = memref.load %arg2[%555] : memref<128xi32, #tpu.memory_space<smem>>
    %557 = arith.addi %1, %556 : i32
    %c0_i32_337 = arith.constant 0 : i32
    %c0_i32_338 = arith.constant 0 : i32
    %558 = tpu.memref_slice %arg5[%557, %c0_i32_338] : memref<24x64xi32, #tpu.memory_space<any>> -> memref<1x64xi32, #tpu.memory_space<any>>
    %c5_i32_339 = arith.constant 5 : i32
    %c0_i32_340 = arith.constant 0 : i32
    %559 = tpu.memref_slice %arg7[%c5_i32_339, %c0_i32_340] : memref<256x64xi32, #tpu.memory_space<vmem>> -> memref<1x64xi32, #tpu.memory_space<vmem>>
    %560 = tpu.memref_slice %arg8[%c0_i32_337] : memref<2x!tpu.dma_semaphore, #tpu.memory_space<semaphore_mem>> -> memref<1x!tpu.dma_semaphore, #tpu.memory_space<semaphore_mem>>
    %561 = tpu.memref_squeeze %560 : memref<1x!tpu.dma_semaphore, #tpu.memory_space<semaphore_mem>> -> memref<!tpu.dma_semaphore, #tpu.memory_space<semaphore_mem>>
    tpu.enqueue_dma source(%558 : memref<1x64xi32, #tpu.memory_space<any>>) target(%559 : memref<1x64xi32, #tpu.memory_space<vmem>>) target_semaphore(%561 : memref<!tpu.dma_semaphore, #tpu.memory_space<semaphore_mem>>)
    %c6_i32_341 = arith.constant 6 : i32
    %562 = arith.addi %513, %c6_i32_341 : i32
    %563 = arith.index_cast %562 : i32 to index
    %564 = memref.load %arg2[%563] : memref<128xi32, #tpu.memory_space<smem>>
    %565 = arith.addi %1, %564 : i32
    %c0_i32_342 = arith.constant 0 : i32
    %c0_i32_343 = arith.constant 0 : i32
    %566 = tpu.memref_slice %arg5[%565, %c0_i32_343] : memref<24x64xi32, #tpu.memory_space<any>> -> memref<1x64xi32, #tpu.memory_space<any>>
    %c6_i32_344 = arith.constant 6 : i32
    %c0_i32_345 = arith.constant 0 : i32
    %567 = tpu.memref_slice %arg7[%c6_i32_344, %c0_i32_345] : memref<256x64xi32, #tpu.memory_space<vmem>> -> memref<1x64xi32, #tpu.memory_space<vmem>>
    %568 = tpu.memref_slice %arg8[%c0_i32_342] : memref<2x!tpu.dma_semaphore, #tpu.memory_space<semaphore_mem>> -> memref<1x!tpu.dma_semaphore, #tpu.memory_space<semaphore_mem>>
    %569 = tpu.memref_squeeze %568 : memref<1x!tpu.dma_semaphore, #tpu.memory_space<semaphore_mem>> -> memref<!tpu.dma_semaphore, #tpu.memory_space<semaphore_mem>>
    tpu.enqueue_dma source(%566 : memref<1x64xi32, #tpu.memory_space<any>>) target(%567 : memref<1x64xi32, #tpu.memory_space<vmem>>) target_semaphore(%569 : memref<!tpu.dma_semaphore, #tpu.memory_space<semaphore_mem>>)
    %c7_i32_346 = arith.constant 7 : i32
    %570 = arith.addi %513, %c7_i32_346 : i32
    %571 = arith.index_cast %570 : i32 to index
    %572 = memref.load %arg2[%571] : memref<128xi32, #tpu.memory_space<smem>>
    %573 = arith.addi %1, %572 : i32
    %c0_i32_347 = arith.constant 0 : i32
    %c0_i32_348 = arith.constant 0 : i32
    %574 = tpu.memref_slice %arg5[%573, %c0_i32_348] : memref<24x64xi32, #tpu.memory_space<any>> -> memref<1x64xi32, #tpu.memory_space<any>>
    %c7_i32_349 = arith.constant 7 : i32
    %c0_i32_350 = arith.constant 0 : i32
    %575 = tpu.memref_slice %arg7[%c7_i32_349, %c0_i32_350] : memref<256x64xi32, #tpu.memory_space<vmem>> -> memref<1x64xi32, #tpu.memory_space<vmem>>
    %576 = tpu.memref_slice %arg8[%c0_i32_347] : memref<2x!tpu.dma_semaphore, #tpu.memory_space<semaphore_mem>> -> memref<1x!tpu.dma_semaphore, #tpu.memory_space<semaphore_mem>>
    %577 = tpu.memref_squeeze %576 : memref<1x!tpu.dma_semaphore, #tpu.memory_space<semaphore_mem>> -> memref<!tpu.dma_semaphore, #tpu.memory_space<semaphore_mem>>
    tpu.enqueue_dma source(%574 : memref<1x64xi32, #tpu.memory_space<any>>) target(%575 : memref<1x64xi32, #tpu.memory_space<vmem>>) target_semaphore(%577 : memref<!tpu.dma_semaphore, #tpu.memory_space<semaphore_mem>>)
    %c128_351 = arith.constant 128 : index
    %c0_352 = arith.constant 0 : index
    %578 = vector.load %arg7[%c128_351, %c0_352] : memref<256x64xi32, #tpu.memory_space<vmem>>, vector<128x64xi32>
    %c16_i32_353 = arith.constant 16 : i32
    %579 = vector.broadcast %c16_i32_353 : i32 to vector<128x64xi32>
    %580 = arith.shli %578, %579 : vector<128x64xi32>
    %581 = tpu.bitcast %580 : vector<128x64xi32> -> vector<128x64xf32>
    %c-65536_i32_354 = arith.constant -65536 : i32
    %582 = vector.broadcast %c-65536_i32_354 : i32 to vector<128x64xi32>
    %583 = arith.andi %578, %582 : vector<128x64xi32>
    %584 = tpu.bitcast %583 : vector<128x64xi32> -> vector<128x64xf32>
    %c5 = arith.constant 5 : index
    %c0_355 = arith.constant 0 : index
    %585 = vector.load %arg4[%c5, %c0_355] : memref<8x128xf32, #tpu.memory_space<vmem>>, vector<1x128xf32>
    %586 = vector.extract_strided_slice %585 {offsets = [0, 0], sizes = [1, 64], strides = [1, 1]} : vector<1x128xf32> to vector<1x64xf32>
    %587 = vector.extract_strided_slice %585 {offsets = [0, 64], sizes = [1, 64], strides = [1, 1]} : vector<1x128xf32> to vector<1x64xf32>
    %cst_356 = arith.constant dense<0.000000e+00> : vector<1x128xf32>
    %588 = tpu.matmul %586, %581, %cst_356 {dimension_numbers = #tpu.dot_dimension_numbers<[1], [1], [0], [0], [0, 0, 1, 0], [], []>} : vector<1x64xf32>, vector<128x64xf32>, vector<1x128xf32> -> vector<1x128xf32>
    %cst_357 = arith.constant dense<0.000000e+00> : vector<1x128xf32>
    %589 = tpu.matmul %587, %584, %cst_357 {dimension_numbers = #tpu.dot_dimension_numbers<[1], [1], [0], [0], [0, 0, 1, 0], [], []>} : vector<1x64xf32>, vector<128x64xf32>, vector<1x128xf32> -> vector<1x128xf32>
    %590 = arith.addf %588, %589 : vector<1x128xf32>
    %cst_358 = arith.constant 0.000000e+00 : f32
    %591 = vector.broadcast %cst_358 : f32 to vector<1x128xf32>
    %592 = arith.select %8, %590, %591 : vector<1x128xi1>, vector<1x128xf32>
    %c0_359 = arith.constant 0 : index
    %c5_360 = arith.constant 5 : index
    %c0_361 = arith.constant 0 : index
    %593 = vector.load %arg6[%c0_359, %c5_360, %c0_361] : memref<1x8x128xf32, #tpu.memory_space<vmem>>, vector<1x1x128xf32>
    %594 = vector.shape_cast %593 : vector<1x1x128xf32> to vector<1x128xf32>
    %595 = vector.shape_cast %592 : vector<1x128xf32> to vector<1x1x128xf32>
    tpu.vector_store %arg6[%c0_359, %c5_360, %c0_361], %595 {strides = array<i32>} : memref<1x8x128xf32, #tpu.memory_space<vmem>>, vector<1x1x128xf32>,
    %c0_i32_362 = arith.constant 0 : i32
    %c0_i32_363 = arith.constant 0 : i32
    %c0_i32_364 = arith.constant 0 : i32
    %596 = tpu.memref_slice %arg5[%c0_i32_363, %c0_i32_364] : memref<24x64xi32, #tpu.memory_space<any>> -> memref<8x64xi32, #tpu.memory_space<any>>
    %c0_i32_365 = arith.constant 0 : i32
    %c0_i32_366 = arith.constant 0 : i32
    %597 = tpu.memref_slice %arg7[%c0_i32_365, %c0_i32_366] : memref<256x64xi32, #tpu.memory_space<vmem>> -> memref<8x64xi32, #tpu.memory_space<vmem>>
    %598 = tpu.memref_slice %arg8[%c0_i32_362] : memref<2x!tpu.dma_semaphore, #tpu.memory_space<semaphore_mem>> -> memref<1x!tpu.dma_semaphore, #tpu.memory_space<semaphore_mem>>
    %599 = tpu.memref_squeeze %598 : memref<1x!tpu.dma_semaphore, #tpu.memory_space<semaphore_mem>> -> memref<!tpu.dma_semaphore, #tpu.memory_space<semaphore_mem>>
    tpu.wait_dma2 semaphore(%599 : memref<!tpu.dma_semaphore, #tpu.memory_space<semaphore_mem>>) src(%596 : memref<8x64xi32, #tpu.memory_space<any>>) dst(%597 : memref<8x64xi32, #tpu.memory_space<vmem>>)
    %c56_i32 = arith.constant 56 : i32
    %600 = arith.addi %5, %c56_i32 : i32
    %c0_i32_367 = arith.constant 0 : i32
    %601 = arith.addi %600, %c0_i32_367 : i32
    %602 = arith.index_cast %601 : i32 to index
    %603 = memref.load %arg2[%602] : memref<128xi32, #tpu.memory_space<smem>>
    %604 = arith.addi %1, %603 : i32
    %c1_i32_368 = arith.constant 1 : i32
    %c0_i32_369 = arith.constant 0 : i32
    %605 = tpu.memref_slice %arg5[%604, %c0_i32_369] : memref<24x64xi32, #tpu.memory_space<any>> -> memref<1x64xi32, #tpu.memory_space<any>>
    %c128_i32_370 = arith.constant 128 : i32
    %c0_i32_371 = arith.constant 0 : i32
    %606 = tpu.memref_slice %arg7[%c128_i32_370, %c0_i32_371] : memref<256x64xi32, #tpu.memory_space<vmem>> -> memref<1x64xi32, #tpu.memory_space<vmem>>
    %607 = tpu.memref_slice %arg8[%c1_i32_368] : memref<2x!tpu.dma_semaphore, #tpu.memory_space<semaphore_mem>> -> memref<1x!tpu.dma_semaphore, #tpu.memory_space<semaphore_mem>>
    %608 = tpu.memref_squeeze %607 : memref<1x!tpu.dma_semaphore, #tpu.memory_space<semaphore_mem>> -> memref<!tpu.dma_semaphore, #tpu.memory_space<semaphore_mem>>
    tpu.enqueue_dma source(%605 : memref<1x64xi32, #tpu.memory_space<any>>) target(%606 : memref<1x64xi32, #tpu.memory_space<vmem>>) target_semaphore(%608 : memref<!tpu.dma_semaphore, #tpu.memory_space<semaphore_mem>>)
    %c1_i32_372 = arith.constant 1 : i32
    %609 = arith.addi %600, %c1_i32_372 : i32
    %610 = arith.index_cast %609 : i32 to index
    %611 = memref.load %arg2[%610] : memref<128xi32, #tpu.memory_space<smem>>
    %612 = arith.addi %1, %611 : i32
    %c1_i32_373 = arith.constant 1 : i32
    %c0_i32_374 = arith.constant 0 : i32
    %613 = tpu.memref_slice %arg5[%612, %c0_i32_374] : memref<24x64xi32, #tpu.memory_space<any>> -> memref<1x64xi32, #tpu.memory_space<any>>
    %c129_i32_375 = arith.constant 129 : i32
    %c0_i32_376 = arith.constant 0 : i32
    %614 = tpu.memref_slice %arg7[%c129_i32_375, %c0_i32_376] : memref<256x64xi32, #tpu.memory_space<vmem>> -> memref<1x64xi32, #tpu.memory_space<vmem>>
    %615 = tpu.memref_slice %arg8[%c1_i32_373] : memref<2x!tpu.dma_semaphore, #tpu.memory_space<semaphore_mem>> -> memref<1x!tpu.dma_semaphore, #tpu.memory_space<semaphore_mem>>
    %616 = tpu.memref_squeeze %615 : memref<1x!tpu.dma_semaphore, #tpu.memory_space<semaphore_mem>> -> memref<!tpu.dma_semaphore, #tpu.memory_space<semaphore_mem>>
    tpu.enqueue_dma source(%613 : memref<1x64xi32, #tpu.memory_space<any>>) target(%614 : memref<1x64xi32, #tpu.memory_space<vmem>>) target_semaphore(%616 : memref<!tpu.dma_semaphore, #tpu.memory_space<semaphore_mem>>)
    %c2_i32_377 = arith.constant 2 : i32
    %617 = arith.addi %600, %c2_i32_377 : i32
    %618 = arith.index_cast %617 : i32 to index
    %619 = memref.load %arg2[%618] : memref<128xi32, #tpu.memory_space<smem>>
    %620 = arith.addi %1, %619 : i32
    %c1_i32_378 = arith.constant 1 : i32
    %c0_i32_379 = arith.constant 0 : i32
    %621 = tpu.memref_slice %arg5[%620, %c0_i32_379] : memref<24x64xi32, #tpu.memory_space<any>> -> memref<1x64xi32, #tpu.memory_space<any>>
    %c130_i32_380 = arith.constant 130 : i32
    %c0_i32_381 = arith.constant 0 : i32
    %622 = tpu.memref_slice %arg7[%c130_i32_380, %c0_i32_381] : memref<256x64xi32, #tpu.memory_space<vmem>> -> memref<1x64xi32, #tpu.memory_space<vmem>>
    %623 = tpu.memref_slice %arg8[%c1_i32_378] : memref<2x!tpu.dma_semaphore, #tpu.memory_space<semaphore_mem>> -> memref<1x!tpu.dma_semaphore, #tpu.memory_space<semaphore_mem>>
    %624 = tpu.memref_squeeze %623 : memref<1x!tpu.dma_semaphore, #tpu.memory_space<semaphore_mem>> -> memref<!tpu.dma_semaphore, #tpu.memory_space<semaphore_mem>>
    tpu.enqueue_dma source(%621 : memref<1x64xi32, #tpu.memory_space<any>>) target(%622 : memref<1x64xi32, #tpu.memory_space<vmem>>) target_semaphore(%624 : memref<!tpu.dma_semaphore, #tpu.memory_space<semaphore_mem>>)
    %c3_i32_382 = arith.constant 3 : i32
    %625 = arith.addi %600, %c3_i32_382 : i32
    %626 = arith.index_cast %625 : i32 to index
    %627 = memref.load %arg2[%626] : memref<128xi32, #tpu.memory_space<smem>>
    %628 = arith.addi %1, %627 : i32
    %c1_i32_383 = arith.constant 1 : i32
    %c0_i32_384 = arith.constant 0 : i32
    %629 = tpu.memref_slice %arg5[%628, %c0_i32_384] : memref<24x64xi32, #tpu.memory_space<any>> -> memref<1x64xi32, #tpu.memory_space<any>>
    %c131_i32_385 = arith.constant 131 : i32
    %c0_i32_386 = arith.constant 0 : i32
    %630 = tpu.memref_slice %arg7[%c131_i32_385, %c0_i32_386] : memref<256x64xi32, #tpu.memory_space<vmem>> -> memref<1x64xi32, #tpu.memory_space<vmem>>
    %631 = tpu.memref_slice %arg8[%c1_i32_383] : memref<2x!tpu.dma_semaphore, #tpu.memory_space<semaphore_mem>> -> memref<1x!tpu.dma_semaphore, #tpu.memory_space<semaphore_mem>>
    %632 = tpu.memref_squeeze %631 : memref<1x!tpu.dma_semaphore, #tpu.memory_space<semaphore_mem>> -> memref<!tpu.dma_semaphore, #tpu.memory_space<semaphore_mem>>
    tpu.enqueue_dma source(%629 : memref<1x64xi32, #tpu.memory_space<any>>) target(%630 : memref<1x64xi32, #tpu.memory_space<vmem>>) target_semaphore(%632 : memref<!tpu.dma_semaphore, #tpu.memory_space<semaphore_mem>>)
    %c4_i32_387 = arith.constant 4 : i32
    %633 = arith.addi %600, %c4_i32_387 : i32
    %634 = arith.index_cast %633 : i32 to index
    %635 = memref.load %arg2[%634] : memref<128xi32, #tpu.memory_space<smem>>
    %636 = arith.addi %1, %635 : i32
    %c1_i32_388 = arith.constant 1 : i32
    %c0_i32_389 = arith.constant 0 : i32
    %637 = tpu.memref_slice %arg5[%636, %c0_i32_389] : memref<24x64xi32, #tpu.memory_space<any>> -> memref<1x64xi32, #tpu.memory_space<any>>
    %c132_i32_390 = arith.constant 132 : i32
    %c0_i32_391 = arith.constant 0 : i32
    %638 = tpu.memref_slice %arg7[%c132_i32_390, %c0_i32_391] : memref<256x64xi32, #tpu.memory_space<vmem>> -> memref<1x64xi32, #tpu.memory_space<vmem>>
    %639 = tpu.memref_slice %arg8[%c1_i32_388] : memref<2x!tpu.dma_semaphore, #tpu.memory_space<semaphore_mem>> -> memref<1x!tpu.dma_semaphore, #tpu.memory_space<semaphore_mem>>
    %640 = tpu.memref_squeeze %639 : memref<1x!tpu.dma_semaphore, #tpu.memory_space<semaphore_mem>> -> memref<!tpu.dma_semaphore, #tpu.memory_space<semaphore_mem>>
    tpu.enqueue_dma source(%637 : memref<1x64xi32, #tpu.memory_space<any>>) target(%638 : memref<1x64xi32, #tpu.memory_space<vmem>>) target_semaphore(%640 : memref<!tpu.dma_semaphore, #tpu.memory_space<semaphore_mem>>)
    %c5_i32_392 = arith.constant 5 : i32
    %641 = arith.addi %600, %c5_i32_392 : i32
    %642 = arith.index_cast %641 : i32 to index
    %643 = memref.load %arg2[%642] : memref<128xi32, #tpu.memory_space<smem>>
    %644 = arith.addi %1, %643 : i32
    %c1_i32_393 = arith.constant 1 : i32
    %c0_i32_394 = arith.constant 0 : i32
    %645 = tpu.memref_slice %arg5[%644, %c0_i32_394] : memref<24x64xi32, #tpu.memory_space<any>> -> memref<1x64xi32, #tpu.memory_space<any>>
    %c133_i32_395 = arith.constant 133 : i32
    %c0_i32_396 = arith.constant 0 : i32
    %646 = tpu.memref_slice %arg7[%c133_i32_395, %c0_i32_396] : memref<256x64xi32, #tpu.memory_space<vmem>> -> memref<1x64xi32, #tpu.memory_space<vmem>>
    %647 = tpu.memref_slice %arg8[%c1_i32_393] : memref<2x!tpu.dma_semaphore, #tpu.memory_space<semaphore_mem>> -> memref<1x!tpu.dma_semaphore, #tpu.memory_space<semaphore_mem>>
    %648 = tpu.memref_squeeze %647 : memref<1x!tpu.dma_semaphore, #tpu.memory_space<semaphore_mem>> -> memref<!tpu.dma_semaphore, #tpu.memory_space<semaphore_mem>>
    tpu.enqueue_dma source(%645 : memref<1x64xi32, #tpu.memory_space<any>>) target(%646 : memref<1x64xi32, #tpu.memory_space<vmem>>) target_semaphore(%648 : memref<!tpu.dma_semaphore, #tpu.memory_space<semaphore_mem>>)
    %c6_i32_397 = arith.constant 6 : i32
    %649 = arith.addi %600, %c6_i32_397 : i32
    %650 = arith.index_cast %649 : i32 to index
    %651 = memref.load %arg2[%650] : memref<128xi32, #tpu.memory_space<smem>>
    %652 = arith.addi %1, %651 : i32
    %c1_i32_398 = arith.constant 1 : i32
    %c0_i32_399 = arith.constant 0 : i32
    %653 = tpu.memref_slice %arg5[%652, %c0_i32_399] : memref<24x64xi32, #tpu.memory_space<any>> -> memref<1x64xi32, #tpu.memory_space<any>>
    %c134_i32_400 = arith.constant 134 : i32
    %c0_i32_401 = arith.constant 0 : i32
    %654 = tpu.memref_slice %arg7[%c134_i32_400, %c0_i32_401] : memref<256x64xi32, #tpu.memory_space<vmem>> -> memref<1x64xi32, #tpu.memory_space<vmem>>
    %655 = tpu.memref_slice %arg8[%c1_i32_398] : memref<2x!tpu.dma_semaphore, #tpu.memory_space<semaphore_mem>> -> memref<1x!tpu.dma_semaphore, #tpu.memory_space<semaphore_mem>>
    %656 = tpu.memref_squeeze %655 : memref<1x!tpu.dma_semaphore, #tpu.memory_space<semaphore_mem>> -> memref<!tpu.dma_semaphore, #tpu.memory_space<semaphore_mem>>
    tpu.enqueue_dma source(%653 : memref<1x64xi32, #tpu.memory_space<any>>) target(%654 : memref<1x64xi32, #tpu.memory_space<vmem>>) target_semaphore(%656 : memref<!tpu.dma_semaphore, #tpu.memory_space<semaphore_mem>>)
    %c7_i32_402 = arith.constant 7 : i32
    %657 = arith.addi %600, %c7_i32_402 : i32
    %658 = arith.index_cast %657 : i32 to index
    %659 = memref.load %arg2[%658] : memref<128xi32, #tpu.memory_space<smem>>
    %660 = arith.addi %1, %659 : i32
    %c1_i32_403 = arith.constant 1 : i32
    %c0_i32_404 = arith.constant 0 : i32
    %661 = tpu.memref_slice %arg5[%660, %c0_i32_404] : memref<24x64xi32, #tpu.memory_space<any>> -> memref<1x64xi32, #tpu.memory_space<any>>
    %c135_i32_405 = arith.constant 135 : i32
    %c0_i32_406 = arith.constant 0 : i32
    %662 = tpu.memref_slice %arg7[%c135_i32_405, %c0_i32_406] : memref<256x64xi32, #tpu.memory_space<vmem>> -> memref<1x64xi32, #tpu.memory_space<vmem>>
    %663 = tpu.memref_slice %arg8[%c1_i32_403] : memref<2x!tpu.dma_semaphore, #tpu.memory_space<semaphore_mem>> -> memref<1x!tpu.dma_semaphore, #tpu.memory_space<semaphore_mem>>
    %664 = tpu.memref_squeeze %663 : memref<1x!tpu.dma_semaphore, #tpu.memory_space<semaphore_mem>> -> memref<!tpu.dma_semaphore, #tpu.memory_space<semaphore_mem>>
    tpu.enqueue_dma source(%661 : memref<1x64xi32, #tpu.memory_space<any>>) target(%662 : memref<1x64xi32, #tpu.memory_space<vmem>>) target_semaphore(%664 : memref<!tpu.dma_semaphore, #tpu.memory_space<semaphore_mem>>)
    %c0_407 = arith.constant 0 : index
    %c0_408 = arith.constant 0 : index
    %665 = vector.load %arg7[%c0_407, %c0_408] : memref<256x64xi32, #tpu.memory_space<vmem>>, vector<128x64xi32>
    %c16_i32_409 = arith.constant 16 : i32
    %666 = vector.broadcast %c16_i32_409 : i32 to vector<128x64xi32>
    %667 = arith.shli %665, %666 : vector<128x64xi32>
    %668 = tpu.bitcast %667 : vector<128x64xi32> -> vector<128x64xf32>
    %c-65536_i32_410 = arith.constant -65536 : i32
    %669 = vector.broadcast %c-65536_i32_410 : i32 to vector<128x64xi32>
    %670 = arith.andi %665, %669 : vector<128x64xi32>
    %671 = tpu.bitcast %670 : vector<128x64xi32> -> vector<128x64xf32>
    %c6 = arith.constant 6 : index
    %c0_411 = arith.constant 0 : index
    %672 = vector.load %arg4[%c6, %c0_411] : memref<8x128xf32, #tpu.memory_space<vmem>>, vector<1x128xf32>
    %673 = vector.extract_strided_slice %672 {offsets = [0, 0], sizes = [1, 64], strides = [1, 1]} : vector<1x128xf32> to vector<1x64xf32>
    %674 = vector.extract_strided_slice %672 {offsets = [0, 64], sizes = [1, 64], strides = [1, 1]} : vector<1x128xf32> to vector<1x64xf32>
    %cst_412 = arith.constant dense<0.000000e+00> : vector<1x128xf32>
    %675 = tpu.matmul %673, %668, %cst_412 {dimension_numbers = #tpu.dot_dimension_numbers<[1], [1], [0], [0], [0, 0, 1, 0], [], []>} : vector<1x64xf32>, vector<128x64xf32>, vector<1x128xf32> -> vector<1x128xf32>
    %cst_413 = arith.constant dense<0.000000e+00> : vector<1x128xf32>
    %676 = tpu.matmul %674, %671, %cst_413 {dimension_numbers = #tpu.dot_dimension_numbers<[1], [1], [0], [0], [0, 0, 1, 0], [], []>} : vector<1x64xf32>, vector<128x64xf32>, vector<1x128xf32> -> vector<1x128xf32>
    %677 = arith.addf %675, %676 : vector<1x128xf32>
    %cst_414 = arith.constant 0.000000e+00 : f32
    %678 = vector.broadcast %cst_414 : f32 to vector<1x128xf32>
    %679 = arith.select %8, %677, %678 : vector<1x128xi1>, vector<1x128xf32>
    %c0_415 = arith.constant 0 : index
    %c6_416 = arith.constant 6 : index
    %c0_417 = arith.constant 0 : index
    %680 = vector.load %arg6[%c0_415, %c6_416, %c0_417] : memref<1x8x128xf32, #tpu.memory_space<vmem>>, vector<1x1x128xf32>
    %681 = vector.shape_cast %680 : vector<1x1x128xf32> to vector<1x128xf32>
    %682 = vector.shape_cast %679 : vector<1x128xf32> to vector<1x1x128xf32>
    tpu.vector_store %arg6[%c0_415, %c6_416, %c0_417], %682 {strides = array<i32>} : memref<1x8x128xf32, #tpu.memory_space<vmem>>, vector<1x1x128xf32>,
    %c1_i32_418 = arith.constant 1 : i32
    %c0_i32_419 = arith.constant 0 : i32
    %c0_i32_420 = arith.constant 0 : i32
    %683 = tpu.memref_slice %arg5[%c0_i32_419, %c0_i32_420] : memref<24x64xi32, #tpu.memory_space<any>> -> memref<8x64xi32, #tpu.memory_space<any>>
    %c128_i32_421 = arith.constant 128 : i32
    %c0_i32_422 = arith.constant 0 : i32
    %684 = tpu.memref_slice %arg7[%c128_i32_421, %c0_i32_422] : memref<256x64xi32, #tpu.memory_space<vmem>> -> memref<8x64xi32, #tpu.memory_space<vmem>>
    %685 = tpu.memref_slice %arg8[%c1_i32_418] : memref<2x!tpu.dma_semaphore, #tpu.memory_space<semaphore_mem>> -> memref<1x!tpu.dma_semaphore, #tpu.memory_space<semaphore_mem>>
    %686 = tpu.memref_squeeze %685 : memref<1x!tpu.dma_semaphore, #tpu.memory_space<semaphore_mem>> -> memref<!tpu.dma_semaphore, #tpu.memory_space<semaphore_mem>>
    tpu.wait_dma2 semaphore(%686 : memref<!tpu.dma_semaphore, #tpu.memory_space<semaphore_mem>>) src(%683 : memref<8x64xi32, #tpu.memory_space<any>>) dst(%684 : memref<8x64xi32, #tpu.memory_space<vmem>>)
    %c128_423 = arith.constant 128 : index
    %c0_424 = arith.constant 0 : index
    %687 = vector.load %arg7[%c128_423, %c0_424] : memref<256x64xi32, #tpu.memory_space<vmem>>, vector<128x64xi32>
    %c16_i32_425 = arith.constant 16 : i32
    %688 = vector.broadcast %c16_i32_425 : i32 to vector<128x64xi32>
    %689 = arith.shli %687, %688 : vector<128x64xi32>
    %690 = tpu.bitcast %689 : vector<128x64xi32> -> vector<128x64xf32>
    %c-65536_i32_426 = arith.constant -65536 : i32
    %691 = vector.broadcast %c-65536_i32_426 : i32 to vector<128x64xi32>
    %692 = arith.andi %687, %691 : vector<128x64xi32>
    %693 = tpu.bitcast %692 : vector<128x64xi32> -> vector<128x64xf32>
    %c7 = arith.constant 7 : index
    %c0_427 = arith.constant 0 : index
    %694 = vector.load %arg4[%c7, %c0_427] : memref<8x128xf32, #tpu.memory_space<vmem>>, vector<1x128xf32>
    %695 = vector.extract_strided_slice %694 {offsets = [0, 0], sizes = [1, 64], strides = [1, 1]} : vector<1x128xf32> to vector<1x64xf32>
    %696 = vector.extract_strided_slice %694 {offsets = [0, 64], sizes = [1, 64], strides = [1, 1]} : vector<1x128xf32> to vector<1x64xf32>
    %cst_428 = arith.constant dense<0.000000e+00> : vector<1x128xf32>
    %697 = tpu.matmul %695, %690, %cst_428 {dimension_numbers = #tpu.dot_dimension_numbers<[1], [1], [0], [0], [0, 0, 1, 0], [], []>} : vector<1x64xf32>, vector<128x64xf32>, vector<1x128xf32> -> vector<1x128xf32>
    %cst_429 = arith.constant dense<0.000000e+00> : vector<1x128xf32>
    %698 = tpu.matmul %696, %693, %cst_429 {dimension_numbers = #tpu.dot_dimension_numbers<[1], [1], [0], [0], [0, 0, 1, 0], [], []>} : vector<1x64xf32>, vector<128x64xf32>, vector<1x128xf32> -> vector<1x128xf32>
    %699 = arith.addf %697, %698 : vector<1x128xf32>
    %cst_430 = arith.constant 0.000000e+00 : f32
    %700 = vector.broadcast %cst_430 : f32 to vector<1x128xf32>
    %701 = arith.select %8, %699, %700 : vector<1x128xi1>, vector<1x128xf32>
    %c0_431 = arith.constant 0 : index
    %c7_432 = arith.constant 7 : index
    %c0_433 = arith.constant 0 : index
    %702 = vector.load %arg6[%c0_431, %c7_432, %c0_433] : memref<1x8x128xf32, #tpu.memory_space<vmem>>, vector<1x1x128xf32>
    %703 = vector.shape_cast %702 : vector<1x1x128xf32> to vector<1x128xf32>
    %704 = vector.shape_cast %701 : vector<1x128xf32> to vector<1x1x128xf32>
    tpu.vector_store %arg6[%c0_431, %c7_432, %c0_433], %704 {strides = array<i32>} : memref<1x8x128xf32, #tpu.memory_space<vmem>>, vector<1x1x128xf32>,
    return
  }
  func.func @transform_0(%arg0: i32, %arg1: i32, %arg2: memref<128xi32, #tpu.memory_space<smem>>, %arg3: memref<2xi32, #tpu.memory_space<smem>>) -> (i32, i32) {
    %c0_i32 = arith.constant 0 : i32
    %c0_i32_0 = arith.constant 0 : i32
    return %arg0, %c0_i32 : i32, i32
  }
  func.func @transform_2(%arg0: i32, %arg1: i32, %arg2: memref<128xi32, #tpu.memory_space<smem>>, %arg3: memref<2xi32, #tpu.memory_space<smem>>) -> (i32, i32, i32) {
    %c0_i32 = arith.constant 0 : i32
    %c0_i32_0 = arith.constant 0 : i32
    return %arg1, %arg0, %c0_i32 : i32, i32, i32
  }
}

</mosaic_0001>

<llo_original>
// kernel: tpu_custom_call.1
$region0: #{tpu_custom_call.1}
  #allocation0 [shape = 'u32[]', space=smem, size = 0x4, offset = 0x4, fixed_abs, tag = 'smem constant byte address 0x4 - core index']
  #allocation1 [shape = 'u32[144,128]{1,0:T(1,128)}', space=vmem, size = 0x12000, scoped, tag = 'internal scratch']
  #allocation2 [shape = 's32[256,64]{1,0:T(8,128)}', space=vmem, size = 0x20000, scoped, tag = 'scratch operand']
  #allocation3 [shape = 's32[2]{0}', space=sflag, size = 0x8, scoped, tag = 'scratch operand']
  #allocation4 [shape = 's32[1]{0}', space=sflag, size = 0x4, scoped, tag = 'scoped memory for tpu_custom_call.1']
  #allocation5 [shape = 'u8[512]{0}', space=smem, size = 0x200, scoped, tag = 'prefetched SMEM operand 0']
  #allocation6 [shape = 'u8[512]{0}', space=smem, size = 0x200, scoped, tag = 'prefetched SMEM operand 1']
  #allocation11 [shape = 's32[]', space=sflag, size = 0x4, offset = 0, fixed_abs, tag = 'sflag constant byte address 0x0 - dummy sync flag']
  #allocation12 [shape = 's32[]', space=sflag, size = 0x4, offset = 0, fixed_abs, tag = 'sflag constant byte address 0x0 - dummy sync flag']
  #allocation13 [shape = 'u32[]', space=smem, size = 0x4, offset = 0x44, fixed_abs, tag = 'smem constant byte address 0x44 - assertion arg 0']
  #allocation14 [shape = 'u32[]', space=smem, size = 0x4, offset = 0x48, fixed_abs, tag = 'smem constant byte address 0x48 - assertion arg 1']
  #allocation15 [shape = 's32[]', space=sflag, size = 0x4, offset = 0, fixed_abs, tag = 'sflag constant byte address 0x0 - dummy sync flag']
  #allocation16 [shape = 's32[]', space=sflag, size = 0x4, offset = 0, fixed_abs, tag = 'sflag constant byte address 0x0 - dummy sync flag']
  #allocation17 [shape = 's32[]', space=sflag, size = 0x4, offset = 0, fixed_abs, tag = 'sflag constant byte address 0x0 - dummy sync flag']
  #allocation18 [shape = 's32[]', space=sflag, size = 0x4, offset = 0, fixed_abs, tag = 'sflag constant byte address 0x0 - dummy sync flag']
  #allocation19 [shape = 's32[]', space=sflag, size = 0x4, offset = 0, fixed_abs, tag = 'sflag constant byte address 0x0 - dummy sync flag']
  #allocation20 [shape = 's32[]', space=sflag, size = 0x4, offset = 0, fixed_abs, tag = 'sflag constant byte address 0x0 - dummy sync flag']
  #allocation21 [shape = 's32[]', space=sflag, size = 0x4, offset = 0, fixed_abs, tag = 'sflag constant byte address 0x0 - dummy sync flag']
  #allocation22 [shape = 's32[]', space=sflag, size = 0x4, offset = 0, fixed_abs, tag = 'sflag constant byte address 0x0 - dummy sync flag']
  #allocation23 [shape = 's32[]', space=sflag, size = 0x4, offset = 0, fixed_abs, tag = 'sflag constant byte address 0x0 - dummy sync flag']
  #allocation24 [shape = 's32[]', space=sflag, size = 0x4, offset = 0, fixed_abs, tag = 'sflag constant byte address 0x0 - dummy sync flag']
  #allocation25 [shape = 's32[]', space=sflag, size = 0x4, offset = 0, fixed_abs, tag = 'sflag constant byte address 0x0 - dummy sync flag']
  #allocation26 [shape = 's32[]', space=sflag, size = 0x4, offset = 0, fixed_abs, tag = 'sflag constant byte address 0x0 - dummy sync flag']
  #allocation27 [shape = 's32[]', space=sflag, size = 0x4, offset = 0, fixed_abs, tag = 'sflag constant byte address 0x0 - dummy sync flag']
  #allocation28 [shape = 's32[]', space=sflag, size = 0x4, offset = 0, fixed_abs, tag = 'sflag constant byte address 0x0 - dummy sync flag']
  #allocation29 [shape = 's32[]', space=sflag, size = 0x4, offset = 0, fixed_abs, tag = 'sflag constant byte address 0x0 - dummy sync flag']
  #allocation30 [shape = 's32[]', space=sflag, size = 0x4, offset = 0, fixed_abs, tag = 'sflag constant byte address 0x0 - dummy sync flag']
  #allocation31 [shape = 's32[]', space=sflag, size = 0x4, offset = 0, fixed_abs, tag = 'sflag constant byte address 0x0 - dummy sync flag']
  #allocation32 [shape = 's32[]', space=sflag, size = 0x4, offset = 0, fixed_abs, tag = 'sflag constant byte address 0x0 - dummy sync flag']
  #allocation33 [shape = 's32[]', space=sflag, size = 0x4, offset = 0, fixed_abs, tag = 'sflag constant byte address 0x0 - dummy sync flag']
  #allocation34 [shape = 's32[]', space=sflag, size = 0x4, offset = 0, fixed_abs, tag = 'sflag constant byte address 0x0 - dummy sync flag']
  #allocation35 [shape = 's32[]', space=sflag, size = 0x4, offset = 0, fixed_abs, tag = 'sflag constant byte address 0x0 - dummy sync flag']
  #allocation36 [shape = 's32[]', space=sflag, size = 0x4, offset = 0, fixed_abs, tag = 'sflag constant byte address 0x0 - dummy sync flag']
  #allocation37 [shape = 's32[]', space=sflag, size = 0x4, offset = 0, fixed_abs, tag = 'sflag constant byte address 0x0 - dummy sync flag']
  #allocation38 [shape = 's32[]', space=sflag, size = 0x4, offset = 0, fixed_abs, tag = 'sflag constant byte address 0x0 - dummy sync flag']
  #allocation39 [shape = 's32[]', space=sflag, size = 0x4, offset = 0, fixed_abs, tag = 'sflag constant byte address 0x0 - dummy sync flag']
  #allocation40 [shape = 's32[]', space=sflag, size = 0x4, offset = 0, fixed_abs, tag = 'sflag constant byte address 0x0 - dummy sync flag']
  #allocation41 [shape = 's32[]', space=sflag, size = 0x4, offset = 0, fixed_abs, tag = 'sflag constant byte address 0x0 - dummy sync flag']
  #allocation42 [shape = 's32[]', space=sflag, size = 0x4, offset = 0, fixed_abs, tag = 'sflag constant byte address 0x0 - dummy sync flag']
  #allocation43 [shape = 's32[]', space=sflag, size = 0x4, offset = 0, fixed_abs, tag = 'sflag constant byte address 0x0 - dummy sync flag']
  #allocation44 [shape = 's32[]', space=sflag, size = 0x4, offset = 0, fixed_abs, tag = 'sflag constant byte address 0x0 - dummy sync flag']
  #allocation45 [shape = 's32[]', space=sflag, size = 0x4, offset = 0, fixed_abs, tag = 'sflag constant byte address 0x0 - dummy sync flag']
  #allocation46 [shape = 's32[]', space=sflag, size = 0x4, offset = 0, fixed_abs, tag = 'sflag constant byte address 0x0 - dummy sync flag']
  #allocation47 [shape = 's32[]', space=sflag, size = 0x4, offset = 0, fixed_abs, tag = 'sflag constant byte address 0x0 - dummy sync flag']
  #allocation48 [shape = 's32[]', space=sflag, size = 0x4, offset = 0, fixed_abs, tag = 'sflag constant byte address 0x0 - dummy sync flag']
  #allocation49 [shape = 's32[]', space=sflag, size = 0x4, offset = 0, fixed_abs, tag = 'sflag constant byte address 0x0 - dummy sync flag']
  #allocation50 [shape = 's32[]', space=sflag, size = 0x4, offset = 0, fixed_abs, tag = 'sflag constant byte address 0x0 - dummy sync flag']
  #allocation51 [shape = 's32[]', space=sflag, size = 0x4, offset = 0, fixed_abs, tag = 'sflag constant byte address 0x0 - dummy sync flag']
  #allocation52 [shape = 's32[]', space=sflag, size = 0x4, offset = 0, fixed_abs, tag = 'sflag constant byte address 0x0 - dummy sync flag']
  #allocation53 [shape = 's32[]', space=sflag, size = 0x4, offset = 0, fixed_abs, tag = 'sflag constant byte address 0x0 - dummy sync flag']
  #allocation54 [shape = 's32[]', space=sflag, size = 0x4, offset = 0, fixed_abs, tag = 'sflag constant byte address 0x0 - dummy sync flag']
  #allocation55 [shape = 's32[]', space=sflag, size = 0x4, offset = 0, fixed_abs, tag = 'sflag constant byte address 0x0 - dummy sync flag']
  #allocation56 [shape = 's32[]', space=sflag, size = 0x4, offset = 0, fixed_abs, tag = 'sflag constant byte address 0x0 - dummy sync flag']
  #allocation57 [shape = 's32[]', space=sflag, size = 0x4, offset = 0, fixed_abs, tag = 'sflag constant byte address 0x0 - dummy sync flag']
  #allocation58 [shape = 's32[]', space=sflag, size = 0x4, offset = 0, fixed_abs, tag = 'sflag constant byte address 0x0 - dummy sync flag']
  #allocation59 [shape = 's32[]', space=sflag, size = 0x4, offset = 0, fixed_abs, tag = 'sflag constant byte address 0x0 - dummy sync flag']
  #allocation60 [shape = 's32[]', space=sflag, size = 0x4, offset = 0, fixed_abs, tag = 'sflag constant byte address 0x0 - dummy sync flag']
  #allocation61 [shape = 's32[]', space=sflag, size = 0x4, offset = 0, fixed_abs, tag = 'sflag constant byte address 0x0 - dummy sync flag']
  #allocation62 [shape = 's32[]', space=sflag, size = 0x4, offset = 0, fixed_abs, tag = 'sflag constant byte address 0x0 - dummy sync flag']
  #allocation63 [shape = 's32[]', space=sflag, size = 0x4, offset = 0, fixed_abs, tag = 'sflag constant byte address 0x0 - dummy sync flag']
  #allocation64 [shape = 's32[]', space=sflag, size = 0x4, offset = 0, fixed_abs, tag = 'sflag constant byte address 0x0 - dummy sync flag']
  #allocation65 [shape = 's32[]', space=sflag, size = 0x4, offset = 0, fixed_abs, tag = 'sflag constant byte address 0x0 - dummy sync flag']
  #allocation66 [shape = 's32[]', space=sflag, size = 0x4, offset = 0, fixed_abs, tag = 'sflag constant byte address 0x0 - dummy sync flag']
  #allocation67 [shape = 's32[]', space=sflag, size = 0x4, offset = 0, fixed_abs, tag = 'sflag constant byte address 0x0 - dummy sync flag']
  #allocation68 [shape = 's32[]', space=sflag, size = 0x4, offset = 0, fixed_abs, tag = 'sflag constant byte address 0x0 - dummy sync flag']
  #allocation69 [shape = 's32[]', space=sflag, size = 0x4, offset = 0, fixed_abs, tag = 'sflag constant byte address 0x0 - dummy sync flag']
  #allocation70 [shape = 's32[]', space=sflag, size = 0x4, offset = 0, fixed_abs, tag = 'sflag constant byte address 0x0 - dummy sync flag']
  #allocation71 [shape = 's32[]', space=sflag, size = 0x4, offset = 0, fixed_abs, tag = 'sflag constant byte address 0x0 - dummy sync flag']
  #allocation72 [shape = 's32[]', space=sflag, size = 0x4, offset = 0, fixed_abs, tag = 'sflag constant byte address 0x0 - dummy sync flag']
  #allocation73 [shape = 's32[]', space=sflag, size = 0x4, offset = 0, fixed_abs, tag = 'sflag constant byte address 0x0 - dummy sync flag']
  #allocation74 [shape = 's32[]', space=sflag, size = 0x4, offset = 0, fixed_abs, tag = 'sflag constant byte address 0x0 - dummy sync flag']
  #allocation75 [shape = 's32[]', space=sflag, size = 0x4, offset = 0, fixed_abs, tag = 'sflag constant byte address 0x0 - dummy sync flag']
  #allocation76 [shape = 's32[]', space=sflag, size = 0x4, offset = 0, fixed_abs, tag = 'sflag constant byte address 0x0 - dummy sync flag']
  #allocation77 [shape = 's32[]', space=sflag, size = 0x4, offset = 0, fixed_abs, tag = 'sflag constant byte address 0x0 - dummy sync flag']
  #allocation78 [shape = 's32[]', space=sflag, size = 0x4, offset = 0, fixed_abs, tag = 'sflag constant byte address 0x0 - dummy sync flag']
  #allocation79 [shape = 's32[]', space=sflag, size = 0x4, offset = 0, fixed_abs, tag = 'sflag constant byte address 0x0 - dummy sync flag']
  #allocation80 [shape = 's32[]', space=sflag, size = 0x4, offset = 0, fixed_abs, tag = 'sflag constant byte address 0x0 - dummy sync flag']
  #allocation81 [shape = 's32[]', space=sflag, size = 0x4, offset = 0, fixed_abs, tag = 'sflag constant byte address 0x0 - dummy sync flag']
  #allocation82 [shape = 's32[]', space=sflag, size = 0x4, offset = 0, fixed_abs, tag = 'sflag constant byte address 0x0 - dummy sync flag']
  #allocation83 [shape = 's32[]', space=sflag, size = 0x4, offset = 0, fixed_abs, tag = 'sflag constant byte address 0x0 - dummy sync flag']
  #allocation84 [shape = 's32[]', space=sflag, size = 0x4, offset = 0, fixed_abs, tag = 'sflag constant byte address 0x0 - dummy sync flag']
  #allocation85 [shape = 's32[]', space=sflag, size = 0x4, offset = 0, fixed_abs, tag = 'sflag constant byte address 0x0 - dummy sync flag']
  #allocation86 [shape = 's32[]', space=sflag, size = 0x4, offset = 0, fixed_abs, tag = 'sflag constant byte address 0x0 - dummy sync flag']
  #allocation87 [shape = 's32[]', space=sflag, size = 0x4, offset = 0, fixed_abs, tag = 'sflag constant byte address 0x0 - dummy sync flag']
  #allocation88 [shape = 's32[]', space=sflag, size = 0x4, offset = 0, fixed_abs, tag = 'sflag constant byte address 0x0 - dummy sync flag']
  #allocation89 [shape = 's32[]', space=sflag, size = 0x4, offset = 0, fixed_abs, tag = 'sflag constant byte address 0x0 - dummy sync flag']
  #allocation90 [shape = 's32[]', space=sflag, size = 0x4, offset = 0, fixed_abs, tag = 'sflag constant byte address 0x0 - dummy sync flag']
  #allocation91 [shape = 's32[]', space=sflag, size = 0x4, offset = 0, fixed_abs, tag = 'sflag constant byte address 0x0 - dummy sync flag']
  #allocation92 [shape = 's32[]', space=sflag, size = 0x4, offset = 0, fixed_abs, tag = 'sflag constant byte address 0x0 - dummy sync flag']
  #allocation93 [shape = 's32[]', space=sflag, size = 0x4, offset = 0, fixed_abs, tag = 'sflag constant byte address 0x0 - dummy sync flag']
  #allocation94 [shape = 's32[]', space=sflag, size = 0x4, offset = 0, fixed_abs, tag = 'sflag constant byte address 0x0 - dummy sync flag']
  #allocation95 [shape = 's32[]', space=sflag, size = 0x4, offset = 0, fixed_abs, tag = 'sflag constant byte address 0x0 - dummy sync flag']
  #allocation96 [shape = 's32[]', space=sflag, size = 0x4, offset = 0, fixed_abs, tag = 'sflag constant byte address 0x0 - dummy sync flag']
  #allocation97 [shape = 's32[]', space=sflag, size = 0x4, offset = 0, fixed_abs, tag = 'sflag constant byte address 0x0 - dummy sync flag']
  #allocation98 [shape = 's32[]', space=sflag, size = 0x4, offset = 0, fixed_abs, tag = 'sflag constant byte address 0x0 - dummy sync flag']
  #allocation99 [shape = 's32[]', space=sflag, size = 0x4, offset = 0, fixed_abs, tag = 'sflag constant byte address 0x0 - dummy sync flag']
  #allocation100 [shape = 's32[]', space=sflag, size = 0x4, offset = 0, fixed_abs, tag = 'sflag constant byte address 0x0 - dummy sync flag']
  #allocation101 [shape = 's32[]', space=sflag, size = 0x4, offset = 0, fixed_abs, tag = 'sflag constant byte address 0x0 - dummy sync flag']
  #allocation102 [shape = 's32[]', space=sflag, size = 0x4, offset = 0, fixed_abs, tag = 'sflag constant byte address 0x0 - dummy sync flag']
  #allocation103 [shape = 's32[]', space=sflag, size = 0x4, offset = 0, fixed_abs, tag = 'sflag constant byte address 0x0 - dummy sync flag']
  #allocation104 [shape = 's32[]', space=sflag, size = 0x4, offset = 0, fixed_abs, tag = 'sflag constant byte address 0x0 - dummy sync flag']
  #allocation105 [shape = 's32[]', space=sflag, size = 0x4, offset = 0, fixed_abs, tag = 'sflag constant byte address 0x0 - dummy sync flag']
  #allocation106 [shape = 's32[]', space=sflag, size = 0x4, offset = 0, fixed_abs, tag = 'sflag constant byte address 0x0 - dummy sync flag']
  #allocation107 [shape = 's32[]', space=sflag, size = 0x4, offset = 0, fixed_abs, tag = 'sflag constant byte address 0x0 - dummy sync flag']
  #allocation108 [shape = 's32[]', space=sflag, size = 0x4, offset = 0, fixed_abs, tag = 'sflag constant byte address 0x0 - dummy sync flag']
  #allocation109 [shape = 's32[]', space=sflag, size = 0x4, offset = 0, fixed_abs, tag = 'sflag constant byte address 0x0 - dummy sync flag']
  #allocation110 [shape = 's32[]', space=sflag, size = 0x4, offset = 0, fixed_abs, tag = 'sflag constant byte address 0x0 - dummy sync flag']
  #allocation111 [shape = 's32[]', space=sflag, size = 0x4, offset = 0, fixed_abs, tag = 'sflag constant byte address 0x0 - dummy sync flag']
  #allocation112 [shape = 's32[]', space=sflag, size = 0x4, offset = 0, fixed_abs, tag = 'sflag constant byte address 0x0 - dummy sync flag']
  #allocation113 [shape = 's32[]', space=sflag, size = 0x4, offset = 0, fixed_abs, tag = 'sflag constant byte address 0x0 - dummy sync flag']
  #allocation114 [shape = 's32[]', space=sflag, size = 0x4, offset = 0, fixed_abs, tag = 'sflag constant byte address 0x0 - dummy sync flag']
  #allocation115 [shape = 's32[]', space=sflag, size = 0x4, offset = 0, fixed_abs, tag = 'sflag constant byte address 0x0 - dummy sync flag']
  #allocation116 [shape = 's32[]', space=sflag, size = 0x4, offset = 0, fixed_abs, tag = 'sflag constant byte address 0x0 - dummy sync flag']
  #allocation117 [shape = 's32[]', space=sflag, size = 0x4, offset = 0, fixed_abs, tag = 'sflag constant byte address 0x0 - dummy sync flag']
  #allocation118 [shape = 's32[]', space=sflag, size = 0x4, offset = 0, fixed_abs, tag = 'sflag constant byte address 0x0 - dummy sync flag']
  #allocation119 [shape = 's32[]', space=sflag, size = 0x4, offset = 0, fixed_abs, tag = 'sflag constant byte address 0x0 - dummy sync flag']
  #allocation120 [shape = 's32[]', space=sflag, size = 0x4, offset = 0, fixed_abs, tag = 'sflag constant byte address 0x0 - dummy sync flag']
  #allocation121 [shape = 's32[]', space=sflag, size = 0x4, offset = 0, fixed_abs, tag = 'sflag constant byte address 0x0 - dummy sync flag']
  #allocation122 [shape = 's32[]', space=sflag, size = 0x4, offset = 0, fixed_abs, tag = 'sflag constant byte address 0x0 - dummy sync flag']
  #allocation123 [shape = 's32[]', space=sflag, size = 0x4, offset = 0, fixed_abs, tag = 'sflag constant byte address 0x0 - dummy sync flag']
  #allocation124 [shape = 's32[]', space=sflag, size = 0x4, offset = 0, fixed_abs, tag = 'sflag constant byte address 0x0 - dummy sync flag']
  #allocation125 [shape = 's32[]', space=sflag, size = 0x4, offset = 0, fixed_abs, tag = 'sflag constant byte address 0x0 - dummy sync flag']
  #allocation126 [shape = 's32[]', space=sflag, size = 0x4, offset = 0, fixed_abs, tag = 'sflag constant byte address 0x0 - dummy sync flag']
  #allocation127 [shape = 's32[]', space=sflag, size = 0x4, offset = 0, fixed_abs, tag = 'sflag constant byte address 0x0 - dummy sync flag']
  #allocation128 [shape = 's32[]', space=sflag, size = 0x4, offset = 0, fixed_abs, tag = 'sflag constant byte address 0x0 - dummy sync flag']
  #allocation129 [shape = 's32[]', space=sflag, size = 0x4, offset = 0, fixed_abs, tag = 'sflag constant byte address 0x0 - dummy sync flag']
  #allocation130 [shape = 's32[]', space=sflag, size = 0x4, offset = 0, fixed_abs, tag = 'sflag constant byte address 0x0 - dummy sync flag']
  #allocation131 [shape = 's32[]', space=sflag, size = 0x4, offset = 0, fixed_abs, tag = 'sflag constant byte address 0x0 - dummy sync flag']
  #allocation132 [shape = 's32[]', space=sflag, size = 0x4, offset = 0, fixed_abs, tag = 'sflag constant byte address 0x0 - dummy sync flag']
  #allocation133 [shape = 's32[]', space=sflag, size = 0x4, offset = 0, fixed_abs, tag = 'sflag constant byte address 0x0 - dummy sync flag']
  #allocation134 [shape = 's32[]', space=sflag, size = 0x4, offset = 0, fixed_abs, tag = 'sflag constant byte address 0x0 - dummy sync flag']
  #allocation135 [shape = 's32[]', space=sflag, size = 0x4, offset = 0, fixed_abs, tag = 'sflag constant byte address 0x0 - dummy sync flag']
  #allocation136 [shape = 's32[]', space=sflag, size = 0x4, offset = 0, fixed_abs, tag = 'sflag constant byte address 0x0 - dummy sync flag']
  #allocation137 [shape = 's32[]', space=sflag, size = 0x4, offset = 0, fixed_abs, tag = 'sflag constant byte address 0x0 - dummy sync flag']
  #allocation138 [shape = 's32[]', space=sflag, size = 0x4, offset = 0, fixed_abs, tag = 'sflag constant byte address 0x0 - dummy sync flag']
  #allocation139 [shape = 's32[]', space=sflag, size = 0x4, offset = 0, fixed_abs, tag = 'sflag constant byte address 0x0 - dummy sync flag']
  #allocation140 [shape = 's32[]', space=sflag, size = 0x4, offset = 0, fixed_abs, tag = 'sflag constant byte address 0x0 - dummy sync flag']
  %s0 = inlined_call_operand.hbm [shape: s32[128], index: 0, kind: input, shape index: {}]
  %s1 = inlined_call_operand.vmem [shape: s32[2], index: 1, kind: input, shape index: {}]
  %s2 = inlined_call_operand.hbm [shape: f32[8,128], index: 2, kind: input, shape index: {}]
  %s3 = inlined_call_operand.hbm [shape: u32[24,64], index: 3, kind: input, shape index: {}]
  %s4 = inlined_call_operand.hbm [shape: f32[2,8,128], index: 4, kind: output, shape index: {}]
  %s5 = sld [smem:[#allocation0]]
  $region297: #{tpu_custom_call.1} parent=0
    _
  %s7 = ssub.s32 1, %s5
  %s8 = scalar_select 0, %s7, %s5
  %10 = dma.hbm_to_smem %s0, 16, [#allocation5], [#allocation4]
  %s11 = sshll.u32 %s1, 4
  %s12 = int_to_ptr.vmem [resolvable:$true] %s11
  %14 = dma.vmem_to_smem %s12, 16, [#allocation6], [#allocation4]
  %15 = dma.done [#allocation4], 32
  %16 = sfence
  $region1: #{tpu_custom_call.1} parent=0
    #allocation7 [shape = 'u8[4096]{0}', space=vmem, size = 0x1000, scoped, tag = 'input window, operand 2, single buffered']
    #allocation8 [shape = 's32[2]{0}', space=sflag, size = 0x8, scoped, tag = 'scoped memory for tpu_custom_call.1']
    #allocation9 [shape = 's32[2]{0}', space=sflag, size = 0x8, scoped, tag = 'scoped memory for tpu_custom_call.1']
    #allocation10 [shape = 'u8[8192]{0}', space=vmem, size = 0x2000, scoped, tag = 'output window, operand 0']
    %17 = vsyncpa [#allocation8], 0
    %18 = vsyncpa [#allocation9], 0
    %s19 = scalar_lea.sflag [#allocation9], 1
    %20 = vsyncpa %s19, 0
    loop: start=0, step=1, limit=4
    $region2: #{tpu_custom_call.1} parent=1 // loop_pre_header
      _
    $region3: #{tpu_custom_call.1} parent=1 // loop_header
      %s22 = sphi 0, %s26
      %p23 = scmp.ge.s32.totalorder %s22, 4
      %s29 = sphi 0, %s41
      %s30 = sphi 0, %s37
      %s31 = sphi 0, %s29
      %s32 = sphi 0, %s30
      %s33 = sphi 0, %s31
      %s34 = sphi 0, %s32
      %s44 = sphi 0, %s46
      %s47 = sphi 0, %s44
      %s48 = sphi 0, %s47
      %s64 = sphi 0, %s48
      %s72 = sphi 0, %s74
      %s75 = sphi 0, %s72
      %s76 = sphi 0, %s75
      %s92 = sphi 0, %s76
    $region4: #{tpu_custom_call.1} parent=1 // loop_header_branch
      %25 = sbr.rel (%p23) target = $region8
    $region5: #{tpu_custom_call.1} parent=1 // loop_body
      %s27 = ssub.s32 %s22, 1
      %s28 = ssub.s32 %s22, 2
      %s35 = sadd.s32 1, %s30
      %p36 = scmp.ge.s32.totalorder %s35, 2
      %s37 = scalar_select %p36, 0, %s35
      %s38 = sadd.s32 1, %s29
      %s39 = scalar_select %p36, %s38, %s29
      %p40 = scmp.ge.s32.totalorder %s39, 1
      %s41 = scalar_select %p40, 0, %s39
      %s42 = ssub.s32 %s29, %s41
      %p43 = scmp.eq.s32.totalorder %s42, 0
      %s45 = sadd.s32 %s44, 1
      %s46 = scalar_select %p43, %s44, %s45
      %p49 = pneg %p43
      %p50 = scmp.eq.s32.totalorder %s22, 1
      %p51 = por %p49, %p50
      %p52 = scmp.ne.s32.totalorder %s44, %s47
      %p53 = scmp.eq.s32.totalorder %s22, 0
      %p54 = por %p52, %p53
      %p55 = scmp.ne.s32.totalorder %s44, %s47
      %p56 = scmp.eq.s32.totalorder %s27, 1
      %p57 = por %p55, %p56
      %p58 = scmp.ne.s32.totalorder %s47, %s48
      %p59 = scmp.eq.s32.totalorder %s27, 0
      %p60 = por %p58, %p59
      %p61 = scmp.ne.s32.totalorder %s47, %s48
      %p62 = scmp.eq.s32.totalorder %s28, 1
      %p63 = por %p61, %p62
      %p65 = scmp.ne.s32.totalorder %s48, %s64
      %p66 = scmp.eq.s32.totalorder %s28, 0
      %p67 = por %p65, %p66
      %s68 = ssub.s32 %s30, %s37
      %s69 = ssub.s32 %s29, %s41
      %s70 = sor.u32 %s68, %s69
      %p71 = scmp.eq.s32.totalorder %s70, 0
      %s73 = sadd.s32 %s72, 1
      %s74 = scalar_select %p71, %s72, %s73
      %p77 = pneg %p71
      %p78 = scmp.eq.s32.totalorder %s22, 1
      %p79 = por %p77, %p78
      %p80 = scmp.ne.s32.totalorder %s72, %s75
      %p81 = scmp.eq.s32.totalorder %s22, 0
      %p82 = por %p80, %p81
      %p83 = scmp.ne.s32.totalorder %s72, %s75
      %p84 = scmp.eq.s32.totalorder %s27, 1
      %p85 = por %p83, %p84
      %p86 = scmp.ne.s32.totalorder %s75, %s76
      %p87 = scmp.eq.s32.totalorder %s27, 0
      %p88 = por %p86, %p87
      %p89 = scmp.ne.s32.totalorder %s75, %s76
      %p90 = scmp.eq.s32.totalorder %s28, 1
      %p91 = por %p89, %p90
      %p93 = scmp.ne.s32.totalorder %s76, %s92
      %p94 = scmp.eq.s32.totalorder %s28, 0
      %p95 = por %p93, %p94
      %p96 = scmp.le.s32.totalorder 1, %s22
      %p97 = scmp.lt.s32.totalorder %s22, 3
      %p98 = pnand %p96, %p97
      %p99 = pneg %p98
      // Predicated region
      $region9: #{tpu_custom_call.1} parent=5 // pred_check
        _
      $region10: #{tpu_custom_call.1} parent=5 // pred_check_branch
        %101 = sbr.rel (%p98) target = $region12
      $region11: #{tpu_custom_call.1} parent=5 // pred_region
        %s102 = ssub.s32 %s22, 1
        // Predicated region
        $region13: #{tpu_custom_call.1} parent=11 // pred_check
          %p103 = pneg %p60
        $region14: #{tpu_custom_call.1} parent=11 // pred_check_branch
          %105 = sbr.rel (%p103) target = $region16
        $region15: #{tpu_custom_call.1} parent=11 // pred_region
          %s107 = ssub.s32 128, 128
          %108 = vsyncadd [#allocation8], %s107
          %s109 = smul.addr %s31, 128
          %s110 = scalar_lea.hbm %s2, %s109
          %s112 = sshll.u32 [#allocation7], 4
          %s113 = int_to_ptr.vmem [resolvable:$true] %s112
          %115 = dma.hbm_to_vmem [thread:$0]  %s110, 128, %s113, [#allocation8]
        $region16: #{tpu_custom_call.1} parent=11 // pred_fallthru
          _
      $region12: #{tpu_custom_call.1} parent=5 // pred_fallthru
        _
      %p116 = scmp.lt.s32.totalorder %s22, 2
      // Predicated region
      $region17: #{tpu_custom_call.1} parent=5 // pred_check
        %p117 = pneg %p116
      $region18: #{tpu_custom_call.1} parent=5 // pred_check_branch
        %119 = sbr.rel (%p117) target = $region20
      $region19: #{tpu_custom_call.1} parent=5 // pred_region
        _
      $region20: #{tpu_custom_call.1} parent=5 // pred_fallthru
        _
      %p120 = scmp.le.s32.totalorder 1, %s22
      %p121 = scmp.lt.s32.totalorder %s22, 3
      %p122 = pnand %p120, %p121
      %p123 = pneg %p122
      // Predicated region
      $region21: #{tpu_custom_call.1} parent=5 // pred_check
        _
      $region22: #{tpu_custom_call.1} parent=5 // pred_check_branch
        %125 = sbr.rel (%p122) target = $region24
      $region23: #{tpu_custom_call.1} parent=5 // pred_region
        %s126 = ssub.s32 %s22, 1
        // Predicated region
        $region25: #{tpu_custom_call.1} parent=23 // pred_check
          %p127 = pneg %p60
        $region26: #{tpu_custom_call.1} parent=23 // pred_check_branch
          %129 = sbr.rel (%p127) target = $region28
        $region27: #{tpu_custom_call.1} parent=23 // pred_region
          %130 = dma.done [#allocation8], 128
        $region28: #{tpu_custom_call.1} parent=23 // pred_fallthru
          _
        %p131 = pneg %p60
        %p132 = pneg %p57
        %p133 = pneg %p88
        %p134 = pneg %p85
        %s135 = sand.u32 %s75, 1
        %s136 = scalar_lea.sflag [#allocation9], %s135
        %s137 = sand.u32 %s75, 1
        %s138 = smul.addr %s137, 8
        %s139 = scalar_lea.vmem [#allocation10], %s138
        %s140 = sld [smem:[#allocation6 + %s32]]
        %s141 = smul.u32 %s32, 8
        %s142 = smul.u32 %s31, 8
        %s143 = sadd.s32 %s141, %s142
        %s144 = smul.u32 %s143, 8
        %v145 = vlaneseq
        %v146 = vand.u32 %v145, 127
        %vm147 = vcmp.lt.s32.totalorder %v146, 8
        %s148 = sld [smem:[#allocation5 + %s144]]
        %s149 = sadd.s32 %s140, %s148
        %s150 = smul.addr %s149, 16
        %s151 = scalar_lea.hbm %s3, %s150
        // Predicated region
        $region29: #{tpu_custom_call.1} parent=23 // pred_check
          _
        $region30: #{tpu_custom_call.1} parent=23 // pred_check_branch
          %153 = sbr.rel target = $region32
        $region31: #{tpu_custom_call.1} parent=23 // pred_region
          %154 = sst [smem:[#allocation13]] [#allocation12]
          %155 = sst [smem:[#allocation14]] [#allocation11]
        $region32: #{tpu_custom_call.1} parent=23 // pred_fallthru
          _
        %157 = shalt.err (0)
        %s159 = sshll.u32 [#allocation2], 4
        %s160 = int_to_ptr.vmem [resolvable:$true] %s159
        %162 = dma.hbm_to_vmem [thread:$0]  %s151, 16, %s160, [#allocation3]
        %s163 = sadd.s32 %s144, 1
        %s164 = sld [smem:[#allocation5 + %s163]]
        %s165 = sadd.s32 %s140, %s164
        %s166 = smul.addr %s165, 16
        %s167 = scalar_lea.hbm %s3, %s166
        %s168 = scalar_lea.vmem [#allocation2], 1
        // Predicated region
        $region33: #{tpu_custom_call.1} parent=23 // pred_check
          _
        $region34: #{tpu_custom_call.1} parent=23 // pred_check_branch
          %170 = sbr.rel target = $region36
        $region35: #{tpu_custom_call.1} parent=23 // pred_region
          %171 = sst [smem:[#allocation13]] [#allocation16]
          %172 = sst [smem:[#allocation14]] [#allocation15]
        $region36: #{tpu_custom_call.1} parent=23 // pred_fallthru
          _
        %174 = shalt.err (0)
        %s176 = sshll.u32 %s168, 4
        %s177 = int_to_ptr.vmem [resolvable:$true] %s176
        %179 = dma.hbm_to_vmem [thread:$0]  %s167, 16, %s177, [#allocation3]
        %s180 = sadd.s32 %s144, 2
        %s181 = sld [smem:[#allocation5 + %s180]]
        %s182 = sadd.s32 %s140, %s181
        %s183 = smul.addr %s182, 16
        %s184 = scalar_lea.hbm %s3, %s183
        %s185 = scalar_lea.vmem [#allocation2], 2
        // Predicated region
        $region37: #{tpu_custom_call.1} parent=23 // pred_check
          _
        $region38: #{tpu_custom_call.1} parent=23 // pred_check_branch
          %187 = sbr.rel target = $region40
        $region39: #{tpu_custom_call.1} parent=23 // pred_region
          %188 = sst [smem:[#allocation13]] [#allocation18]
          %189 = sst [smem:[#allocation14]] [#allocation17]
        $region40: #{tpu_custom_call.1} parent=23 // pred_fallthru
          _
        %191 = shalt.err (0)
        %s193 = sshll.u32 %s185, 4
        %s194 = int_to_ptr.vmem [resolvable:$true] %s193
        %196 = dma.hbm_to_vmem [thread:$0]  %s184, 16, %s194, [#allocation3]
        %s197 = sadd.s32 %s144, 3
        %s198 = sld [smem:[#allocation5 + %s197]]
        %s199 = sadd.s32 %s140, %s198
        %s200 = smul.addr %s199, 16
        %s201 = scalar_lea.hbm %s3, %s200
        %s202 = scalar_lea.vmem [#allocation2], 3
        // Predicated region
        $region41: #{tpu_custom_call.1} parent=23 // pred_check
          _
        $region42: #{tpu_custom_call.1} parent=23 // pred_check_branch
          %204 = sbr.rel target = $region44
        $region43: #{tpu_custom_call.1} parent=23 // pred_region
          %205 = sst [smem:[#allocation13]] [#allocation20]
          %206 = sst [smem:[#allocation14]] [#allocation19]
        $region44: #{tpu_custom_call.1} parent=23 // pred_fallthru
          _
        %208 = shalt.err (0)
        %s210 = sshll.u32 %s202, 4
        %s211 = int_to_ptr.vmem [resolvable:$true] %s210
        %213 = dma.hbm_to_vmem [thread:$0]  %s201, 16, %s211, [#allocation3]
        %s214 = sadd.s32 %s144, 4
        %s215 = sld [smem:[#allocation5 + %s214]]
        %s216 = sadd.s32 %s140, %s215
        %s217 = smul.addr %s216, 16
        %s218 = scalar_lea.hbm %s3, %s217
        %s219 = scalar_lea.vmem [#allocation2], 4
        // Predicated region
        $region45: #{tpu_custom_call.1} parent=23 // pred_check
          _
        $region46: #{tpu_custom_call.1} parent=23 // pred_check_branch
          %221 = sbr.rel target = $region48
        $region47: #{tpu_custom_call.1} parent=23 // pred_region
          %222 = sst [smem:[#allocation13]] [#allocation22]
          %223 = sst [smem:[#allocation14]] [#allocation21]
        $region48: #{tpu_custom_call.1} parent=23 // pred_fallthru
          _
        %225 = shalt.err (0)
        %s227 = sshll.u32 %s219, 4
        %s228 = int_to_ptr.vmem [resolvable:$true] %s227
        %230 = dma.hbm_to_vmem [thread:$0]  %s218, 16, %s228, [#allocation3]
        %s231 = sadd.s32 %s144, 5
        %s232 = sld [smem:[#allocation5 + %s231]]
        %s233 = sadd.s32 %s140, %s232
        %s234 = smul.addr %s233, 16
        %s235 = scalar_lea.hbm %s3, %s234
        %s236 = scalar_lea.vmem [#allocation2], 5
        // Predicated region
        $region49: #{tpu_custom_call.1} parent=23 // pred_check
          _
        $region50: #{tpu_custom_call.1} parent=23 // pred_check_branch
          %238 = sbr.rel target = $region52
        $region51: #{tpu_custom_call.1} parent=23 // pred_region
          %239 = sst [smem:[#allocation13]] [#allocation24]
          %240 = sst [smem:[#allocation14]] [#allocation23]
        $region52: #{tpu_custom_call.1} parent=23 // pred_fallthru
          _
        %242 = shalt.err (0)
        %s244 = sshll.u32 %s236, 4
        %s245 = int_to_ptr.vmem [resolvable:$true] %s244
        %247 = dma.hbm_to_vmem [thread:$0]  %s235, 16, %s245, [#allocation3]
        %s248 = sadd.s32 %s144, 6
        %s249 = sld [smem:[#allocation5 + %s248]]
        %s250 = sadd.s32 %s140, %s249
        %s251 = smul.addr %s250, 16
        %s252 = scalar_lea.hbm %s3, %s251
        %s253 = scalar_lea.vmem [#allocation2], 6
        // Predicated region
        $region53: #{tpu_custom_call.1} parent=23 // pred_check
          _
        $region54: #{tpu_custom_call.1} parent=23 // pred_check_branch
          %255 = sbr.rel target = $region56
        $region55: #{tpu_custom_call.1} parent=23 // pred_region
          %256 = sst [smem:[#allocation13]] [#allocation26]
          %257 = sst [smem:[#allocation14]] [#allocation25]
        $region56: #{tpu_custom_call.1} parent=23 // pred_fallthru
          _
        %259 = shalt.err (0)
        %s261 = sshll.u32 %s253, 4
        %s262 = int_to_ptr.vmem [resolvable:$true] %s261
        %264 = dma.hbm_to_vmem [thread:$0]  %s252, 16, %s262, [#allocation3]
        %s265 = sadd.s32 %s144, 7
        %s266 = sld [smem:[#allocation5 + %s265]]
        %s267 = sadd.s32 %s140, %s266
        %s268 = smul.addr %s267, 16
        %s269 = scalar_lea.hbm %s3, %s268
        %s270 = scalar_lea.vmem [#allocation2], 7
        // Predicated region
        $region57: #{tpu_custom_call.1} parent=23 // pred_check
          _
        $region58: #{tpu_custom_call.1} parent=23 // pred_check_branch
          %272 = sbr.rel target = $region60
        $region59: #{tpu_custom_call.1} parent=23 // pred_region
          %273 = sst [smem:[#allocation13]] [#allocation28]
          %274 = sst [smem:[#allocation14]] [#allocation27]
        $region60: #{tpu_custom_call.1} parent=23 // pred_fallthru
          _
        %276 = shalt.err (0)
        %s278 = sshll.u32 %s270, 4
        %s279 = int_to_ptr.vmem [resolvable:$true] %s278
        %281 = dma.hbm_to_vmem [thread:$0]  %s269, 16, %s279, [#allocation3]
        %s282 = smul.u32 8, 1
        %s283 = sshll.u32 %s282, 4
        %284 = dma.done [#allocation3], %s283
        %s285 = sadd.s32 %s144, 8
        %s286 = sld [smem:[#allocation5 + %s285]]
        %s287 = sadd.s32 %s140, %s286
        %s288 = smul.addr %s287, 16
        %s289 = scalar_lea.hbm %s3, %s288
        %s290 = scalar_lea.vmem [#allocation2], 128
        %s291 = scalar_lea.sflag [#allocation3], 1
        // Predicated region
        $region61: #{tpu_custom_call.1} parent=23 // pred_check
          _
        $region62: #{tpu_custom_call.1} parent=23 // pred_check_branch
          %293 = sbr.rel target = $region64
        $region63: #{tpu_custom_call.1} parent=23 // pred_region
          %294 = sst [smem:[#allocation13]] [#allocation30]
          %295 = sst [smem:[#allocation14]] [#allocation29]
        $region64: #{tpu_custom_call.1} parent=23 // pred_fallthru
          _
        %297 = shalt.err (0)
        %s299 = sshll.u32 %s290, 4
        %s300 = int_to_ptr.vmem [resolvable:$true] %s299
        %302 = dma.hbm_to_vmem [thread:$0]  %s289, 16, %s300, %s291
        %s303 = sadd.s32 %s144, 9
        %s304 = sld [smem:[#allocation5 + %s303]]
        %s305 = sadd.s32 %s140, %s304
        %s306 = smul.addr %s305, 16
        %s307 = scalar_lea.hbm %s3, %s306
        %s308 = scalar_lea.vmem [#allocation2], 129
        // Predicated region
        $region65: #{tpu_custom_call.1} parent=23 // pred_check
          _
        $region66: #{tpu_custom_call.1} parent=23 // pred_check_branch
          %310 = sbr.rel target = $region68
        $region67: #{tpu_custom_call.1} parent=23 // pred_region
          %311 = sst [smem:[#allocation13]] [#allocation32]
          %312 = sst [smem:[#allocation14]] [#allocation31]
        $region68: #{tpu_custom_call.1} parent=23 // pred_fallthru
          _
        %314 = shalt.err (0)
        %s316 = sshll.u32 %s308, 4
        %s317 = int_to_ptr.vmem [resolvable:$true] %s316
        %319 = dma.hbm_to_vmem [thread:$0]  %s307, 16, %s317, %s291
        %s320 = sadd.s32 %s144, 10
        %s321 = sld [smem:[#allocation5 + %s320]]
        %s322 = sadd.s32 %s140, %s321
        %s323 = smul.addr %s322, 16
        %s324 = scalar_lea.hbm %s3, %s323
        %s325 = scalar_lea.vmem [#allocation2], 130
        // Predicated region
        $region69: #{tpu_custom_call.1} parent=23 // pred_check
          _
        $region70: #{tpu_custom_call.1} parent=23 // pred_check_branch
          %327 = sbr.rel target = $region72
        $region71: #{tpu_custom_call.1} parent=23 // pred_region
          %328 = sst [smem:[#allocation13]] [#allocation34]
          %329 = sst [smem:[#allocation14]] [#allocation33]
        $region72: #{tpu_custom_call.1} parent=23 // pred_fallthru
          _
        %331 = shalt.err (0)
        %s333 = sshll.u32 %s325, 4
        %s334 = int_to_ptr.vmem [resolvable:$true] %s333
        %336 = dma.hbm_to_vmem [thread:$0]  %s324, 16, %s334, %s291
        %s337 = sadd.s32 %s144, 11
        %s338 = sld [smem:[#allocation5 + %s337]]
        %s339 = sadd.s32 %s140, %s338
        %s340 = smul.addr %s339, 16
        %s341 = scalar_lea.hbm %s3, %s340
        %s342 = scalar_lea.vmem [#allocation2], 131
        // Predicated region
        $region73: #{tpu_custom_call.1} parent=23 // pred_check
          _
        $region74: #{tpu_custom_call.1} parent=23 // pred_check_branch
          %344 = sbr.rel target = $region76
        $region75: #{tpu_custom_call.1} parent=23 // pred_region
          %345 = sst [smem:[#allocation13]] [#allocation36]
          %346 = sst [smem:[#allocation14]] [#allocation35]
        $region76: #{tpu_custom_call.1} parent=23 // pred_fallthru
          _
        %348 = shalt.err (0)
        %s350 = sshll.u32 %s342, 4
        %s351 = int_to_ptr.vmem [resolvable:$true] %s350
        %353 = dma.hbm_to_vmem [thread:$0]  %s341, 16, %s351, %s291
        %s354 = sadd.s32 %s144, 12
        %s355 = sld [smem:[#allocation5 + %s354]]
        %s356 = sadd.s32 %s140, %s355
        %s357 = smul.addr %s356, 16
        %s358 = scalar_lea.hbm %s3, %s357
        %s359 = scalar_lea.vmem [#allocation2], 132
        // Predicated region
        $region77: #{tpu_custom_call.1} parent=23 // pred_check
          _
        $region78: #{tpu_custom_call.1} parent=23 // pred_check_branch
          %361 = sbr.rel target = $region80
        $region79: #{tpu_custom_call.1} parent=23 // pred_region
          %362 = sst [smem:[#allocation13]] [#allocation38]
          %363 = sst [smem:[#allocation14]] [#allocation37]
        $region80: #{tpu_custom_call.1} parent=23 // pred_fallthru
          _
        %365 = shalt.err (0)
        %s367 = sshll.u32 %s359, 4
        %s368 = int_to_ptr.vmem [resolvable:$true] %s367
        %370 = dma.hbm_to_vmem [thread:$0]  %s358, 16, %s368, %s291
        %s371 = sadd.s32 %s144, 13
        %s372 = sld [smem:[#allocation5 + %s371]]
        %s373 = sadd.s32 %s140, %s372
        %s374 = smul.addr %s373, 16
        %s375 = scalar_lea.hbm %s3, %s374
        %s376 = scalar_lea.vmem [#allocation2], 133
        // Predicated region
        $region81: #{tpu_custom_call.1} parent=23 // pred_check
          _
        $region82: #{tpu_custom_call.1} parent=23 // pred_check_branch
          %378 = sbr.rel target = $region84
        $region83: #{tpu_custom_call.1} parent=23 // pred_region
          %379 = sst [smem:[#allocation13]] [#allocation40]
          %380 = sst [smem:[#allocation14]] [#allocation39]
        $region84: #{tpu_custom_call.1} parent=23 // pred_fallthru
          _
        %382 = shalt.err (0)
        %s384 = sshll.u32 %s376, 4
        %s385 = int_to_ptr.vmem [resolvable:$true] %s384
        %387 = dma.hbm_to_vmem [thread:$0]  %s375, 16, %s385, %s291
        %s388 = sadd.s32 %s144, 14
        %s389 = sld [smem:[#allocation5 + %s388]]
        %s390 = sadd.s32 %s140, %s389
        %s391 = smul.addr %s390, 16
        %s392 = scalar_lea.hbm %s3, %s391
        %s393 = scalar_lea.vmem [#allocation2], 134
        // Predicated region
        $region85: #{tpu_custom_call.1} parent=23 // pred_check
          _
        $region86: #{tpu_custom_call.1} parent=23 // pred_check_branch
          %395 = sbr.rel target = $region88
        $region87: #{tpu_custom_call.1} parent=23 // pred_region
          %396 = sst [smem:[#allocation13]] [#allocation42]
          %397 = sst [smem:[#allocation14]] [#allocation41]
        $region88: #{tpu_custom_call.1} parent=23 // pred_fallthru
          _
        %399 = shalt.err (0)
        %s401 = sshll.u32 %s393, 4
        %s402 = int_to_ptr.vmem [resolvable:$true] %s401
        %404 = dma.hbm_to_vmem [thread:$0]  %s392, 16, %s402, %s291
        %s405 = sadd.s32 %s144, 15
        %s406 = sld [smem:[#allocation5 + %s405]]
        %s407 = sadd.s32 %s140, %s406
        %s408 = smul.addr %s407, 16
        %s409 = scalar_lea.hbm %s3, %s408
        %s410 = scalar_lea.vmem [#allocation2], 135
        // Predicated region
        $region89: #{tpu_custom_call.1} parent=23 // pred_check
          _
        $region90: #{tpu_custom_call.1} parent=23 // pred_check_branch
          %412 = sbr.rel target = $region92
        $region91: #{tpu_custom_call.1} parent=23 // pred_region
          %413 = sst [smem:[#allocation13]] [#allocation44]
          %414 = sst [smem:[#allocation14]] [#allocation43]
        $region92: #{tpu_custom_call.1} parent=23 // pred_fallthru
          _
        %416 = shalt.err (0)
        %s418 = sshll.u32 %s410, 4
        %s419 = int_to_ptr.vmem [resolvable:$true] %s418
        %421 = dma.hbm_to_vmem [thread:$0]  %s409, 16, %s419, %s291
        %v422 = vld [vmem:[#allocation2] sm:$0xff]
        %v423 = vld [vmem:[#allocation2 + $0x8] sm:$0xff]
        %v424 = vld [vmem:[#allocation2 + $0x10] sm:$0xff]
        %v425 = vld [vmem:[#allocation2 + $0x18] sm:$0xff]
        %v426 = vld [vmem:[#allocation2 + $0x20] sm:$0xff]
        %v427 = vld [vmem:[#allocation2 + $0x28] sm:$0xff]
        %v428 = vld [vmem:[#allocation2 + $0x30] sm:$0xff]
        %v429 = vld [vmem:[#allocation2 + $0x38] sm:$0xff]
        %v430 = vld [vmem:[#allocation2 + $0x40] sm:$0xff]
        %v431 = vld [vmem:[#allocation2 + $0x48] sm:$0xff]
        %v432 = vld [vmem:[#allocation2 + $0x50] sm:$0xff]
        %v433 = vld [vmem:[#allocation2 + $0x58] sm:$0xff]
        %v434 = vld [vmem:[#allocation2 + $0x60] sm:$0xff]
        %v435 = vld [vmem:[#allocation2 + $0x68] sm:$0xff]
        %v436 = vld [vmem:[#allocation2 + $0x70] sm:$0xff]
        %v437 = vld [vmem:[#allocation2 + $0x78] sm:$0xff]
        %v438 = vshll.u32 %v422, 16
        %v439 = vshll.u32 %v423, 16
        %v440 = vshll.u32 %v424, 16
        %v441 = vshll.u32 %v425, 16
        %v442 = vshll.u32 %v426, 16
        %v443 = vshll.u32 %v427, 16
        %v444 = vshll.u32 %v428, 16
        %v445 = vshll.u32 %v429, 16
        %v446 = vshll.u32 %v430, 16
        %v447 = vshll.u32 %v431, 16
        %v448 = vshll.u32 %v432, 16
        %v449 = vshll.u32 %v433, 16
        %v450 = vshll.u32 %v434, 16
        %v451 = vshll.u32 %v435, 16
        %v452 = vshll.u32 %v436, 16
        %v453 = vshll.u32 %v437, 16
        %v454 = vand.u32 %v422, 4294901760
        %v455 = vand.u32 %v423, 4294901760
        %v456 = vand.u32 %v424, 4294901760
        %v457 = vand.u32 %v425, 4294901760
        %v458 = vand.u32 %v426, 4294901760
        %v459 = vand.u32 %v427, 4294901760
        %v460 = vand.u32 %v428, 4294901760
        %v461 = vand.u32 %v429, 4294901760
        %v462 = vand.u32 %v430, 4294901760
        %v463 = vand.u32 %v431, 4294901760
        %v464 = vand.u32 %v432, 4294901760
        %v465 = vand.u32 %v433, 4294901760
        %v466 = vand.u32 %v434, 4294901760
        %v467 = vand.u32 %v435, 4294901760
        %v468 = vand.u32 %v436, 4294901760
        %v469 = vand.u32 %v437, 4294901760
        %v470 = vld [vmem:[#allocation7] sm:$0x1]
        %472 = vrot.lane.b32.xlu0 %v470, 64
        %v473 = vpop.permute.xlu0 %472
        %vm474 = vcmask 523264
        %v475 = vsel %vm474, %v473, 0
        %v477 = vsel %vm474, %v454, 0
        %v479 = vsel %vm474, %v455, 0
        %v481 = vsel %vm474, %v456, 0
        %v483 = vsel %vm474, %v457, 0
        %v485 = vsel %vm474, %v458, 0
        %v487 = vsel %vm474, %v459, 0
        %v489 = vsel %vm474, %v460, 0
        %v491 = vsel %vm474, %v461, 0
        %v493 = vsel %vm474, %v462, 0
        %v495 = vsel %vm474, %v463, 0
        %v497 = vsel %vm474, %v464, 0
        %v499 = vsel %vm474, %v465, 0
        %v501 = vsel %vm474, %v466, 0
        %v503 = vsel %vm474, %v467, 0
        %v505 = vsel %vm474, %v468, 0
        %v507 = vsel %vm474, %v469, 0
        %509 = vmatprep.subr.mxu0 0.0
        %510 = vmatpush1.xpose.msra.mxu0 %v477
        %511 = vmatprep.subr.mxu0 0.0
        %512 = vmatpush1.xpose.msra.mxu0 %v479
        %513 = vmatprep.subr.mxu0 0.0
        %514 = vmatpush1.xpose.msra.mxu0 %v481
        %515 = vmatprep.subr.mxu0 0.0
        %516 = vmatpush1.xpose.msra.mxu0 %v483
        %517 = vmatprep.subr.mxu0 0.0
        %518 = vmatpush1.xpose.msra.mxu0 %v485
        %519 = vmatprep.subr.mxu0 0.0
        %520 = vmatpush1.xpose.msra.mxu0 %v487
        %521 = vmatprep.subr.mxu0 0.0
        %522 = vmatpush1.xpose.msra.mxu0 %v489
        %523 = vmatprep.subr.mxu0 0.0
        %524 = vmatpush1.xpose.msra.mxu0 %v491
        %525 = vmatprep.subr.mxu0 0.0
        %526 = vmatpush1.xpose.msra.mxu0 %v493
        %527 = vmatprep.subr.mxu0 0.0
        %528 = vmatpush1.xpose.msra.mxu0 %v495
        %529 = vmatprep.subr.mxu0 0.0
        %530 = vmatpush1.xpose.msra.mxu0 %v497
        %531 = vmatprep.subr.mxu0 0.0
        %532 = vmatpush1.xpose.msra.mxu0 %v499
        %533 = vmatprep.subr.mxu0 0.0
        %534 = vmatpush1.xpose.msra.mxu0 %v501
        %535 = vmatprep.subr.mxu0 0.0
        %536 = vmatpush1.xpose.msra.mxu0 %v503
        %537 = vmatprep.subr.mxu0 0.0
        %538 = vmatpush1.xpose.msra.mxu0 %v505
        %539 = vmatprep.subr.mxu0 0.0
        %540 = vmatpush1.xpose.msra.mxu0 %v507
        %541 = vmatprep.subr.mxu0 0.0
        %542 = vmatpush1.xpose.msra.mxu0 0.0
        %543 = vmatprep.subr.mxu0 0.0
        %544 = vmatpush1.xpose.msra.mxu0 0.0
        %545 = vmatprep.subr.mxu0 0.0
        %546 = vmatpush1.xpose.msra.mxu0 0.0
        %547 = vmatprep.subr.mxu0 0.0
        %548 = vmatpush1.xpose.msra.mxu0 0.0
        %549 = vmatprep.subr.mxu0 0.0
        %550 = vmatpush1.xpose.msra.mxu0 0.0
        %551 = vmatprep.subr.mxu0 0.0
        %552 = vmatpush1.xpose.msra.mxu0 0.0
        %553 = vmatprep.subr.mxu0 0.0
        %554 = vmatpush1.xpose.msra.mxu0 0.0
        %555 = vmatprep.subr.mxu0 0.0
        %556 = vmatpush1.xpose.msra.mxu0 0.0
        %557 = vmatprep.subr.mxu0 0.0
        %558 = vmatpush1.xpose.msra.mxu0 0.0
        %559 = vmatprep.subr.mxu0 0.0
        %560 = vmatpush1.xpose.msra.mxu0 0.0
        %561 = vmatprep.subr.mxu0 0.0
        %562 = vmatpush1.xpose.msra.mxu0 0.0
        %563 = vmatprep.subr.mxu0 0.0
        %564 = vmatpush1.xpose.msra.mxu0 0.0
        %565 = vmatprep.subr.mxu0 0.0
        %566 = vmatpush1.xpose.msra.mxu0 0.0
        %567 = vmatprep.subr.mxu0 0.0
        %568 = vmatpush1.xpose.msra.mxu0 0.0
        %569 = vmatprep.subr.mxu0 0.0
        %570 = vmatpush1.xpose.msra.mxu0 0.0
        %571 = vmatprep.subr.mxu0 0.0
        %572 = vmatpush1.xpose.msra.mxu0 0.0
        %573 = vmatprep.mubr.f32.mxu0 0.0
        %574 = vmatmul.mubr.f32.gmra.mrb[0].mxu0 %v475
        %v575 = vpop.f32.mrb[0].mxu0
        %v576 = vadd.f32 0.0, %v575
        %v577 = vpop.f32.mrb[0].mxu0
        %578 = vdwg.mxu0
        %v579 = vsel %vm474, %v470, 0
        %v581 = vsel %vm474, %v438, 0
        %v583 = vsel %vm474, %v439, 0
        %v585 = vsel %vm474, %v440, 0
        %v587 = vsel %vm474, %v441, 0
        %v589 = vsel %vm474, %v442, 0
        %v591 = vsel %vm474, %v443, 0
        %v593 = vsel %vm474, %v444, 0
        %v595 = vsel %vm474, %v445, 0
        %v597 = vsel %vm474, %v446, 0
        %v599 = vsel %vm474, %v447, 0
        %v601 = vsel %vm474, %v448, 0
        %v603 = vsel %vm474, %v449, 0
        %v605 = vsel %vm474, %v450, 0
        %v607 = vsel %vm474, %v451, 0
        %v609 = vsel %vm474, %v452, 0
        %v611 = vsel %vm474, %v453, 0
        %613 = vmatprep.subr.mxu0 0.0
        %614 = vmatpush1.xpose.msra.mxu0 %v581
        %615 = vmatprep.subr.mxu0 0.0
        %616 = vmatpush1.xpose.msra.mxu0 %v583
        %617 = vmatprep.subr.mxu0 0.0
        %618 = vmatpush1.xpose.msra.mxu0 %v585
        %619 = vmatprep.subr.mxu0 0.0
        %620 = vmatpush1.xpose.msra.mxu0 %v587
        %621 = vmatprep.subr.mxu0 0.0
        %622 = vmatpush1.xpose.msra.mxu0 %v589
        %623 = vmatprep.subr.mxu0 0.0
        %624 = vmatpush1.xpose.msra.mxu0 %v591
        %625 = vmatprep.subr.mxu0 0.0
        %626 = vmatpush1.xpose.msra.mxu0 %v593
        %627 = vmatprep.subr.mxu0 0.0
        %628 = vmatpush1.xpose.msra.mxu0 %v595
        %629 = vmatprep.subr.mxu0 0.0
        %630 = vmatpush1.xpose.msra.mxu0 %v597
        %631 = vmatprep.subr.mxu0 0.0
        %632 = vmatpush1.xpose.msra.mxu0 %v599
        %633 = vmatprep.subr.mxu0 0.0
        %634 = vmatpush1.xpose.msra.mxu0 %v601
        %635 = vmatprep.subr.mxu0 0.0
        %636 = vmatpush1.xpose.msra.mxu0 %v603
        %637 = vmatprep.subr.mxu0 0.0
        %638 = vmatpush1.xpose.msra.mxu0 %v605
        %639 = vmatprep.subr.mxu0 0.0
        %640 = vmatpush1.xpose.msra.mxu0 %v607
        %641 = vmatprep.subr.mxu0 0.0
        %642 = vmatpush1.xpose.msra.mxu0 %v609
        %643 = vmatprep.subr.mxu0 0.0
        %644 = vmatpush1.xpose.msra.mxu0 %v611
        %645 = vmatprep.subr.mxu0 0.0
        %646 = vmatpush1.xpose.msra.mxu0 0.0
        %647 = vmatprep.subr.mxu0 0.0
        %648 = vmatpush1.xpose.msra.mxu0 0.0
        %649 = vmatprep.subr.mxu0 0.0
        %650 = vmatpush1.xpose.msra.mxu0 0.0
        %651 = vmatprep.subr.mxu0 0.0
        %652 = vmatpush1.xpose.msra.mxu0 0.0
        %653 = vmatprep.subr.mxu0 0.0
        %654 = vmatpush1.xpose.msra.mxu0 0.0
        %655 = vmatprep.subr.mxu0 0.0
        %656 = vmatpush1.xpose.msra.mxu0 0.0
        %657 = vmatprep.subr.mxu0 0.0
        %658 = vmatpush1.xpose.msra.mxu0 0.0
        %659 = vmatprep.subr.mxu0 0.0
        %660 = vmatpush1.xpose.msra.mxu0 0.0
        %661 = vmatprep.subr.mxu0 0.0
        %662 = vmatpush1.xpose.msra.mxu0 0.0
        %663 = vmatprep.subr.mxu0 0.0
        %664 = vmatpush1.xpose.msra.mxu0 0.0
        %665 = vmatprep.subr.mxu0 0.0
        %666 = vmatpush1.xpose.msra.mxu0 0.0
        %667 = vmatprep.subr.mxu0 0.0
        %668 = vmatpush1.xpose.msra.mxu0 0.0
        %669 = vmatprep.subr.mxu0 0.0
        %670 = vmatpush1.xpose.msra.mxu0 0.0
        %671 = vmatprep.subr.mxu0 0.0
        %672 = vmatpush1.xpose.msra.mxu0 0.0
        %673 = vmatprep.subr.mxu0 0.0
        %674 = vmatpush1.xpose.msra.mxu0 0.0
        %675 = vmatprep.subr.mxu0 0.0
        %676 = vmatpush1.xpose.msra.mxu0 0.0
        %677 = vmatprep.mubr.f32.mxu0 0.0
        %678 = vmatmul.mubr.f32.gmra.mrb[0].mxu0 %v579
        %v679 = vpop.f32.mrb[0].mxu0
        %v680 = vadd.f32 %v576, %v679
        %v681 = vpop.f32.mrb[0].mxu0
        %682 = vdwg.mxu0
        %v683 = vsel %vm147, %v680, 0.0
        %684 = vst [vmem:[%s139] sm:$0x1] %v683
        %s685 = sshll.u32 %s282, 4
        %686 = dma.done %s291, %s685
        %s687 = sadd.s32 %s144, 16
        %s688 = sld [smem:[#allocation5 + %s687]]
        %s689 = sadd.s32 %s140, %s688
        %s690 = smul.addr %s689, 16
        %s691 = scalar_lea.hbm %s3, %s690
        // Predicated region
        $region93: #{tpu_custom_call.1} parent=23 // pred_check
          _
        $region94: #{tpu_custom_call.1} parent=23 // pred_check_branch
          %693 = sbr.rel target = $region96
        $region95: #{tpu_custom_call.1} parent=23 // pred_region
          %694 = sst [smem:[#allocation13]] [#allocation46]
          %695 = sst [smem:[#allocation14]] [#allocation45]
        $region96: #{tpu_custom_call.1} parent=23 // pred_fallthru
          _
        %697 = shalt.err (0)
        %s699 = sshll.u32 [#allocation2], 4
        %s700 = int_to_ptr.vmem [resolvable:$true] %s699
        %702 = dma.hbm_to_vmem [thread:$0]  %s691, 16, %s700, [#allocation3]
        %s703 = sadd.s32 %s144, 17
        %s704 = sld [smem:[#allocation5 + %s703]]
        %s705 = sadd.s32 %s140, %s704
        %s706 = smul.addr %s705, 16
        %s707 = scalar_lea.hbm %s3, %s706
        // Predicated region
        $region97: #{tpu_custom_call.1} parent=23 // pred_check
          _
        $region98: #{tpu_custom_call.1} parent=23 // pred_check_branch
          %709 = sbr.rel target = $region100
        $region99: #{tpu_custom_call.1} parent=23 // pred_region
          %710 = sst [smem:[#allocation13]] [#allocation48]
          %711 = sst [smem:[#allocation14]] [#allocation47]
        $region100: #{tpu_custom_call.1} parent=23 // pred_fallthru
          _
        %713 = shalt.err (0)
        %s715 = sshll.u32 %s168, 4
        %s716 = int_to_ptr.vmem [resolvable:$true] %s715
        %718 = dma.hbm_to_vmem [thread:$0]  %s707, 16, %s716, [#allocation3]
        %s719 = sadd.s32 %s144, 18
        %s720 = sld [smem:[#allocation5 + %s719]]
        %s721 = sadd.s32 %s140, %s720
        %s722 = smul.addr %s721, 16
        %s723 = scalar_lea.hbm %s3, %s722
        // Predicated region
        $region101: #{tpu_custom_call.1} parent=23 // pred_check
          _
        $region102: #{tpu_custom_call.1} parent=23 // pred_check_branch
          %725 = sbr.rel target = $region104
        $region103: #{tpu_custom_call.1} parent=23 // pred_region
          %726 = sst [smem:[#allocation13]] [#allocation50]
          %727 = sst [smem:[#allocation14]] [#allocation49]
        $region104: #{tpu_custom_call.1} parent=23 // pred_fallthru
          _
        %729 = shalt.err (0)
        %s731 = sshll.u32 %s185, 4
        %s732 = int_to_ptr.vmem [resolvable:$true] %s731
        %734 = dma.hbm_to_vmem [thread:$0]  %s723, 16, %s732, [#allocation3]
        %s735 = sadd.s32 %s144, 19
        %s736 = sld [smem:[#allocation5 + %s735]]
        %s737 = sadd.s32 %s140, %s736
        %s738 = smul.addr %s737, 16
        %s739 = scalar_lea.hbm %s3, %s738
        // Predicated region
        $region105: #{tpu_custom_call.1} parent=23 // pred_check
          _
        $region106: #{tpu_custom_call.1} parent=23 // pred_check_branch
          %741 = sbr.rel target = $region108
        $region107: #{tpu_custom_call.1} parent=23 // pred_region
          %742 = sst [smem:[#allocation13]] [#allocation52]
          %743 = sst [smem:[#allocation14]] [#allocation51]
        $region108: #{tpu_custom_call.1} parent=23 // pred_fallthru
          _
        %745 = shalt.err (0)
        %s747 = sshll.u32 %s202, 4
        %s748 = int_to_ptr.vmem [resolvable:$true] %s747
        %750 = dma.hbm_to_vmem [thread:$0]  %s739, 16, %s748, [#allocation3]
        %s751 = sadd.s32 %s144, 20
        %s752 = sld [smem:[#allocation5 + %s751]]
        %s753 = sadd.s32 %s140, %s752
        %s754 = smul.addr %s753, 16
        %s755 = scalar_lea.hbm %s3, %s754
        // Predicated region
        $region109: #{tpu_custom_call.1} parent=23 // pred_check
          _
        $region110: #{tpu_custom_call.1} parent=23 // pred_check_branch
          %757 = sbr.rel target = $region112
        $region111: #{tpu_custom_call.1} parent=23 // pred_region
          %758 = sst [smem:[#allocation13]] [#allocation54]
          %759 = sst [smem:[#allocation14]] [#allocation53]
        $region112: #{tpu_custom_call.1} parent=23 // pred_fallthru
          _
        %761 = shalt.err (0)
        %s763 = sshll.u32 %s219, 4
        %s764 = int_to_ptr.vmem [resolvable:$true] %s763
        %766 = dma.hbm_to_vmem [thread:$0]  %s755, 16, %s764, [#allocation3]
        %s767 = sadd.s32 %s144, 21
        %s768 = sld [smem:[#allocation5 + %s767]]
        %s769 = sadd.s32 %s140, %s768
        %s770 = smul.addr %s769, 16
        %s771 = scalar_lea.hbm %s3, %s770
        // Predicated region
        $region113: #{tpu_custom_call.1} parent=23 // pred_check
          _
        $region114: #{tpu_custom_call.1} parent=23 // pred_check_branch
          %773 = sbr.rel target = $region116
        $region115: #{tpu_custom_call.1} parent=23 // pred_region
          %774 = sst [smem:[#allocation13]] [#allocation56]
          %775 = sst [smem:[#allocation14]] [#allocation55]
        $region116: #{tpu_custom_call.1} parent=23 // pred_fallthru
          _
        %777 = shalt.err (0)
        %s779 = sshll.u32 %s236, 4
        %s780 = int_to_ptr.vmem [resolvable:$true] %s779
        %782 = dma.hbm_to_vmem [thread:$0]  %s771, 16, %s780, [#allocation3]
        %s783 = sadd.s32 %s144, 22
        %s784 = sld [smem:[#allocation5 + %s783]]
        %s785 = sadd.s32 %s140, %s784
        %s786 = smul.addr %s785, 16
        %s787 = scalar_lea.hbm %s3, %s786
        // Predicated region
        $region117: #{tpu_custom_call.1} parent=23 // pred_check
          _
        $region118: #{tpu_custom_call.1} parent=23 // pred_check_branch
          %789 = sbr.rel target = $region120
        $region119: #{tpu_custom_call.1} parent=23 // pred_region
          %790 = sst [smem:[#allocation13]] [#allocation58]
          %791 = sst [smem:[#allocation14]] [#allocation57]
        $region120: #{tpu_custom_call.1} parent=23 // pred_fallthru
          _
        %793 = shalt.err (0)
        %s795 = sshll.u32 %s253, 4
        %s796 = int_to_ptr.vmem [resolvable:$true] %s795
        %798 = dma.hbm_to_vmem [thread:$0]  %s787, 16, %s796, [#allocation3]
        %s799 = sadd.s32 %s144, 23
        %s800 = sld [smem:[#allocation5 + %s799]]
        %s801 = sadd.s32 %s140, %s800
        %s802 = smul.addr %s801, 16
        %s803 = scalar_lea.hbm %s3, %s802
        // Predicated region
        $region121: #{tpu_custom_call.1} parent=23 // pred_check
          _
        $region122: #{tpu_custom_call.1} parent=23 // pred_check_branch
          %805 = sbr.rel target = $region124
        $region123: #{tpu_custom_call.1} parent=23 // pred_region
          %806 = sst [smem:[#allocation13]] [#allocation60]
          %807 = sst [smem:[#allocation14]] [#allocation59]
        $region124: #{tpu_custom_call.1} parent=23 // pred_fallthru
          _
        %809 = shalt.err (0)
        %s811 = sshll.u32 %s270, 4
        %s812 = int_to_ptr.vmem [resolvable:$true] %s811
        %814 = dma.hbm_to_vmem [thread:$0]  %s803, 16, %s812, [#allocation3]
        %v815 = vld [vmem:[#allocation2 + $0x80] sm:$0xff]
        %v816 = vld [vmem:[#allocation2 + $0x88] sm:$0xff]
        %v817 = vld [vmem:[#allocation2 + $0x90] sm:$0xff]
        %v818 = vld [vmem:[#allocation2 + $0x98] sm:$0xff]
        %v819 = vld [vmem:[#allocation2 + $0xa0] sm:$0xff]
        %v820 = vld [vmem:[#allocation2 + $0xa8] sm:$0xff]
        %v821 = vld [vmem:[#allocation2 + $0xb0] sm:$0xff]
        %v822 = vld [vmem:[#allocation2 + $0xb8] sm:$0xff]
        %v823 = vld [vmem:[#allocation2 + $0xc0] sm:$0xff]
        %v824 = vld [vmem:[#allocation2 + $0xc8] sm:$0xff]
        %v825 = vld [vmem:[#allocation2 + $0xd0] sm:$0xff]
        %v826 = vld [vmem:[#allocation2 + $0xd8] sm:$0xff]
        %v827 = vld [vmem:[#allocation2 + $0xe0] sm:$0xff]
        %v828 = vld [vmem:[#allocation2 + $0xe8] sm:$0xff]
        %v829 = vld [vmem:[#allocation2 + $0xf0] sm:$0xff]
        %v830 = vld [vmem:[#allocation2 + $0xf8] sm:$0xff]
        %v831 = vshll.u32 %v815, 16
        %v832 = vshll.u32 %v816, 16
        %v833 = vshll.u32 %v817, 16
        %v834 = vshll.u32 %v818, 16
        %v835 = vshll.u32 %v819, 16
        %v836 = vshll.u32 %v820, 16
        %v837 = vshll.u32 %v821, 16
        %v838 = vshll.u32 %v822, 16
        %v839 = vshll.u32 %v823, 16
        %v840 = vshll.u32 %v824, 16
        %v841 = vshll.u32 %v825, 16
        %v842 = vshll.u32 %v826, 16
        %v843 = vshll.u32 %v827, 16
        %v844 = vshll.u32 %v828, 16
        %v845 = vshll.u32 %v829, 16
        %v846 = vshll.u32 %v830, 16
        %v847 = vand.u32 %v815, 4294901760
        %v848 = vand.u32 %v816, 4294901760
        %v849 = vand.u32 %v817, 4294901760
        %v850 = vand.u32 %v818, 4294901760
        %v851 = vand.u32 %v819, 4294901760
        %v852 = vand.u32 %v820, 4294901760
        %v853 = vand.u32 %v821, 4294901760
        %v854 = vand.u32 %v822, 4294901760
        %v855 = vand.u32 %v823, 4294901760
        %v856 = vand.u32 %v824, 4294901760
        %v857 = vand.u32 %v825, 4294901760
        %v858 = vand.u32 %v826, 4294901760
        %v859 = vand.u32 %v827, 4294901760
        %v860 = vand.u32 %v828, 4294901760
        %v861 = vand.u32 %v829, 4294901760
        %v862 = vand.u32 %v830, 4294901760
        %v863 = vld [vmem:[#allocation7 + $0x1] sm:$0x1]
        %865 = vrot.lane.b32.xlu0 %v863, 64
        %v866 = vpop.permute.xlu0 %865
        %v867 = vsel %vm474, %v866, 0
        %v869 = vsel %vm474, %v847, 0
        %v871 = vsel %vm474, %v848, 0
        %v873 = vsel %vm474, %v849, 0
        %v875 = vsel %vm474, %v850, 0
        %v877 = vsel %vm474, %v851, 0
        %v879 = vsel %vm474, %v852, 0
        %v881 = vsel %vm474, %v853, 0
        %v883 = vsel %vm474, %v854, 0
        %v885 = vsel %vm474, %v855, 0
        %v887 = vsel %vm474, %v856, 0
        %v889 = vsel %vm474, %v857, 0
        %v891 = vsel %vm474, %v858, 0
        %v893 = vsel %vm474, %v859, 0
        %v895 = vsel %vm474, %v860, 0
        %v897 = vsel %vm474, %v861, 0
        %v899 = vsel %vm474, %v862, 0
        %901 = vmatprep.subr.mxu0 0.0
        %902 = vmatpush1.xpose.msra.mxu0 %v869
        %903 = vmatprep.subr.mxu0 0.0
        %904 = vmatpush1.xpose.msra.mxu0 %v871
        %905 = vmatprep.subr.mxu0 0.0
        %906 = vmatpush1.xpose.msra.mxu0 %v873
        %907 = vmatprep.subr.mxu0 0.0
        %908 = vmatpush1.xpose.msra.mxu0 %v875
        %909 = vmatprep.subr.mxu0 0.0
        %910 = vmatpush1.xpose.msra.mxu0 %v877
        %911 = vmatprep.subr.mxu0 0.0
        %912 = vmatpush1.xpose.msra.mxu0 %v879
        %913 = vmatprep.subr.mxu0 0.0
        %914 = vmatpush1.xpose.msra.mxu0 %v881
        %915 = vmatprep.subr.mxu0 0.0
        %916 = vmatpush1.xpose.msra.mxu0 %v883
        %917 = vmatprep.subr.mxu0 0.0
        %918 = vmatpush1.xpose.msra.mxu0 %v885
        %919 = vmatprep.subr.mxu0 0.0
        %920 = vmatpush1.xpose.msra.mxu0 %v887
        %921 = vmatprep.subr.mxu0 0.0
        %922 = vmatpush1.xpose.msra.mxu0 %v889
        %923 = vmatprep.subr.mxu0 0.0
        %924 = vmatpush1.xpose.msra.mxu0 %v891
        %925 = vmatprep.subr.mxu0 0.0
        %926 = vmatpush1.xpose.msra.mxu0 %v893
        %927 = vmatprep.subr.mxu0 0.0
        %928 = vmatpush1.xpose.msra.mxu0 %v895
        %929 = vmatprep.subr.mxu0 0.0
        %930 = vmatpush1.xpose.msra.mxu0 %v897
        %931 = vmatprep.subr.mxu0 0.0
        %932 = vmatpush1.xpose.msra.mxu0 %v899
        %933 = vmatprep.subr.mxu0 0.0
        %934 = vmatpush1.xpose.msra.mxu0 0.0
        %935 = vmatprep.subr.mxu0 0.0
        %936 = vmatpush1.xpose.msra.mxu0 0.0
        %937 = vmatprep.subr.mxu0 0.0
        %938 = vmatpush1.xpose.msra.mxu0 0.0
        %939 = vmatprep.subr.mxu0 0.0
        %940 = vmatpush1.xpose.msra.mxu0 0.0
        %941 = vmatprep.subr.mxu0 0.0
        %942 = vmatpush1.xpose.msra.mxu0 0.0
        %943 = vmatprep.subr.mxu0 0.0
        %944 = vmatpush1.xpose.msra.mxu0 0.0
        %945 = vmatprep.subr.mxu0 0.0
        %946 = vmatpush1.xpose.msra.mxu0 0.0
        %947 = vmatprep.subr.mxu0 0.0
        %948 = vmatpush1.xpose.msra.mxu0 0.0
        %949 = vmatprep.subr.mxu0 0.0
        %950 = vmatpush1.xpose.msra.mxu0 0.0
        %951 = vmatprep.subr.mxu0 0.0
        %952 = vmatpush1.xpose.msra.mxu0 0.0
        %953 = vmatprep.subr.mxu0 0.0
        %954 = vmatpush1.xpose.msra.mxu0 0.0
        %955 = vmatprep.subr.mxu0 0.0
        %956 = vmatpush1.xpose.msra.mxu0 0.0
        %957 = vmatprep.subr.mxu0 0.0
        %958 = vmatpush1.xpose.msra.mxu0 0.0
        %959 = vmatprep.subr.mxu0 0.0
        %960 = vmatpush1.xpose.msra.mxu0 0.0
        %961 = vmatprep.subr.mxu0 0.0
        %962 = vmatpush1.xpose.msra.mxu0 0.0
        %963 = vmatprep.subr.mxu0 0.0
        %964 = vmatpush1.xpose.msra.mxu0 0.0
        %965 = vmatprep.mubr.f32.mxu0 0.0
        %966 = vmatmul.mubr.f32.gmra.mrb[0].mxu0 %v867
        %v967 = vpop.f32.mrb[0].mxu0
        %v968 = vadd.f32 0.0, %v967
        %v969 = vpop.f32.mrb[0].mxu0
        %970 = vdwg.mxu0
        %v971 = vsel %vm474, %v863, 0
        %v973 = vsel %vm474, %v831, 0
        %v975 = vsel %vm474, %v832, 0
        %v977 = vsel %vm474, %v833, 0
        %v979 = vsel %vm474, %v834, 0
        %v981 = vsel %vm474, %v835, 0
        %v983 = vsel %vm474, %v836, 0
        %v985 = vsel %vm474, %v837, 0
        %v987 = vsel %vm474, %v838, 0
        %v989 = vsel %vm474, %v839, 0
        %v991 = vsel %vm474, %v840, 0
        %v993 = vsel %vm474, %v841, 0
        %v995 = vsel %vm474, %v842, 0
        %v997 = vsel %vm474, %v843, 0
        %v999 = vsel %vm474, %v844, 0
        %v1001 = vsel %vm474, %v845, 0
        %v1003 = vsel %vm474, %v846, 0
        %1005 = vmatprep.subr.mxu0 0.0
        %1006 = vmatpush1.xpose.msra.mxu0 %v973
        %1007 = vmatprep.subr.mxu0 0.0
        %1008 = vmatpush1.xpose.msra.mxu0 %v975
        %1009 = vmatprep.subr.mxu0 0.0
        %1010 = vmatpush1.xpose.msra.mxu0 %v977
        %1011 = vmatprep.subr.mxu0 0.0
        %1012 = vmatpush1.xpose.msra.mxu0 %v979
        %1013 = vmatprep.subr.mxu0 0.0
        %1014 = vmatpush1.xpose.msra.mxu0 %v981
        %1015 = vmatprep.subr.mxu0 0.0
        %1016 = vmatpush1.xpose.msra.mxu0 %v983
        %1017 = vmatprep.subr.mxu0 0.0
        %1018 = vmatpush1.xpose.msra.mxu0 %v985
        %1019 = vmatprep.subr.mxu0 0.0
        %1020 = vmatpush1.xpose.msra.mxu0 %v987
        %1021 = vmatprep.subr.mxu0 0.0
        %1022 = vmatpush1.xpose.msra.mxu0 %v989
        %1023 = vmatprep.subr.mxu0 0.0
        %1024 = vmatpush1.xpose.msra.mxu0 %v991
        %1025 = vmatprep.subr.mxu0 0.0
        %1026 = vmatpush1.xpose.msra.mxu0 %v993
        %1027 = vmatprep.subr.mxu0 0.0
        %1028 = vmatpush1.xpose.msra.mxu0 %v995
        %1029 = vmatprep.subr.mxu0 0.0
        %1030 = vmatpush1.xpose.msra.mxu0 %v997
        %1031 = vmatprep.subr.mxu0 0.0
        %1032 = vmatpush1.xpose.msra.mxu0 %v999
        %1033 = vmatprep.subr.mxu0 0.0
        %1034 = vmatpush1.xpose.msra.mxu0 %v1001
        %1035 = vmatprep.subr.mxu0 0.0
        %1036 = vmatpush1.xpose.msra.mxu0 %v1003
        %1037 = vmatprep.subr.mxu0 0.0
        %1038 = vmatpush1.xpose.msra.mxu0 0.0
        %1039 = vmatprep.subr.mxu0 0.0
        %1040 = vmatpush1.xpose.msra.mxu0 0.0
        %1041 = vmatprep.subr.mxu0 0.0
        %1042 = vmatpush1.xpose.msra.mxu0 0.0
        %1043 = vmatprep.subr.mxu0 0.0
        %1044 = vmatpush1.xpose.msra.mxu0 0.0
        %1045 = vmatprep.subr.mxu0 0.0
        %1046 = vmatpush1.xpose.msra.mxu0 0.0
        %1047 = vmatprep.subr.mxu0 0.0
        %1048 = vmatpush1.xpose.msra.mxu0 0.0
        %1049 = vmatprep.subr.mxu0 0.0
        %1050 = vmatpush1.xpose.msra.mxu0 0.0
        %1051 = vmatprep.subr.mxu0 0.0
        %1052 = vmatpush1.xpose.msra.mxu0 0.0
        %1053 = vmatprep.subr.mxu0 0.0
        %1054 = vmatpush1.xpose.msra.mxu0 0.0
        %1055 = vmatprep.subr.mxu0 0.0
        %1056 = vmatpush1.xpose.msra.mxu0 0.0
        %1057 = vmatprep.subr.mxu0 0.0
        %1058 = vmatpush1.xpose.msra.mxu0 0.0
        %1059 = vmatprep.subr.mxu0 0.0
        %1060 = vmatpush1.xpose.msra.mxu0 0.0
        %1061 = vmatprep.subr.mxu0 0.0
        %1062 = vmatpush1.xpose.msra.mxu0 0.0
        %1063 = vmatprep.subr.mxu0 0.0
        %1064 = vmatpush1.xpose.msra.mxu0 0.0
        %1065 = vmatprep.subr.mxu0 0.0
        %1066 = vmatpush1.xpose.msra.mxu0 0.0
        %1067 = vmatprep.subr.mxu0 0.0
        %1068 = vmatpush1.xpose.msra.mxu0 0.0
        %1069 = vmatprep.mubr.f32.mxu0 0.0
        %1070 = vmatmul.mubr.f32.gmra.mrb[0].mxu0 %v971
        %v1071 = vpop.f32.mrb[0].mxu0
        %v1072 = vadd.f32 %v968, %v1071
        %v1073 = vpop.f32.mrb[0].mxu0
        %1074 = vdwg.mxu0
        %v1075 = vsel %vm147, %v1072, 0.0
        %1076 = vst [vmem:[%s139 + $0x1] sm:$0x1] %v1075
        %s1077 = sshll.u32 %s282, 4
        %1078 = dma.done [#allocation3], %s1077
        %s1079 = sadd.s32 %s144, 24
        %s1080 = sld [smem:[#allocation5 + %s1079]]
        %s1081 = sadd.s32 %s140, %s1080
        %s1082 = smul.addr %s1081, 16
        %s1083 = scalar_lea.hbm %s3, %s1082
        // Predicated region
        $region125: #{tpu_custom_call.1} parent=23 // pred_check
          _
        $region126: #{tpu_custom_call.1} parent=23 // pred_check_branch
          %1085 = sbr.rel target = $region128
        $region127: #{tpu_custom_call.1} parent=23 // pred_region
          %1086 = sst [smem:[#allocation13]] [#allocation62]
          %1087 = sst [smem:[#allocation14]] [#allocation61]
        $region128: #{tpu_custom_call.1} parent=23 // pred_fallthru
          _
        %1089 = shalt.err (0)
        %s1091 = sshll.u32 %s290, 4
        %s1092 = int_to_ptr.vmem [resolvable:$true] %s1091
        %1094 = dma.hbm_to_vmem [thread:$0]  %s1083, 16, %s1092, %s291
        %s1095 = sadd.s32 %s144, 25
        %s1096 = sld [smem:[#allocation5 + %s1095]]
        %s1097 = sadd.s32 %s140, %s1096
        %s1098 = smul.addr %s1097, 16
        %s1099 = scalar_lea.hbm %s3, %s1098
        // Predicated region
        $region129: #{tpu_custom_call.1} parent=23 // pred_check
          _
        $region130: #{tpu_custom_call.1} parent=23 // pred_check_branch
          %1101 = sbr.rel target = $region132
        $region131: #{tpu_custom_call.1} parent=23 // pred_region
          %1102 = sst [smem:[#allocation13]] [#allocation64]
          %1103 = sst [smem:[#allocation14]] [#allocation63]
        $region132: #{tpu_custom_call.1} parent=23 // pred_fallthru
          _
        %1105 = shalt.err (0)
        %s1107 = sshll.u32 %s308, 4
        %s1108 = int_to_ptr.vmem [resolvable:$true] %s1107
        %1110 = dma.hbm_to_vmem [thread:$0]  %s1099, 16, %s1108, %s291
        %s1111 = sadd.s32 %s144, 26
        %s1112 = sld [smem:[#allocation5 + %s1111]]
        %s1113 = sadd.s32 %s140, %s1112
        %s1114 = smul.addr %s1113, 16
        %s1115 = scalar_lea.hbm %s3, %s1114
        // Predicated region
        $region133: #{tpu_custom_call.1} parent=23 // pred_check
          _
        $region134: #{tpu_custom_call.1} parent=23 // pred_check_branch
          %1117 = sbr.rel target = $region136
        $region135: #{tpu_custom_call.1} parent=23 // pred_region
          %1118 = sst [smem:[#allocation13]] [#allocation66]
          %1119 = sst [smem:[#allocation14]] [#allocation65]
        $region136: #{tpu_custom_call.1} parent=23 // pred_fallthru
          _
        %1121 = shalt.err (0)
        %s1123 = sshll.u32 %s325, 4
        %s1124 = int_to_ptr.vmem [resolvable:$true] %s1123
        %1126 = dma.hbm_to_vmem [thread:$0]  %s1115, 16, %s1124, %s291
        %s1127 = sadd.s32 %s144, 27
        %s1128 = sld [smem:[#allocation5 + %s1127]]
        %s1129 = sadd.s32 %s140, %s1128
        %s1130 = smul.addr %s1129, 16
        %s1131 = scalar_lea.hbm %s3, %s1130
        // Predicated region
        $region137: #{tpu_custom_call.1} parent=23 // pred_check
          _
        $region138: #{tpu_custom_call.1} parent=23 // pred_check_branch
          %1133 = sbr.rel target = $region140
        $region139: #{tpu_custom_call.1} parent=23 // pred_region
          %1134 = sst [smem:[#allocation13]] [#allocation68]
          %1135 = sst [smem:[#allocation14]] [#allocation67]
        $region140: #{tpu_custom_call.1} parent=23 // pred_fallthru
          _
        %1137 = shalt.err (0)
        %s1139 = sshll.u32 %s342, 4
        %s1140 = int_to_ptr.vmem [resolvable:$true] %s1139
        %1142 = dma.hbm_to_vmem [thread:$0]  %s1131, 16, %s1140, %s291
        %s1143 = sadd.s32 %s144, 28
        %s1144 = sld [smem:[#allocation5 + %s1143]]
        %s1145 = sadd.s32 %s140, %s1144
        %s1146 = smul.addr %s1145, 16
        %s1147 = scalar_lea.hbm %s3, %s1146
        // Predicated region
        $region141: #{tpu_custom_call.1} parent=23 // pred_check
          _
        $region142: #{tpu_custom_call.1} parent=23 // pred_check_branch
          %1149 = sbr.rel target = $region144
        $region143: #{tpu_custom_call.1} parent=23 // pred_region
          %1150 = sst [smem:[#allocation13]] [#allocation70]
          %1151 = sst [smem:[#allocation14]] [#allocation69]
        $region144: #{tpu_custom_call.1} parent=23 // pred_fallthru
          _
        %1153 = shalt.err (0)
        %s1155 = sshll.u32 %s359, 4
        %s1156 = int_to_ptr.vmem [resolvable:$true] %s1155
        %1158 = dma.hbm_to_vmem [thread:$0]  %s1147, 16, %s1156, %s291
        %s1159 = sadd.s32 %s144, 29
        %s1160 = sld [smem:[#allocation5 + %s1159]]
        %s1161 = sadd.s32 %s140, %s1160
        %s1162 = smul.addr %s1161, 16
        %s1163 = scalar_lea.hbm %s3, %s1162
        // Predicated region
        $region145: #{tpu_custom_call.1} parent=23 // pred_check
          _
        $region146: #{tpu_custom_call.1} parent=23 // pred_check_branch
          %1165 = sbr.rel target = $region148
        $region147: #{tpu_custom_call.1} parent=23 // pred_region
          %1166 = sst [smem:[#allocation13]] [#allocation72]
          %1167 = sst [smem:[#allocation14]] [#allocation71]
        $region148: #{tpu_custom_call.1} parent=23 // pred_fallthru
          _
        %1169 = shalt.err (0)
        %s1171 = sshll.u32 %s376, 4
        %s1172 = int_to_ptr.vmem [resolvable:$true] %s1171
        %1174 = dma.hbm_to_vmem [thread:$0]  %s1163, 16, %s1172, %s291
        %s1175 = sadd.s32 %s144, 30
        %s1176 = sld [smem:[#allocation5 + %s1175]]
        %s1177 = sadd.s32 %s140, %s1176
        %s1178 = smul.addr %s1177, 16
        %s1179 = scalar_lea.hbm %s3, %s1178
        // Predicated region
        $region149: #{tpu_custom_call.1} parent=23 // pred_check
          _
        $region150: #{tpu_custom_call.1} parent=23 // pred_check_branch
          %1181 = sbr.rel target = $region152
        $region151: #{tpu_custom_call.1} parent=23 // pred_region
          %1182 = sst [smem:[#allocation13]] [#allocation74]
          %1183 = sst [smem:[#allocation14]] [#allocation73]
        $region152: #{tpu_custom_call.1} parent=23 // pred_fallthru
          _
        %1185 = shalt.err (0)
        %s1187 = sshll.u32 %s393, 4
        %s1188 = int_to_ptr.vmem [resolvable:$true] %s1187
        %1190 = dma.hbm_to_vmem [thread:$0]  %s1179, 16, %s1188, %s291
        %s1191 = sadd.s32 %s144, 31
        %s1192 = sld [smem:[#allocation5 + %s1191]]
        %s1193 = sadd.s32 %s140, %s1192
        %s1194 = smul.addr %s1193, 16
        %s1195 = scalar_lea.hbm %s3, %s1194
        // Predicated region
        $region153: #{tpu_custom_call.1} parent=23 // pred_check
          _
        $region154: #{tpu_custom_call.1} parent=23 // pred_check_branch
          %1197 = sbr.rel target = $region156
        $region155: #{tpu_custom_call.1} parent=23 // pred_region
          %1198 = sst [smem:[#allocation13]] [#allocation76]
          %1199 = sst [smem:[#allocation14]] [#allocation75]
        $region156: #{tpu_custom_call.1} parent=23 // pred_fallthru
          _
        %1201 = shalt.err (0)
        %s1203 = sshll.u32 %s410, 4
        %s1204 = int_to_ptr.vmem [resolvable:$true] %s1203
        %1206 = dma.hbm_to_vmem [thread:$0]  %s1195, 16, %s1204, %s291
        %v1207 = vld [vmem:[#allocation2] sm:$0xff]
        %v1208 = vld [vmem:[#allocation2 + $0x8] sm:$0xff]
        %v1209 = vld [vmem:[#allocation2 + $0x10] sm:$0xff]
        %v1210 = vld [vmem:[#allocation2 + $0x18] sm:$0xff]
        %v1211 = vld [vmem:[#allocation2 + $0x20] sm:$0xff]
        %v1212 = vld [vmem:[#allocation2 + $0x28] sm:$0xff]
        %v1213 = vld [vmem:[#allocation2 + $0x30] sm:$0xff]
        %v1214 = vld [vmem:[#allocation2 + $0x38] sm:$0xff]
        %v1215 = vld [vmem:[#allocation2 + $0x40] sm:$0xff]
        %v1216 = vld [vmem:[#allocation2 + $0x48] sm:$0xff]
        %v1217 = vld [vmem:[#allocation2 + $0x50] sm:$0xff]
        %v1218 = vld [vmem:[#allocation2 + $0x58] sm:$0xff]
        %v1219 = vld [vmem:[#allocation2 + $0x60] sm:$0xff]
        %v1220 = vld [vmem:[#allocation2 + $0x68] sm:$0xff]
        %v1221 = vld [vmem:[#allocation2 + $0x70] sm:$0xff]
        %v1222 = vld [vmem:[#allocation2 + $0x78] sm:$0xff]
        %v1223 = vshll.u32 %v1207, 16
        %v1224 = vshll.u32 %v1208, 16
        %v1225 = vshll.u32 %v1209, 16
        %v1226 = vshll.u32 %v1210, 16
        %v1227 = vshll.u32 %v1211, 16
        %v1228 = vshll.u32 %v1212, 16
        %v1229 = vshll.u32 %v1213, 16
        %v1230 = vshll.u32 %v1214, 16
        %v1231 = vshll.u32 %v1215, 16
        %v1232 = vshll.u32 %v1216, 16
        %v1233 = vshll.u32 %v1217, 16
        %v1234 = vshll.u32 %v1218, 16
        %v1235 = vshll.u32 %v1219, 16
        %v1236 = vshll.u32 %v1220, 16
        %v1237 = vshll.u32 %v1221, 16
        %v1238 = vshll.u32 %v1222, 16
        %v1239 = vand.u32 %v1207, 4294901760
        %v1240 = vand.u32 %v1208, 4294901760
        %v1241 = vand.u32 %v1209, 4294901760
        %v1242 = vand.u32 %v1210, 4294901760
        %v1243 = vand.u32 %v1211, 4294901760
        %v1244 = vand.u32 %v1212, 4294901760
        %v1245 = vand.u32 %v1213, 4294901760
        %v1246 = vand.u32 %v1214, 4294901760
        %v1247 = vand.u32 %v1215, 4294901760
        %v1248 = vand.u32 %v1216, 4294901760
        %v1249 = vand.u32 %v1217, 4294901760
        %v1250 = vand.u32 %v1218, 4294901760
        %v1251 = vand.u32 %v1219, 4294901760
        %v1252 = vand.u32 %v1220, 4294901760
        %v1253 = vand.u32 %v1221, 4294901760
        %v1254 = vand.u32 %v1222, 4294901760
        %v1255 = vld [vmem:[#allocation7 + $0x2] sm:$0x1]
        %1257 = vrot.lane.b32.xlu0 %v1255, 64
        %v1258 = vpop.permute.xlu0 %1257
        %v1259 = vsel %vm474, %v1258, 0
        %v1261 = vsel %vm474, %v1239, 0
        %v1263 = vsel %vm474, %v1240, 0
        %v1265 = vsel %vm474, %v1241, 0
        %v1267 = vsel %vm474, %v1242, 0
        %v1269 = vsel %vm474, %v1243, 0
        %v1271 = vsel %vm474, %v1244, 0
        %v1273 = vsel %vm474, %v1245, 0
        %v1275 = vsel %vm474, %v1246, 0
        %v1277 = vsel %vm474, %v1247, 0
        %v1279 = vsel %vm474, %v1248, 0
        %v1281 = vsel %vm474, %v1249, 0
        %v1283 = vsel %vm474, %v1250, 0
        %v1285 = vsel %vm474, %v1251, 0
        %v1287 = vsel %vm474, %v1252, 0
        %v1289 = vsel %vm474, %v1253, 0
        %v1291 = vsel %vm474, %v1254, 0
        %1293 = vmatprep.subr.mxu0 0.0
        %1294 = vmatpush1.xpose.msra.mxu0 %v1261
        %1295 = vmatprep.subr.mxu0 0.0
        %1296 = vmatpush1.xpose.msra.mxu0 %v1263
        %1297 = vmatprep.subr.mxu0 0.0
        %1298 = vmatpush1.xpose.msra.mxu0 %v1265
        %1299 = vmatprep.subr.mxu0 0.0
        %1300 = vmatpush1.xpose.msra.mxu0 %v1267
        %1301 = vmatprep.subr.mxu0 0.0
        %1302 = vmatpush1.xpose.msra.mxu0 %v1269
        %1303 = vmatprep.subr.mxu0 0.0
        %1304 = vmatpush1.xpose.msra.mxu0 %v1271
        %1305 = vmatprep.subr.mxu0 0.0
        %1306 = vmatpush1.xpose.msra.mxu0 %v1273
        %1307 = vmatprep.subr.mxu0 0.0
        %1308 = vmatpush1.xpose.msra.mxu0 %v1275
        %1309 = vmatprep.subr.mxu0 0.0
        %1310 = vmatpush1.xpose.msra.mxu0 %v1277
        %1311 = vmatprep.subr.mxu0 0.0
        %1312 = vmatpush1.xpose.msra.mxu0 %v1279
        %1313 = vmatprep.subr.mxu0 0.0
        %1314 = vmatpush1.xpose.msra.mxu0 %v1281
        %1315 = vmatprep.subr.mxu0 0.0
        %1316 = vmatpush1.xpose.msra.mxu0 %v1283
        %1317 = vmatprep.subr.mxu0 0.0
        %1318 = vmatpush1.xpose.msra.mxu0 %v1285
        %1319 = vmatprep.subr.mxu0 0.0
        %1320 = vmatpush1.xpose.msra.mxu0 %v1287
        %1321 = vmatprep.subr.mxu0 0.0
        %1322 = vmatpush1.xpose.msra.mxu0 %v1289
        %1323 = vmatprep.subr.mxu0 0.0
        %1324 = vmatpush1.xpose.msra.mxu0 %v1291
        %1325 = vmatprep.subr.mxu0 0.0
        %1326 = vmatpush1.xpose.msra.mxu0 0.0
        %1327 = vmatprep.subr.mxu0 0.0
        %1328 = vmatpush1.xpose.msra.mxu0 0.0
        %1329 = vmatprep.subr.mxu0 0.0
        %1330 = vmatpush1.xpose.msra.mxu0 0.0
        %1331 = vmatprep.subr.mxu0 0.0
        %1332 = vmatpush1.xpose.msra.mxu0 0.0
        %1333 = vmatprep.subr.mxu0 0.0
        %1334 = vmatpush1.xpose.msra.mxu0 0.0
        %1335 = vmatprep.subr.mxu0 0.0
        %1336 = vmatpush1.xpose.msra.mxu0 0.0
        %1337 = vmatprep.subr.mxu0 0.0
        %1338 = vmatpush1.xpose.msra.mxu0 0.0
        %1339 = vmatprep.subr.mxu0 0.0
        %1340 = vmatpush1.xpose.msra.mxu0 0.0
        %1341 = vmatprep.subr.mxu0 0.0
        %1342 = vmatpush1.xpose.msra.mxu0 0.0
        %1343 = vmatprep.subr.mxu0 0.0
        %1344 = vmatpush1.xpose.msra.mxu0 0.0
        %1345 = vmatprep.subr.mxu0 0.0
        %1346 = vmatpush1.xpose.msra.mxu0 0.0
        %1347 = vmatprep.subr.mxu0 0.0
        %1348 = vmatpush1.xpose.msra.mxu0 0.0
        %1349 = vmatprep.subr.mxu0 0.0
        %1350 = vmatpush1.xpose.msra.mxu0 0.0
        %1351 = vmatprep.subr.mxu0 0.0
        %1352 = vmatpush1.xpose.msra.mxu0 0.0
        %1353 = vmatprep.subr.mxu0 0.0
        %1354 = vmatpush1.xpose.msra.mxu0 0.0
        %1355 = vmatprep.subr.mxu0 0.0
        %1356 = vmatpush1.xpose.msra.mxu0 0.0
        %1357 = vmatprep.mubr.f32.mxu0 0.0
        %1358 = vmatmul.mubr.f32.gmra.mrb[0].mxu0 %v1259
        %v1359 = vpop.f32.mrb[0].mxu0
        %v1360 = vadd.f32 0.0, %v1359
        %v1361 = vpop.f32.mrb[0].mxu0
        %1362 = vdwg.mxu0
        %v1363 = vsel %vm474, %v1255, 0
        %v1365 = vsel %vm474, %v1223, 0
        %v1367 = vsel %vm474, %v1224, 0
        %v1369 = vsel %vm474, %v1225, 0
        %v1371 = vsel %vm474, %v1226, 0
        %v1373 = vsel %vm474, %v1227, 0
        %v1375 = vsel %vm474, %v1228, 0
        %v1377 = vsel %vm474, %v1229, 0
        %v1379 = vsel %vm474, %v1230, 0
        %v1381 = vsel %vm474, %v1231, 0
        %v1383 = vsel %vm474, %v1232, 0
        %v1385 = vsel %vm474, %v1233, 0
        %v1387 = vsel %vm474, %v1234, 0
        %v1389 = vsel %vm474, %v1235, 0
        %v1391 = vsel %vm474, %v1236, 0
        %v1393 = vsel %vm474, %v1237, 0
        %v1395 = vsel %vm474, %v1238, 0
        %1397 = vmatprep.subr.mxu0 0.0
        %1398 = vmatpush1.xpose.msra.mxu0 %v1365
        %1399 = vmatprep.subr.mxu0 0.0
        %1400 = vmatpush1.xpose.msra.mxu0 %v1367
        %1401 = vmatprep.subr.mxu0 0.0
        %1402 = vmatpush1.xpose.msra.mxu0 %v1369
        %1403 = vmatprep.subr.mxu0 0.0
        %1404 = vmatpush1.xpose.msra.mxu0 %v1371
        %1405 = vmatprep.subr.mxu0 0.0
        %1406 = vmatpush1.xpose.msra.mxu0 %v1373
        %1407 = vmatprep.subr.mxu0 0.0
        %1408 = vmatpush1.xpose.msra.mxu0 %v1375
        %1409 = vmatprep.subr.mxu0 0.0
        %1410 = vmatpush1.xpose.msra.mxu0 %v1377
        %1411 = vmatprep.subr.mxu0 0.0
        %1412 = vmatpush1.xpose.msra.mxu0 %v1379
        %1413 = vmatprep.subr.mxu0 0.0
        %1414 = vmatpush1.xpose.msra.mxu0 %v1381
        %1415 = vmatprep.subr.mxu0 0.0
        %1416 = vmatpush1.xpose.msra.mxu0 %v1383
        %1417 = vmatprep.subr.mxu0 0.0
        %1418 = vmatpush1.xpose.msra.mxu0 %v1385
        %1419 = vmatprep.subr.mxu0 0.0
        %1420 = vmatpush1.xpose.msra.mxu0 %v1387
        %1421 = vmatprep.subr.mxu0 0.0
        %1422 = vmatpush1.xpose.msra.mxu0 %v1389
        %1423 = vmatprep.subr.mxu0 0.0
        %1424 = vmatpush1.xpose.msra.mxu0 %v1391
        %1425 = vmatprep.subr.mxu0 0.0
        %1426 = vmatpush1.xpose.msra.mxu0 %v1393
        %1427 = vmatprep.subr.mxu0 0.0
        %1428 = vmatpush1.xpose.msra.mxu0 %v1395
        %1429 = vmatprep.subr.mxu0 0.0
        %1430 = vmatpush1.xpose.msra.mxu0 0.0
        %1431 = vmatprep.subr.mxu0 0.0
        %1432 = vmatpush1.xpose.msra.mxu0 0.0
        %1433 = vmatprep.subr.mxu0 0.0
        %1434 = vmatpush1.xpose.msra.mxu0 0.0
        %1435 = vmatprep.subr.mxu0 0.0
        %1436 = vmatpush1.xpose.msra.mxu0 0.0
        %1437 = vmatprep.subr.mxu0 0.0
        %1438 = vmatpush1.xpose.msra.mxu0 0.0
        %1439 = vmatprep.subr.mxu0 0.0
        %1440 = vmatpush1.xpose.msra.mxu0 0.0
        %1441 = vmatprep.subr.mxu0 0.0
        %1442 = vmatpush1.xpose.msra.mxu0 0.0
        %1443 = vmatprep.subr.mxu0 0.0
        %1444 = vmatpush1.xpose.msra.mxu0 0.0
        %1445 = vmatprep.subr.mxu0 0.0
        %1446 = vmatpush1.xpose.msra.mxu0 0.0
        %1447 = vmatprep.subr.mxu0 0.0
        %1448 = vmatpush1.xpose.msra.mxu0 0.0
        %1449 = vmatprep.subr.mxu0 0.0
        %1450 = vmatpush1.xpose.msra.mxu0 0.0
        %1451 = vmatprep.subr.mxu0 0.0
        %1452 = vmatpush1.xpose.msra.mxu0 0.0
        %1453 = vmatprep.subr.mxu0 0.0
        %1454 = vmatpush1.xpose.msra.mxu0 0.0
        %1455 = vmatprep.subr.mxu0 0.0
        %1456 = vmatpush1.xpose.msra.mxu0 0.0
        %1457 = vmatprep.subr.mxu0 0.0
        %1458 = vmatpush1.xpose.msra.mxu0 0.0
        %1459 = vmatprep.subr.mxu0 0.0
        %1460 = vmatpush1.xpose.msra.mxu0 0.0
        %1461 = vmatprep.mubr.f32.mxu0 0.0
        %1462 = vmatmul.mubr.f32.gmra.mrb[0].mxu0 %v1363
        %v1463 = vpop.f32.mrb[0].mxu0
        %v1464 = vadd.f32 %v1360, %v1463
        %v1465 = vpop.f32.mrb[0].mxu0
        %1466 = vdwg.mxu0
        %v1467 = vsel %vm147, %v1464, 0.0
        %1468 = vst [vmem:[%s139 + $0x2] sm:$0x1] %v1467
        %s1469 = sshll.u32 %s282, 4
        %1470 = dma.done %s291, %s1469
        %s1471 = sadd.s32 %s144, 32
        %s1472 = sld [smem:[#allocation5 + %s1471]]
        %s1473 = sadd.s32 %s140, %s1472
        %s1474 = smul.addr %s1473, 16
        %s1475 = scalar_lea.hbm %s3, %s1474
        // Predicated region
        $region157: #{tpu_custom_call.1} parent=23 // pred_check
          _
        $region158: #{tpu_custom_call.1} parent=23 // pred_check_branch
          %1477 = sbr.rel target = $region160
        $region159: #{tpu_custom_call.1} parent=23 // pred_region
          %1478 = sst [smem:[#allocation13]] [#allocation78]
          %1479 = sst [smem:[#allocation14]] [#allocation77]
        $region160: #{tpu_custom_call.1} parent=23 // pred_fallthru
          _
        %1481 = shalt.err (0)
        %s1483 = sshll.u32 [#allocation2], 4
        %s1484 = int_to_ptr.vmem [resolvable:$true] %s1483
        %1486 = dma.hbm_to_vmem [thread:$0]  %s1475, 16, %s1484, [#allocation3]
        %s1487 = sadd.s32 %s144, 33
        %s1488 = sld [smem:[#allocation5 + %s1487]]
        %s1489 = sadd.s32 %s140, %s1488
        %s1490 = smul.addr %s1489, 16
        %s1491 = scalar_lea.hbm %s3, %s1490
        // Predicated region
        $region161: #{tpu_custom_call.1} parent=23 // pred_check
          _
        $region162: #{tpu_custom_call.1} parent=23 // pred_check_branch
          %1493 = sbr.rel target = $region164
        $region163: #{tpu_custom_call.1} parent=23 // pred_region
          %1494 = sst [smem:[#allocation13]] [#allocation80]
          %1495 = sst [smem:[#allocation14]] [#allocation79]
        $region164: #{tpu_custom_call.1} parent=23 // pred_fallthru
          _
        %1497 = shalt.err (0)
        %s1499 = sshll.u32 %s168, 4
        %s1500 = int_to_ptr.vmem [resolvable:$true] %s1499
        %1502 = dma.hbm_to_vmem [thread:$0]  %s1491, 16, %s1500, [#allocation3]
        %s1503 = sadd.s32 %s144, 34
        %s1504 = sld [smem:[#allocation5 + %s1503]]
        %s1505 = sadd.s32 %s140, %s1504
        %s1506 = smul.addr %s1505, 16
        %s1507 = scalar_lea.hbm %s3, %s1506
        // Predicated region
        $region165: #{tpu_custom_call.1} parent=23 // pred_check
          _
        $region166: #{tpu_custom_call.1} parent=23 // pred_check_branch
          %1509 = sbr.rel target = $region168
        $region167: #{tpu_custom_call.1} parent=23 // pred_region
          %1510 = sst [smem:[#allocation13]] [#allocation82]
          %1511 = sst [smem:[#allocation14]] [#allocation81]
        $region168: #{tpu_custom_call.1} parent=23 // pred_fallthru
          _
        %1513 = shalt.err (0)
        %s1515 = sshll.u32 %s185, 4
        %s1516 = int_to_ptr.vmem [resolvable:$true] %s1515
        %1518 = dma.hbm_to_vmem [thread:$0]  %s1507, 16, %s1516, [#allocation3]
        %s1519 = sadd.s32 %s144, 35
        %s1520 = sld [smem:[#allocation5 + %s1519]]
        %s1521 = sadd.s32 %s140, %s1520
        %s1522 = smul.addr %s1521, 16
        %s1523 = scalar_lea.hbm %s3, %s1522
        // Predicated region
        $region169: #{tpu_custom_call.1} parent=23 // pred_check
          _
        $region170: #{tpu_custom_call.1} parent=23 // pred_check_branch
          %1525 = sbr.rel target = $region172
        $region171: #{tpu_custom_call.1} parent=23 // pred_region
          %1526 = sst [smem:[#allocation13]] [#allocation84]
          %1527 = sst [smem:[#allocation14]] [#allocation83]
        $region172: #{tpu_custom_call.1} parent=23 // pred_fallthru
          _
        %1529 = shalt.err (0)
        %s1531 = sshll.u32 %s202, 4
        %s1532 = int_to_ptr.vmem [resolvable:$true] %s1531
        %1534 = dma.hbm_to_vmem [thread:$0]  %s1523, 16, %s1532, [#allocation3]
        %s1535 = sadd.s32 %s144, 36
        %s1536 = sld [smem:[#allocation5 + %s1535]]
        %s1537 = sadd.s32 %s140, %s1536
        %s1538 = smul.addr %s1537, 16
        %s1539 = scalar_lea.hbm %s3, %s1538
        // Predicated region
        $region173: #{tpu_custom_call.1} parent=23 // pred_check
          _
        $region174: #{tpu_custom_call.1} parent=23 // pred_check_branch
          %1541 = sbr.rel target = $region176
        $region175: #{tpu_custom_call.1} parent=23 // pred_region
          %1542 = sst [smem:[#allocation13]] [#allocation86]
          %1543 = sst [smem:[#allocation14]] [#allocation85]
        $region176: #{tpu_custom_call.1} parent=23 // pred_fallthru
          _
        %1545 = shalt.err (0)
        %s1547 = sshll.u32 %s219, 4
        %s1548 = int_to_ptr.vmem [resolvable:$true] %s1547
        %1550 = dma.hbm_to_vmem [thread:$0]  %s1539, 16, %s1548, [#allocation3]
        %s1551 = sadd.s32 %s144, 37
        %s1552 = sld [smem:[#allocation5 + %s1551]]
        %s1553 = sadd.s32 %s140, %s1552
        %s1554 = smul.addr %s1553, 16
        %s1555 = scalar_lea.hbm %s3, %s1554
        // Predicated region
        $region177: #{tpu_custom_call.1} parent=23 // pred_check
          _
        $region178: #{tpu_custom_call.1} parent=23 // pred_check_branch
          %1557 = sbr.rel target = $region180
        $region179: #{tpu_custom_call.1} parent=23 // pred_region
          %1558 = sst [smem:[#allocation13]] [#allocation88]
          %1559 = sst [smem:[#allocation14]] [#allocation87]
        $region180: #{tpu_custom_call.1} parent=23 // pred_fallthru
          _
        %1561 = shalt.err (0)
        %s1563 = sshll.u32 %s236, 4
        %s1564 = int_to_ptr.vmem [resolvable:$true] %s1563
        %1566 = dma.hbm_to_vmem [thread:$0]  %s1555, 16, %s1564, [#allocation3]
        %s1567 = sadd.s32 %s144, 38
        %s1568 = sld [smem:[#allocation5 + %s1567]]
        %s1569 = sadd.s32 %s140, %s1568
        %s1570 = smul.addr %s1569, 16
        %s1571 = scalar_lea.hbm %s3, %s1570
        // Predicated region
        $region181: #{tpu_custom_call.1} parent=23 // pred_check
          _
        $region182: #{tpu_custom_call.1} parent=23 // pred_check_branch
          %1573 = sbr.rel target = $region184
        $region183: #{tpu_custom_call.1} parent=23 // pred_region
          %1574 = sst [smem:[#allocation13]] [#allocation90]
          %1575 = sst [smem:[#allocation14]] [#allocation89]
        $region184: #{tpu_custom_call.1} parent=23 // pred_fallthru
          _
        %1577 = shalt.err (0)
        %s1579 = sshll.u32 %s253, 4
        %s1580 = int_to_ptr.vmem [resolvable:$true] %s1579
        %1582 = dma.hbm_to_vmem [thread:$0]  %s1571, 16, %s1580, [#allocation3]
        %s1583 = sadd.s32 %s144, 39
        %s1584 = sld [smem:[#allocation5 + %s1583]]
        %s1585 = sadd.s32 %s140, %s1584
        %s1586 = smul.addr %s1585, 16
        %s1587 = scalar_lea.hbm %s3, %s1586
        // Predicated region
        $region185: #{tpu_custom_call.1} parent=23 // pred_check
          _
        $region186: #{tpu_custom_call.1} parent=23 // pred_check_branch
          %1589 = sbr.rel target = $region188
        $region187: #{tpu_custom_call.1} parent=23 // pred_region
          %1590 = sst [smem:[#allocation13]] [#allocation92]
          %1591 = sst [smem:[#allocation14]] [#allocation91]
        $region188: #{tpu_custom_call.1} parent=23 // pred_fallthru
          _
        %1593 = shalt.err (0)
        %s1595 = sshll.u32 %s270, 4
        %s1596 = int_to_ptr.vmem [resolvable:$true] %s1595
        %1598 = dma.hbm_to_vmem [thread:$0]  %s1587, 16, %s1596, [#allocation3]
        %v1599 = vld [vmem:[#allocation2 + $0x80] sm:$0xff]
        %v1600 = vld [vmem:[#allocation2 + $0x88] sm:$0xff]
        %v1601 = vld [vmem:[#allocation2 + $0x90] sm:$0xff]
        %v1602 = vld [vmem:[#allocation2 + $0x98] sm:$0xff]
        %v1603 = vld [vmem:[#allocation2 + $0xa0] sm:$0xff]
        %v1604 = vld [vmem:[#allocation2 + $0xa8] sm:$0xff]
        %v1605 = vld [vmem:[#allocation2 + $0xb0] sm:$0xff]
        %v1606 = vld [vmem:[#allocation2 + $0xb8] sm:$0xff]
        %v1607 = vld [vmem:[#allocation2 + $0xc0] sm:$0xff]
        %v1608 = vld [vmem:[#allocation2 + $0xc8] sm:$0xff]
        %v1609 = vld [vmem:[#allocation2 + $0xd0] sm:$0xff]
        %v1610 = vld [vmem:[#allocation2 + $0xd8] sm:$0xff]
        %v1611 = vld [vmem:[#allocation2 + $0xe0] sm:$0xff]
        %v1612 = vld [vmem:[#allocation2 + $0xe8] sm:$0xff]
        %v1613 = vld [vmem:[#allocation2 + $0xf0] sm:$0xff]
        %v1614 = vld [vmem:[#allocation2 + $0xf8] sm:$0xff]
        %v1615 = vshll.u32 %v1599, 16
        %v1616 = vshll.u32 %v1600, 16
        %v1617 = vshll.u32 %v1601, 16
        %v1618 = vshll.u32 %v1602, 16
        %v1619 = vshll.u32 %v1603, 16
        %v1620 = vshll.u32 %v1604, 16
        %v1621 = vshll.u32 %v1605, 16
        %v1622 = vshll.u32 %v1606, 16
        %v1623 = vshll.u32 %v1607, 16
        %v1624 = vshll.u32 %v1608, 16
        %v1625 = vshll.u32 %v1609, 16
        %v1626 = vshll.u32 %v1610, 16
        %v1627 = vshll.u32 %v1611, 16
        %v1628 = vshll.u32 %v1612, 16
        %v1629 = vshll.u32 %v1613, 16
        %v1630 = vshll.u32 %v1614, 16
        %v1631 = vand.u32 %v1599, 4294901760
        %v1632 = vand.u32 %v1600, 4294901760
        %v1633 = vand.u32 %v1601, 4294901760
        %v1634 = vand.u32 %v1602, 4294901760
        %v1635 = vand.u32 %v1603, 4294901760
        %v1636 = vand.u32 %v1604, 4294901760
        %v1637 = vand.u32 %v1605, 4294901760
        %v1638 = vand.u32 %v1606, 4294901760
        %v1639 = vand.u32 %v1607, 4294901760
        %v1640 = vand.u32 %v1608, 4294901760
        %v1641 = vand.u32 %v1609, 4294901760
        %v1642 = vand.u32 %v1610, 4294901760
        %v1643 = vand.u32 %v1611, 4294901760
        %v1644 = vand.u32 %v1612, 4294901760
        %v1645 = vand.u32 %v1613, 4294901760
        %v1646 = vand.u32 %v1614, 4294901760
        %v1647 = vld [vmem:[#allocation7 + $0x3] sm:$0x1]
        %1649 = vrot.lane.b32.xlu0 %v1647, 64
        %v1650 = vpop.permute.xlu0 %1649
        %v1651 = vsel %vm474, %v1650, 0
        %v1653 = vsel %vm474, %v1631, 0
        %v1655 = vsel %vm474, %v1632, 0
        %v1657 = vsel %vm474, %v1633, 0
        %v1659 = vsel %vm474, %v1634, 0
        %v1661 = vsel %vm474, %v1635, 0
        %v1663 = vsel %vm474, %v1636, 0
        %v1665 = vsel %vm474, %v1637, 0
        %v1667 = vsel %vm474, %v1638, 0
        %v1669 = vsel %vm474, %v1639, 0
        %v1671 = vsel %vm474, %v1640, 0
        %v1673 = vsel %vm474, %v1641, 0
        %v1675 = vsel %vm474, %v1642, 0
        %v1677 = vsel %vm474, %v1643, 0
        %v1679 = vsel %vm474, %v1644, 0
        %v1681 = vsel %vm474, %v1645, 0
        %v1683 = vsel %vm474, %v1646, 0
        %1685 = vmatprep.subr.mxu0 0.0
        %1686 = vmatpush1.xpose.msra.mxu0 %v1653
        %1687 = vmatprep.subr.mxu0 0.0
        %1688 = vmatpush1.xpose.msra.mxu0 %v1655
        %1689 = vmatprep.subr.mxu0 0.0
        %1690 = vmatpush1.xpose.msra.mxu0 %v1657
        %1691 = vmatprep.subr.mxu0 0.0
        %1692 = vmatpush1.xpose.msra.mxu0 %v1659
        %1693 = vmatprep.subr.mxu0 0.0
        %1694 = vmatpush1.xpose.msra.mxu0 %v1661
        %1695 = vmatprep.subr.mxu0 0.0
        %1696 = vmatpush1.xpose.msra.mxu0 %v1663
        %1697 = vmatprep.subr.mxu0 0.0
        %1698 = vmatpush1.xpose.msra.mxu0 %v1665
        %1699 = vmatprep.subr.mxu0 0.0
        %1700 = vmatpush1.xpose.msra.mxu0 %v1667
        %1701 = vmatprep.subr.mxu0 0.0
        %1702 = vmatpush1.xpose.msra.mxu0 %v1669
        %1703 = vmatprep.subr.mxu0 0.0
        %1704 = vmatpush1.xpose.msra.mxu0 %v1671
        %1705 = vmatprep.subr.mxu0 0.0
        %1706 = vmatpush1.xpose.msra.mxu0 %v1673
        %1707 = vmatprep.subr.mxu0 0.0
        %1708 = vmatpush1.xpose.msra.mxu0 %v1675
        %1709 = vmatprep.subr.mxu0 0.0
        %1710 = vmatpush1.xpose.msra.mxu0 %v1677
        %1711 = vmatprep.subr.mxu0 0.0
        %1712 = vmatpush1.xpose.msra.mxu0 %v1679
        %1713 = vmatprep.subr.mxu0 0.0
        %1714 = vmatpush1.xpose.msra.mxu0 %v1681
        %1715 = vmatprep.subr.mxu0 0.0
        %1716 = vmatpush1.xpose.msra.mxu0 %v1683
        %1717 = vmatprep.subr.mxu0 0.0
        %1718 = vmatpush1.xpose.msra.mxu0 0.0
        %1719 = vmatprep.subr.mxu0 0.0
        %1720 = vmatpush1.xpose.msra.mxu0 0.0
        %1721 = vmatprep.subr.mxu0 0.0
        %1722 = vmatpush1.xpose.msra.mxu0 0.0
        %1723 = vmatprep.subr.mxu0 0.0
        %1724 = vmatpush1.xpose.msra.mxu0 0.0
        %1725 = vmatprep.subr.mxu0 0.0
        %1726 = vmatpush1.xpose.msra.mxu0 0.0
        %1727 = vmatprep.subr.mxu0 0.0
        %1728 = vmatpush1.xpose.msra.mxu0 0.0
        %1729 = vmatprep.subr.mxu0 0.0
        %1730 = vmatpush1.xpose.msra.mxu0 0.0
        %1731 = vmatprep.subr.mxu0 0.0
        %1732 = vmatpush1.xpose.msra.mxu0 0.0
        %1733 = vmatprep.subr.mxu0 0.0
        %1734 = vmatpush1.xpose.msra.mxu0 0.0
        %1735 = vmatprep.subr.mxu0 0.0
        %1736 = vmatpush1.xpose.msra.mxu0 0.0
        %1737 = vmatprep.subr.mxu0 0.0
        %1738 = vmatpush1.xpose.msra.mxu0 0.0
        %1739 = vmatprep.subr.mxu0 0.0
        %1740 = vmatpush1.xpose.msra.mxu0 0.0
        %1741 = vmatprep.subr.mxu0 0.0
        %1742 = vmatpush1.xpose.msra.mxu0 0.0
        %1743 = vmatprep.subr.mxu0 0.0
        %1744 = vmatpush1.xpose.msra.mxu0 0.0
        %1745 = vmatprep.subr.mxu0 0.0
        %1746 = vmatpush1.xpose.msra.mxu0 0.0
        %1747 = vmatprep.subr.mxu0 0.0
        %1748 = vmatpush1.xpose.msra.mxu0 0.0
        %1749 = vmatprep.mubr.f32.mxu0 0.0
        %1750 = vmatmul.mubr.f32.gmra.mrb[0].mxu0 %v1651
        %v1751 = vpop.f32.mrb[0].mxu0
        %v1752 = vadd.f32 0.0, %v1751
        %v1753 = vpop.f32.mrb[0].mxu0
        %1754 = vdwg.mxu0
        %v1755 = vsel %vm474, %v1647, 0
        %v1757 = vsel %vm474, %v1615, 0
        %v1759 = vsel %vm474, %v1616, 0
        %v1761 = vsel %vm474, %v1617, 0
        %v1763 = vsel %vm474, %v1618, 0
        %v1765 = vsel %vm474, %v1619, 0
        %v1767 = vsel %vm474, %v1620, 0
        %v1769 = vsel %vm474, %v1621, 0
        %v1771 = vsel %vm474, %v1622, 0
        %v1773 = vsel %vm474, %v1623, 0
        %v1775 = vsel %vm474, %v1624, 0
        %v1777 = vsel %vm474, %v1625, 0
        %v1779 = vsel %vm474, %v1626, 0
        %v1781 = vsel %vm474, %v1627, 0
        %v1783 = vsel %vm474, %v1628, 0
        %v1785 = vsel %vm474, %v1629, 0
        %v1787 = vsel %vm474, %v1630, 0
        %1789 = vmatprep.subr.mxu0 0.0
        %1790 = vmatpush1.xpose.msra.mxu0 %v1757
        %1791 = vmatprep.subr.mxu0 0.0
        %1792 = vmatpush1.xpose.msra.mxu0 %v1759
        %1793 = vmatprep.subr.mxu0 0.0
        %1794 = vmatpush1.xpose.msra.mxu0 %v1761
        %1795 = vmatprep.subr.mxu0 0.0
        %1796 = vmatpush1.xpose.msra.mxu0 %v1763
        %1797 = vmatprep.subr.mxu0 0.0
        %1798 = vmatpush1.xpose.msra.mxu0 %v1765
        %1799 = vmatprep.subr.mxu0 0.0
        %1800 = vmatpush1.xpose.msra.mxu0 %v1767
        %1801 = vmatprep.subr.mxu0 0.0
        %1802 = vmatpush1.xpose.msra.mxu0 %v1769
        %1803 = vmatprep.subr.mxu0 0.0
        %1804 = vmatpush1.xpose.msra.mxu0 %v1771
        %1805 = vmatprep.subr.mxu0 0.0
        %1806 = vmatpush1.xpose.msra.mxu0 %v1773
        %1807 = vmatprep.subr.mxu0 0.0
        %1808 = vmatpush1.xpose.msra.mxu0 %v1775
        %1809 = vmatprep.subr.mxu0 0.0
        %1810 = vmatpush1.xpose.msra.mxu0 %v1777
        %1811 = vmatprep.subr.mxu0 0.0
        %1812 = vmatpush1.xpose.msra.mxu0 %v1779
        %1813 = vmatprep.subr.mxu0 0.0
        %1814 = vmatpush1.xpose.msra.mxu0 %v1781
        %1815 = vmatprep.subr.mxu0 0.0
        %1816 = vmatpush1.xpose.msra.mxu0 %v1783
        %1817 = vmatprep.subr.mxu0 0.0
        %1818 = vmatpush1.xpose.msra.mxu0 %v1785
        %1819 = vmatprep.subr.mxu0 0.0
        %1820 = vmatpush1.xpose.msra.mxu0 %v1787
        %1821 = vmatprep.subr.mxu0 0.0
        %1822 = vmatpush1.xpose.msra.mxu0 0.0
        %1823 = vmatprep.subr.mxu0 0.0
        %1824 = vmatpush1.xpose.msra.mxu0 0.0
        %1825 = vmatprep.subr.mxu0 0.0
        %1826 = vmatpush1.xpose.msra.mxu0 0.0
        %1827 = vmatprep.subr.mxu0 0.0
        %1828 = vmatpush1.xpose.msra.mxu0 0.0
        %1829 = vmatprep.subr.mxu0 0.0
        %1830 = vmatpush1.xpose.msra.mxu0 0.0
        %1831 = vmatprep.subr.mxu0 0.0
        %1832 = vmatpush1.xpose.msra.mxu0 0.0
        %1833 = vmatprep.subr.mxu0 0.0
        %1834 = vmatpush1.xpose.msra.mxu0 0.0
        %1835 = vmatprep.subr.mxu0 0.0
        %1836 = vmatpush1.xpose.msra.mxu0 0.0
        %1837 = vmatprep.subr.mxu0 0.0
        %1838 = vmatpush1.xpose.msra.mxu0 0.0
        %1839 = vmatprep.subr.mxu0 0.0
        %1840 = vmatpush1.xpose.msra.mxu0 0.0
        %1841 = vmatprep.subr.mxu0 0.0
        %1842 = vmatpush1.xpose.msra.mxu0 0.0
        %1843 = vmatprep.subr.mxu0 0.0
        %1844 = vmatpush1.xpose.msra.mxu0 0.0
        %1845 = vmatprep.subr.mxu0 0.0
        %1846 = vmatpush1.xpose.msra.mxu0 0.0
        %1847 = vmatprep.subr.mxu0 0.0
        %1848 = vmatpush1.xpose.msra.mxu0 0.0
        %1849 = vmatprep.subr.mxu0 0.0
        %1850 = vmatpush1.xpose.msra.mxu0 0.0
        %1851 = vmatprep.subr.mxu0 0.0
        %1852 = vmatpush1.xpose.msra.mxu0 0.0
        %1853 = vmatprep.mubr.f32.mxu0 0.0
        %1854 = vmatmul.mubr.f32.gmra.mrb[0].mxu0 %v1755
        %v1855 = vpop.f32.mrb[0].mxu0
        %v1856 = vadd.f32 %v1752, %v1855
        %v1857 = vpop.f32.mrb[0].mxu0
        %1858 = vdwg.mxu0
        %v1859 = vsel %vm147, %v1856, 0.0
        %1860 = vst [vmem:[%s139 + $0x3] sm:$0x1] %v1859
        %s1861 = sshll.u32 %s282, 4
        %1862 = dma.done [#allocation3], %s1861
        %s1863 = sadd.s32 %s144, 40
        %s1864 = sld [smem:[#allocation5 + %s1863]]
        %s1865 = sadd.s32 %s140, %s1864
        %s1866 = smul.addr %s1865, 16
        %s1867 = scalar_lea.hbm %s3, %s1866
        // Predicated region
        $region189: #{tpu_custom_call.1} parent=23 // pred_check
          _
        $region190: #{tpu_custom_call.1} parent=23 // pred_check_branch
          %1869 = sbr.rel target = $region192
        $region191: #{tpu_custom_call.1} parent=23 // pred_region
          %1870 = sst [smem:[#allocation13]] [#allocation94]
          %1871 = sst [smem:[#allocation14]] [#allocation93]
        $region192: #{tpu_custom_call.1} parent=23 // pred_fallthru
          _
        %1873 = shalt.err (0)
        %s1875 = sshll.u32 %s290, 4
        %s1876 = int_to_ptr.vmem [resolvable:$true] %s1875
        %1878 = dma.hbm_to_vmem [thread:$0]  %s1867, 16, %s1876, %s291
        %s1879 = sadd.s32 %s144, 41
        %s1880 = sld [smem:[#allocation5 + %s1879]]
        %s1881 = sadd.s32 %s140, %s1880
        %s1882 = smul.addr %s1881, 16
        %s1883 = scalar_lea.hbm %s3, %s1882
        // Predicated region
        $region193: #{tpu_custom_call.1} parent=23 // pred_check
          _
        $region194: #{tpu_custom_call.1} parent=23 // pred_check_branch
          %1885 = sbr.rel target = $region196
        $region195: #{tpu_custom_call.1} parent=23 // pred_region
          %1886 = sst [smem:[#allocation13]] [#allocation96]
          %1887 = sst [smem:[#allocation14]] [#allocation95]
        $region196: #{tpu_custom_call.1} parent=23 // pred_fallthru
          _
        %1889 = shalt.err (0)
        %s1891 = sshll.u32 %s308, 4
        %s1892 = int_to_ptr.vmem [resolvable:$true] %s1891
        %1894 = dma.hbm_to_vmem [thread:$0]  %s1883, 16, %s1892, %s291
        %s1895 = sadd.s32 %s144, 42
        %s1896 = sld [smem:[#allocation5 + %s1895]]
        %s1897 = sadd.s32 %s140, %s1896
        %s1898 = smul.addr %s1897, 16
        %s1899 = scalar_lea.hbm %s3, %s1898
        // Predicated region
        $region197: #{tpu_custom_call.1} parent=23 // pred_check
          _
        $region198: #{tpu_custom_call.1} parent=23 // pred_check_branch
          %1901 = sbr.rel target = $region200
        $region199: #{tpu_custom_call.1} parent=23 // pred_region
          %1902 = sst [smem:[#allocation13]] [#allocation98]
          %1903 = sst [smem:[#allocation14]] [#allocation97]
        $region200: #{tpu_custom_call.1} parent=23 // pred_fallthru
          _
        %1905 = shalt.err (0)
        %s1907 = sshll.u32 %s325, 4
        %s1908 = int_to_ptr.vmem [resolvable:$true] %s1907
        %1910 = dma.hbm_to_vmem [thread:$0]  %s1899, 16, %s1908, %s291
        %s1911 = sadd.s32 %s144, 43
        %s1912 = sld [smem:[#allocation5 + %s1911]]
        %s1913 = sadd.s32 %s140, %s1912
        %s1914 = smul.addr %s1913, 16
        %s1915 = scalar_lea.hbm %s3, %s1914
        // Predicated region
        $region201: #{tpu_custom_call.1} parent=23 // pred_check
          _
        $region202: #{tpu_custom_call.1} parent=23 // pred_check_branch
          %1917 = sbr.rel target = $region204
        $region203: #{tpu_custom_call.1} parent=23 // pred_region
          %1918 = sst [smem:[#allocation13]] [#allocation100]
          %1919 = sst [smem:[#allocation14]] [#allocation99]
        $region204: #{tpu_custom_call.1} parent=23 // pred_fallthru
          _
        %1921 = shalt.err (0)
        %s1923 = sshll.u32 %s342, 4
        %s1924 = int_to_ptr.vmem [resolvable:$true] %s1923
        %1926 = dma.hbm_to_vmem [thread:$0]  %s1915, 16, %s1924, %s291
        %s1927 = sadd.s32 %s144, 44
        %s1928 = sld [smem:[#allocation5 + %s1927]]
        %s1929 = sadd.s32 %s140, %s1928
        %s1930 = smul.addr %s1929, 16
        %s1931 = scalar_lea.hbm %s3, %s1930
        // Predicated region
        $region205: #{tpu_custom_call.1} parent=23 // pred_check
          _
        $region206: #{tpu_custom_call.1} parent=23 // pred_check_branch
          %1933 = sbr.rel target = $region208
        $region207: #{tpu_custom_call.1} parent=23 // pred_region
          %1934 = sst [smem:[#allocation13]] [#allocation102]
          %1935 = sst [smem:[#allocation14]] [#allocation101]
        $region208: #{tpu_custom_call.1} parent=23 // pred_fallthru
          _
        %1937 = shalt.err (0)
        %s1939 = sshll.u32 %s359, 4
        %s1940 = int_to_ptr.vmem [resolvable:$true] %s1939
        %1942 = dma.hbm_to_vmem [thread:$0]  %s1931, 16, %s1940, %s291
        %s1943 = sadd.s32 %s144, 45
        %s1944 = sld [smem:[#allocation5 + %s1943]]
        %s1945 = sadd.s32 %s140, %s1944
        %s1946 = smul.addr %s1945, 16
        %s1947 = scalar_lea.hbm %s3, %s1946
        // Predicated region
        $region209: #{tpu_custom_call.1} parent=23 // pred_check
          _
        $region210: #{tpu_custom_call.1} parent=23 // pred_check_branch
          %1949 = sbr.rel target = $region212
        $region211: #{tpu_custom_call.1} parent=23 // pred_region
          %1950 = sst [smem:[#allocation13]] [#allocation104]
          %1951 = sst [smem:[#allocation14]] [#allocation103]
        $region212: #{tpu_custom_call.1} parent=23 // pred_fallthru
          _
        %1953 = shalt.err (0)
        %s1955 = sshll.u32 %s376, 4
        %s1956 = int_to_ptr.vmem [resolvable:$true] %s1955
        %1958 = dma.hbm_to_vmem [thread:$0]  %s1947, 16, %s1956, %s291
        %s1959 = sadd.s32 %s144, 46
        %s1960 = sld [smem:[#allocation5 + %s1959]]
        %s1961 = sadd.s32 %s140, %s1960
        %s1962 = smul.addr %s1961, 16
        %s1963 = scalar_lea.hbm %s3, %s1962
        // Predicated region
        $region213: #{tpu_custom_call.1} parent=23 // pred_check
          _
        $region214: #{tpu_custom_call.1} parent=23 // pred_check_branch
          %1965 = sbr.rel target = $region216
        $region215: #{tpu_custom_call.1} parent=23 // pred_region
          %1966 = sst [smem:[#allocation13]] [#allocation106]
          %1967 = sst [smem:[#allocation14]] [#allocation105]
        $region216: #{tpu_custom_call.1} parent=23 // pred_fallthru
          _
        %1969 = shalt.err (0)
        %s1971 = sshll.u32 %s393, 4
        %s1972 = int_to_ptr.vmem [resolvable:$true] %s1971
        %1974 = dma.hbm_to_vmem [thread:$0]  %s1963, 16, %s1972, %s291
        %s1975 = sadd.s32 %s144, 47
        %s1976 = sld [smem:[#allocation5 + %s1975]]
        %s1977 = sadd.s32 %s140, %s1976
        %s1978 = smul.addr %s1977, 16
        %s1979 = scalar_lea.hbm %s3, %s1978
        // Predicated region
        $region217: #{tpu_custom_call.1} parent=23 // pred_check
          _
        $region218: #{tpu_custom_call.1} parent=23 // pred_check_branch
          %1981 = sbr.rel target = $region220
        $region219: #{tpu_custom_call.1} parent=23 // pred_region
          %1982 = sst [smem:[#allocation13]] [#allocation108]
          %1983 = sst [smem:[#allocation14]] [#allocation107]
        $region220: #{tpu_custom_call.1} parent=23 // pred_fallthru
          _
        %1985 = shalt.err (0)
        %s1987 = sshll.u32 %s410, 4
        %s1988 = int_to_ptr.vmem [resolvable:$true] %s1987
        %1990 = dma.hbm_to_vmem [thread:$0]  %s1979, 16, %s1988, %s291
        %v1991 = vld [vmem:[#allocation2] sm:$0xff]
        %v1992 = vld [vmem:[#allocation2 + $0x8] sm:$0xff]
        %v1993 = vld [vmem:[#allocation2 + $0x10] sm:$0xff]
        %v1994 = vld [vmem:[#allocation2 + $0x18] sm:$0xff]
        %v1995 = vld [vmem:[#allocation2 + $0x20] sm:$0xff]
        %v1996 = vld [vmem:[#allocation2 + $0x28] sm:$0xff]
        %v1997 = vld [vmem:[#allocation2 + $0x30] sm:$0xff]
        %v1998 = vld [vmem:[#allocation2 + $0x38] sm:$0xff]
        %v1999 = vld [vmem:[#allocation2 + $0x40] sm:$0xff]
        %v2000 = vld [vmem:[#allocation2 + $0x48] sm:$0xff]
        %v2001 = vld [vmem:[#allocation2 + $0x50] sm:$0xff]
        %v2002 = vld [vmem:[#allocation2 + $0x58] sm:$0xff]
        %v2003 = vld [vmem:[#allocation2 + $0x60] sm:$0xff]
        %v2004 = vld [vmem:[#allocation2 + $0x68] sm:$0xff]
        %v2005 = vld [vmem:[#allocation2 + $0x70] sm:$0xff]
        %v2006 = vld [vmem:[#allocation2 + $0x78] sm:$0xff]
        %v2007 = vshll.u32 %v1991, 16
        %v2008 = vshll.u32 %v1992, 16
        %v2009 = vshll.u32 %v1993, 16
        %v2010 = vshll.u32 %v1994, 16
        %v2011 = vshll.u32 %v1995, 16
        %v2012 = vshll.u32 %v1996, 16
        %v2013 = vshll.u32 %v1997, 16
        %v2014 = vshll.u32 %v1998, 16
        %v2015 = vshll.u32 %v1999, 16
        %v2016 = vshll.u32 %v2000, 16
        %v2017 = vshll.u32 %v2001, 16
        %v2018 = vshll.u32 %v2002, 16
        %v2019 = vshll.u32 %v2003, 16
        %v2020 = vshll.u32 %v2004, 16
        %v2021 = vshll.u32 %v2005, 16
        %v2022 = vshll.u32 %v2006, 16
        %v2023 = vand.u32 %v1991, 4294901760
        %v2024 = vand.u32 %v1992, 4294901760
        %v2025 = vand.u32 %v1993, 4294901760
        %v2026 = vand.u32 %v1994, 4294901760
        %v2027 = vand.u32 %v1995, 4294901760
        %v2028 = vand.u32 %v1996, 4294901760
        %v2029 = vand.u32 %v1997, 4294901760
        %v2030 = vand.u32 %v1998, 4294901760
        %v2031 = vand.u32 %v1999, 4294901760
        %v2032 = vand.u32 %v2000, 4294901760
        %v2033 = vand.u32 %v2001, 4294901760
        %v2034 = vand.u32 %v2002, 4294901760
        %v2035 = vand.u32 %v2003, 4294901760
        %v2036 = vand.u32 %v2004, 4294901760
        %v2037 = vand.u32 %v2005, 4294901760
        %v2038 = vand.u32 %v2006, 4294901760
        %v2039 = vld [vmem:[#allocation7 + $0x4] sm:$0x1]
        %2041 = vrot.lane.b32.xlu0 %v2039, 64
        %v2042 = vpop.permute.xlu0 %2041
        %v2043 = vsel %vm474, %v2042, 0
        %v2045 = vsel %vm474, %v2023, 0
        %v2047 = vsel %vm474, %v2024, 0
        %v2049 = vsel %vm474, %v2025, 0
        %v2051 = vsel %vm474, %v2026, 0
        %v2053 = vsel %vm474, %v2027, 0
        %v2055 = vsel %vm474, %v2028, 0
        %v2057 = vsel %vm474, %v2029, 0
        %v2059 = vsel %vm474, %v2030, 0
        %v2061 = vsel %vm474, %v2031, 0
        %v2063 = vsel %vm474, %v2032, 0
        %v2065 = vsel %vm474, %v2033, 0
        %v2067 = vsel %vm474, %v2034, 0
        %v2069 = vsel %vm474, %v2035, 0
        %v2071 = vsel %vm474, %v2036, 0
        %v2073 = vsel %vm474, %v2037, 0
        %v2075 = vsel %vm474, %v2038, 0
        %2077 = vmatprep.subr.mxu0 0.0
        %2078 = vmatpush1.xpose.msra.mxu0 %v2045
        %2079 = vmatprep.subr.mxu0 0.0
        %2080 = vmatpush1.xpose.msra.mxu0 %v2047
        %2081 = vmatprep.subr.mxu0 0.0
        %2082 = vmatpush1.xpose.msra.mxu0 %v2049
        %2083 = vmatprep.subr.mxu0 0.0
        %2084 = vmatpush1.xpose.msra.mxu0 %v2051
        %2085 = vmatprep.subr.mxu0 0.0
        %2086 = vmatpush1.xpose.msra.mxu0 %v2053
        %2087 = vmatprep.subr.mxu0 0.0
        %2088 = vmatpush1.xpose.msra.mxu0 %v2055
        %2089 = vmatprep.subr.mxu0 0.0
        %2090 = vmatpush1.xpose.msra.mxu0 %v2057
        %2091 = vmatprep.subr.mxu0 0.0
        %2092 = vmatpush1.xpose.msra.mxu0 %v2059
        %2093 = vmatprep.subr.mxu0 0.0
        %2094 = vmatpush1.xpose.msra.mxu0 %v2061
        %2095 = vmatprep.subr.mxu0 0.0
        %2096 = vmatpush1.xpose.msra.mxu0 %v2063
        %2097 = vmatprep.subr.mxu0 0.0
        %2098 = vmatpush1.xpose.msra.mxu0 %v2065
        %2099 = vmatprep.subr.mxu0 0.0
        %2100 = vmatpush1.xpose.msra.mxu0 %v2067
        %2101 = vmatprep.subr.mxu0 0.0
        %2102 = vmatpush1.xpose.msra.mxu0 %v2069
        %2103 = vmatprep.subr.mxu0 0.0
        %2104 = vmatpush1.xpose.msra.mxu0 %v2071
        %2105 = vmatprep.subr.mxu0 0.0
        %2106 = vmatpush1.xpose.msra.mxu0 %v2073
        %2107 = vmatprep.subr.mxu0 0.0
        %2108 = vmatpush1.xpose.msra.mxu0 %v2075
        %2109 = vmatprep.subr.mxu0 0.0
        %2110 = vmatpush1.xpose.msra.mxu0 0.0
        %2111 = vmatprep.subr.mxu0 0.0
        %2112 = vmatpush1.xpose.msra.mxu0 0.0
        %2113 = vmatprep.subr.mxu0 0.0
        %2114 = vmatpush1.xpose.msra.mxu0 0.0
        %2115 = vmatprep.subr.mxu0 0.0
        %2116 = vmatpush1.xpose.msra.mxu0 0.0
        %2117 = vmatprep.subr.mxu0 0.0
        %2118 = vmatpush1.xpose.msra.mxu0 0.0
        %2119 = vmatprep.subr.mxu0 0.0
        %2120 = vmatpush1.xpose.msra.mxu0 0.0
        %2121 = vmatprep.subr.mxu0 0.0
        %2122 = vmatpush1.xpose.msra.mxu0 0.0
        %2123 = vmatprep.subr.mxu0 0.0
        %2124 = vmatpush1.xpose.msra.mxu0 0.0
        %2125 = vmatprep.subr.mxu0 0.0
        %2126 = vmatpush1.xpose.msra.mxu0 0.0
        %2127 = vmatprep.subr.mxu0 0.0
        %2128 = vmatpush1.xpose.msra.mxu0 0.0
        %2129 = vmatprep.subr.mxu0 0.0
        %2130 = vmatpush1.xpose.msra.mxu0 0.0
        %2131 = vmatprep.subr.mxu0 0.0
        %2132 = vmatpush1.xpose.msra.mxu0 0.0
        %2133 = vmatprep.subr.mxu0 0.0
        %2134 = vmatpush1.xpose.msra.mxu0 0.0
        %2135 = vmatprep.subr.mxu0 0.0
        %2136 = vmatpush1.xpose.msra.mxu0 0.0
        %2137 = vmatprep.subr.mxu0 0.0
        %2138 = vmatpush1.xpose.msra.mxu0 0.0
        %2139 = vmatprep.subr.mxu0 0.0
        %2140 = vmatpush1.xpose.msra.mxu0 0.0
        %2141 = vmatprep.mubr.f32.mxu0 0.0
        %2142 = vmatmul.mubr.f32.gmra.mrb[0].mxu0 %v2043
        %v2143 = vpop.f32.mrb[0].mxu0
        %v2144 = vadd.f32 0.0, %v2143
        %v2145 = vpop.f32.mrb[0].mxu0
        %2146 = vdwg.mxu0
        %v2147 = vsel %vm474, %v2039, 0
        %v2149 = vsel %vm474, %v2007, 0
        %v2151 = vsel %vm474, %v2008, 0
        %v2153 = vsel %vm474, %v2009, 0
        %v2155 = vsel %vm474, %v2010, 0
        %v2157 = vsel %vm474, %v2011, 0
        %v2159 = vsel %vm474, %v2012, 0
        %v2161 = vsel %vm474, %v2013, 0
        %v2163 = vsel %vm474, %v2014, 0
        %v2165 = vsel %vm474, %v2015, 0
        %v2167 = vsel %vm474, %v2016, 0
        %v2169 = vsel %vm474, %v2017, 0
        %v2171 = vsel %vm474, %v2018, 0
        %v2173 = vsel %vm474, %v2019, 0
        %v2175 = vsel %vm474, %v2020, 0
        %v2177 = vsel %vm474, %v2021, 0
        %v2179 = vsel %vm474, %v2022, 0
        %2181 = vmatprep.subr.mxu0 0.0
        %2182 = vmatpush1.xpose.msra.mxu0 %v2149
        %2183 = vmatprep.subr.mxu0 0.0
        %2184 = vmatpush1.xpose.msra.mxu0 %v2151
        %2185 = vmatprep.subr.mxu0 0.0
        %2186 = vmatpush1.xpose.msra.mxu0 %v2153
        %2187 = vmatprep.subr.mxu0 0.0
        %2188 = vmatpush1.xpose.msra.mxu0 %v2155
        %2189 = vmatprep.subr.mxu0 0.0
        %2190 = vmatpush1.xpose.msra.mxu0 %v2157
        %2191 = vmatprep.subr.mxu0 0.0
        %2192 = vmatpush1.xpose.msra.mxu0 %v2159
        %2193 = vmatprep.subr.mxu0 0.0
        %2194 = vmatpush1.xpose.msra.mxu0 %v2161
        %2195 = vmatprep.subr.mxu0 0.0
        %2196 = vmatpush1.xpose.msra.mxu0 %v2163
        %2197 = vmatprep.subr.mxu0 0.0
        %2198 = vmatpush1.xpose.msra.mxu0 %v2165
        %2199 = vmatprep.subr.mxu0 0.0
        %2200 = vmatpush1.xpose.msra.mxu0 %v2167
        %2201 = vmatprep.subr.mxu0 0.0
        %2202 = vmatpush1.xpose.msra.mxu0 %v2169
        %2203 = vmatprep.subr.mxu0 0.0
        %2204 = vmatpush1.xpose.msra.mxu0 %v2171
        %2205 = vmatprep.subr.mxu0 0.0
        %2206 = vmatpush1.xpose.msra.mxu0 %v2173
        %2207 = vmatprep.subr.mxu0 0.0
        %2208 = vmatpush1.xpose.msra.mxu0 %v2175
        %2209 = vmatprep.subr.mxu0 0.0
        %2210 = vmatpush1.xpose.msra.mxu0 %v2177
        %2211 = vmatprep.subr.mxu0 0.0
        %2212 = vmatpush1.xpose.msra.mxu0 %v2179
        %2213 = vmatprep.subr.mxu0 0.0
        %2214 = vmatpush1.xpose.msra.mxu0 0.0
        %2215 = vmatprep.subr.mxu0 0.0
        %2216 = vmatpush1.xpose.msra.mxu0 0.0
        %2217 = vmatprep.subr.mxu0 0.0
        %2218 = vmatpush1.xpose.msra.mxu0 0.0
        %2219 = vmatprep.subr.mxu0 0.0
        %2220 = vmatpush1.xpose.msra.mxu0 0.0
        %2221 = vmatprep.subr.mxu0 0.0
        %2222 = vmatpush1.xpose.msra.mxu0 0.0
        %2223 = vmatprep.subr.mxu0 0.0
        %2224 = vmatpush1.xpose.msra.mxu0 0.0
        %2225 = vmatprep.subr.mxu0 0.0
        %2226 = vmatpush1.xpose.msra.mxu0 0.0
        %2227 = vmatprep.subr.mxu0 0.0
        %2228 = vmatpush1.xpose.msra.mxu0 0.0
        %2229 = vmatprep.subr.mxu0 0.0
        %2230 = vmatpush1.xpose.msra.mxu0 0.0
        %2231 = vmatprep.subr.mxu0 0.0
        %2232 = vmatpush1.xpose.msra.mxu0 0.0
        %2233 = vmatprep.subr.mxu0 0.0
        %2234 = vmatpush1.xpose.msra.mxu0 0.0
        %2235 = vmatprep.subr.mxu0 0.0
        %2236 = vmatpush1.xpose.msra.mxu0 0.0
        %2237 = vmatprep.subr.mxu0 0.0
        %2238 = vmatpush1.xpose.msra.mxu0 0.0
        %2239 = vmatprep.subr.mxu0 0.0
        %2240 = vmatpush1.xpose.msra.mxu0 0.0
        %2241 = vmatprep.subr.mxu0 0.0
        %2242 = vmatpush1.xpose.msra.mxu0 0.0
        %2243 = vmatprep.subr.mxu0 0.0
        %2244 = vmatpush1.xpose.msra.mxu0 0.0
        %2245 = vmatprep.mubr.f32.mxu0 0.0
        %2246 = vmatmul.mubr.f32.gmra.mrb[0].mxu0 %v2147
        %v2247 = vpop.f32.mrb[0].mxu0
        %v2248 = vadd.f32 %v2144, %v2247
        %v2249 = vpop.f32.mrb[0].mxu0
        %2250 = vdwg.mxu0
        %v2251 = vsel %vm147, %v2248, 0.0
        %2252 = vst [vmem:[%s139 + $0x4] sm:$0x1] %v2251
        %s2253 = sshll.u32 %s282, 4
        %2254 = dma.done %s291, %s2253
        %s2255 = sadd.s32 %s144, 48
        %s2256 = sld [smem:[#allocation5 + %s2255]]
        %s2257 = sadd.s32 %s140, %s2256
        %s2258 = smul.addr %s2257, 16
        %s2259 = scalar_lea.hbm %s3, %s2258
        // Predicated region
        $region221: #{tpu_custom_call.1} parent=23 // pred_check
          _
        $region222: #{tpu_custom_call.1} parent=23 // pred_check_branch
          %2261 = sbr.rel target = $region224
        $region223: #{tpu_custom_call.1} parent=23 // pred_region
          %2262 = sst [smem:[#allocation13]] [#allocation110]
          %2263 = sst [smem:[#allocation14]] [#allocation109]
        $region224: #{tpu_custom_call.1} parent=23 // pred_fallthru
          _
        %2265 = shalt.err (0)
        %s2267 = sshll.u32 [#allocation2], 4
        %s2268 = int_to_ptr.vmem [resolvable:$true] %s2267
        %2270 = dma.hbm_to_vmem [thread:$0]  %s2259, 16, %s2268, [#allocation3]
        %s2271 = sadd.s32 %s144, 49
        %s2272 = sld [smem:[#allocation5 + %s2271]]
        %s2273 = sadd.s32 %s140, %s2272
        %s2274 = smul.addr %s2273, 16
        %s2275 = scalar_lea.hbm %s3, %s2274
        // Predicated region
        $region225: #{tpu_custom_call.1} parent=23 // pred_check
          _
        $region226: #{tpu_custom_call.1} parent=23 // pred_check_branch
          %2277 = sbr.rel target = $region228
        $region227: #{tpu_custom_call.1} parent=23 // pred_region
          %2278 = sst [smem:[#allocation13]] [#allocation112]
          %2279 = sst [smem:[#allocation14]] [#allocation111]
        $region228: #{tpu_custom_call.1} parent=23 // pred_fallthru
          _
        %2281 = shalt.err (0)
        %s2283 = sshll.u32 %s168, 4
        %s2284 = int_to_ptr.vmem [resolvable:$true] %s2283
        %2286 = dma.hbm_to_vmem [thread:$0]  %s2275, 16, %s2284, [#allocation3]
        %s2287 = sadd.s32 %s144, 50
        %s2288 = sld [smem:[#allocation5 + %s2287]]
        %s2289 = sadd.s32 %s140, %s2288
        %s2290 = smul.addr %s2289, 16
        %s2291 = scalar_lea.hbm %s3, %s2290
        // Predicated region
        $region229: #{tpu_custom_call.1} parent=23 // pred_check
          _
        $region230: #{tpu_custom_call.1} parent=23 // pred_check_branch
          %2293 = sbr.rel target = $region232
        $region231: #{tpu_custom_call.1} parent=23 // pred_region
          %2294 = sst [smem:[#allocation13]] [#allocation114]
          %2295 = sst [smem:[#allocation14]] [#allocation113]
        $region232: #{tpu_custom_call.1} parent=23 // pred_fallthru
          _
        %2297 = shalt.err (0)
        %s2299 = sshll.u32 %s185, 4
        %s2300 = int_to_ptr.vmem [resolvable:$true] %s2299
        %2302 = dma.hbm_to_vmem [thread:$0]  %s2291, 16, %s2300, [#allocation3]
        %s2303 = sadd.s32 %s144, 51
        %s2304 = sld [smem:[#allocation5 + %s2303]]
        %s2305 = sadd.s32 %s140, %s2304
        %s2306 = smul.addr %s2305, 16
        %s2307 = scalar_lea.hbm %s3, %s2306
        // Predicated region
        $region233: #{tpu_custom_call.1} parent=23 // pred_check
          _
        $region234: #{tpu_custom_call.1} parent=23 // pred_check_branch
          %2309 = sbr.rel target = $region236
        $region235: #{tpu_custom_call.1} parent=23 // pred_region
          %2310 = sst [smem:[#allocation13]] [#allocation116]
          %2311 = sst [smem:[#allocation14]] [#allocation115]
        $region236: #{tpu_custom_call.1} parent=23 // pred_fallthru
          _
        %2313 = shalt.err (0)
        %s2315 = sshll.u32 %s202, 4
        %s2316 = int_to_ptr.vmem [resolvable:$true] %s2315
        %2318 = dma.hbm_to_vmem [thread:$0]  %s2307, 16, %s2316, [#allocation3]
        %s2319 = sadd.s32 %s144, 52
        %s2320 = sld [smem:[#allocation5 + %s2319]]
        %s2321 = sadd.s32 %s140, %s2320
        %s2322 = smul.addr %s2321, 16
        %s2323 = scalar_lea.hbm %s3, %s2322
        // Predicated region
        $region237: #{tpu_custom_call.1} parent=23 // pred_check
          _
        $region238: #{tpu_custom_call.1} parent=23 // pred_check_branch
          %2325 = sbr.rel target = $region240
        $region239: #{tpu_custom_call.1} parent=23 // pred_region
          %2326 = sst [smem:[#allocation13]] [#allocation118]
          %2327 = sst [smem:[#allocation14]] [#allocation117]
        $region240: #{tpu_custom_call.1} parent=23 // pred_fallthru
          _
        %2329 = shalt.err (0)
        %s2331 = sshll.u32 %s219, 4
        %s2332 = int_to_ptr.vmem [resolvable:$true] %s2331
        %2334 = dma.hbm_to_vmem [thread:$0]  %s2323, 16, %s2332, [#allocation3]
        %s2335 = sadd.s32 %s144, 53
        %s2336 = sld [smem:[#allocation5 + %s2335]]
        %s2337 = sadd.s32 %s140, %s2336
        %s2338 = smul.addr %s2337, 16
        %s2339 = scalar_lea.hbm %s3, %s2338
        // Predicated region
        $region241: #{tpu_custom_call.1} parent=23 // pred_check
          _
        $region242: #{tpu_custom_call.1} parent=23 // pred_check_branch
          %2341 = sbr.rel target = $region244
        $region243: #{tpu_custom_call.1} parent=23 // pred_region
          %2342 = sst [smem:[#allocation13]] [#allocation120]
          %2343 = sst [smem:[#allocation14]] [#allocation119]
        $region244: #{tpu_custom_call.1} parent=23 // pred_fallthru
          _
        %2345 = shalt.err (0)
        %s2347 = sshll.u32 %s236, 4
        %s2348 = int_to_ptr.vmem [resolvable:$true] %s2347
        %2350 = dma.hbm_to_vmem [thread:$0]  %s2339, 16, %s2348, [#allocation3]
        %s2351 = sadd.s32 %s144, 54
        %s2352 = sld [smem:[#allocation5 + %s2351]]
        %s2353 = sadd.s32 %s140, %s2352
        %s2354 = smul.addr %s2353, 16
        %s2355 = scalar_lea.hbm %s3, %s2354
        // Predicated region
        $region245: #{tpu_custom_call.1} parent=23 // pred_check
          _
        $region246: #{tpu_custom_call.1} parent=23 // pred_check_branch
          %2357 = sbr.rel target = $region248
        $region247: #{tpu_custom_call.1} parent=23 // pred_region
          %2358 = sst [smem:[#allocation13]] [#allocation122]
          %2359 = sst [smem:[#allocation14]] [#allocation121]
        $region248: #{tpu_custom_call.1} parent=23 // pred_fallthru
          _
        %2361 = shalt.err (0)
        %s2363 = sshll.u32 %s253, 4
        %s2364 = int_to_ptr.vmem [resolvable:$true] %s2363
        %2366 = dma.hbm_to_vmem [thread:$0]  %s2355, 16, %s2364, [#allocation3]
        %s2367 = sadd.s32 %s144, 55
        %s2368 = sld [smem:[#allocation5 + %s2367]]
        %s2369 = sadd.s32 %s140, %s2368
        %s2370 = smul.addr %s2369, 16
        %s2371 = scalar_lea.hbm %s3, %s2370
        // Predicated region
        $region249: #{tpu_custom_call.1} parent=23 // pred_check
          _
        $region250: #{tpu_custom_call.1} parent=23 // pred_check_branch
          %2373 = sbr.rel target = $region252
        $region251: #{tpu_custom_call.1} parent=23 // pred_region
          %2374 = sst [smem:[#allocation13]] [#allocation124]
          %2375 = sst [smem:[#allocation14]] [#allocation123]
        $region252: #{tpu_custom_call.1} parent=23 // pred_fallthru
          _
        %2377 = shalt.err (0)
        %s2379 = sshll.u32 %s270, 4
        %s2380 = int_to_ptr.vmem [resolvable:$true] %s2379
        %2382 = dma.hbm_to_vmem [thread:$0]  %s2371, 16, %s2380, [#allocation3]
        %v2383 = vld [vmem:[#allocation2 + $0x80] sm:$0xff]
        %v2384 = vld [vmem:[#allocation2 + $0x88] sm:$0xff]
        %v2385 = vld [vmem:[#allocation2 + $0x90] sm:$0xff]
        %v2386 = vld [vmem:[#allocation2 + $0x98] sm:$0xff]
        %v2387 = vld [vmem:[#allocation2 + $0xa0] sm:$0xff]
        %v2388 = vld [vmem:[#allocation2 + $0xa8] sm:$0xff]
        %v2389 = vld [vmem:[#allocation2 + $0xb0] sm:$0xff]
        %v2390 = vld [vmem:[#allocation2 + $0xb8] sm:$0xff]
        %v2391 = vld [vmem:[#allocation2 + $0xc0] sm:$0xff]
        %v2392 = vld [vmem:[#allocation2 + $0xc8] sm:$0xff]
        %v2393 = vld [vmem:[#allocation2 + $0xd0] sm:$0xff]
        %v2394 = vld [vmem:[#allocation2 + $0xd8] sm:$0xff]
        %v2395 = vld [vmem:[#allocation2 + $0xe0] sm:$0xff]
        %v2396 = vld [vmem:[#allocation2 + $0xe8] sm:$0xff]
        %v2397 = vld [vmem:[#allocation2 + $0xf0] sm:$0xff]
        %v2398 = vld [vmem:[#allocation2 + $0xf8] sm:$0xff]
        %v2399 = vshll.u32 %v2383, 16
        %v2400 = vshll.u32 %v2384, 16
        %v2401 = vshll.u32 %v2385, 16
        %v2402 = vshll.u32 %v2386, 16
        %v2403 = vshll.u32 %v2387, 16
        %v2404 = vshll.u32 %v2388, 16
        %v2405 = vshll.u32 %v2389, 16
        %v2406 = vshll.u32 %v2390, 16
        %v2407 = vshll.u32 %v2391, 16
        %v2408 = vshll.u32 %v2392, 16
        %v2409 = vshll.u32 %v2393, 16
        %v2410 = vshll.u32 %v2394, 16
        %v2411 = vshll.u32 %v2395, 16
        %v2412 = vshll.u32 %v2396, 16
        %v2413 = vshll.u32 %v2397, 16
        %v2414 = vshll.u32 %v2398, 16
        %v2415 = vand.u32 %v2383, 4294901760
        %v2416 = vand.u32 %v2384, 4294901760
        %v2417 = vand.u32 %v2385, 4294901760
        %v2418 = vand.u32 %v2386, 4294901760
        %v2419 = vand.u32 %v2387, 4294901760
        %v2420 = vand.u32 %v2388, 4294901760
        %v2421 = vand.u32 %v2389, 4294901760
        %v2422 = vand.u32 %v2390, 4294901760
        %v2423 = vand.u32 %v2391, 4294901760
        %v2424 = vand.u32 %v2392, 4294901760
        %v2425 = vand.u32 %v2393, 4294901760
        %v2426 = vand.u32 %v2394, 4294901760
        %v2427 = vand.u32 %v2395, 4294901760
        %v2428 = vand.u32 %v2396, 4294901760
        %v2429 = vand.u32 %v2397, 4294901760
        %v2430 = vand.u32 %v2398, 4294901760
        %v2431 = vld [vmem:[#allocation7 + $0x5] sm:$0x1]
        %2433 = vrot.lane.b32.xlu0 %v2431, 64
        %v2434 = vpop.permute.xlu0 %2433
        %v2435 = vsel %vm474, %v2434, 0
        %v2437 = vsel %vm474, %v2415, 0
        %v2439 = vsel %vm474, %v2416, 0
        %v2441 = vsel %vm474, %v2417, 0
        %v2443 = vsel %vm474, %v2418, 0
        %v2445 = vsel %vm474, %v2419, 0
        %v2447 = vsel %vm474, %v2420, 0
        %v2449 = vsel %vm474, %v2421, 0
        %v2451 = vsel %vm474, %v2422, 0
        %v2453 = vsel %vm474, %v2423, 0
        %v2455 = vsel %vm474, %v2424, 0
        %v2457 = vsel %vm474, %v2425, 0
        %v2459 = vsel %vm474, %v2426, 0
        %v2461 = vsel %vm474, %v2427, 0
        %v2463 = vsel %vm474, %v2428, 0
        %v2465 = vsel %vm474, %v2429, 0
        %v2467 = vsel %vm474, %v2430, 0
        %2469 = vmatprep.subr.mxu0 0.0
        %2470 = vmatpush1.xpose.msra.mxu0 %v2437
        %2471 = vmatprep.subr.mxu0 0.0
        %2472 = vmatpush1.xpose.msra.mxu0 %v2439
        %2473 = vmatprep.subr.mxu0 0.0
        %2474 = vmatpush1.xpose.msra.mxu0 %v2441
        %2475 = vmatprep.subr.mxu0 0.0
        %2476 = vmatpush1.xpose.msra.mxu0 %v2443
        %2477 = vmatprep.subr.mxu0 0.0
        %2478 = vmatpush1.xpose.msra.mxu0 %v2445
        %2479 = vmatprep.subr.mxu0 0.0
        %2480 = vmatpush1.xpose.msra.mxu0 %v2447
        %2481 = vmatprep.subr.mxu0 0.0
        %2482 = vmatpush1.xpose.msra.mxu0 %v2449
        %2483 = vmatprep.subr.mxu0 0.0
        %2484 = vmatpush1.xpose.msra.mxu0 %v2451
        %2485 = vmatprep.subr.mxu0 0.0
        %2486 = vmatpush1.xpose.msra.mxu0 %v2453
        %2487 = vmatprep.subr.mxu0 0.0
        %2488 = vmatpush1.xpose.msra.mxu0 %v2455
        %2489 = vmatprep.subr.mxu0 0.0
        %2490 = vmatpush1.xpose.msra.mxu0 %v2457
        %2491 = vmatprep.subr.mxu0 0.0
        %2492 = vmatpush1.xpose.msra.mxu0 %v2459
        %2493 = vmatprep.subr.mxu0 0.0
        %2494 = vmatpush1.xpose.msra.mxu0 %v2461
        %2495 = vmatprep.subr.mxu0 0.0
        %2496 = vmatpush1.xpose.msra.mxu0 %v2463
        %2497 = vmatprep.subr.mxu0 0.0
        %2498 = vmatpush1.xpose.msra.mxu0 %v2465
        %2499 = vmatprep.subr.mxu0 0.0
        %2500 = vmatpush1.xpose.msra.mxu0 %v2467
        %2501 = vmatprep.subr.mxu0 0.0
        %2502 = vmatpush1.xpose.msra.mxu0 0.0
        %2503 = vmatprep.subr.mxu0 0.0
        %2504 = vmatpush1.xpose.msra.mxu0 0.0
        %2505 = vmatprep.subr.mxu0 0.0
        %2506 = vmatpush1.xpose.msra.mxu0 0.0
        %2507 = vmatprep.subr.mxu0 0.0
        %2508 = vmatpush1.xpose.msra.mxu0 0.0
        %2509 = vmatprep.subr.mxu0 0.0
        %2510 = vmatpush1.xpose.msra.mxu0 0.0
        %2511 = vmatprep.subr.mxu0 0.0
        %2512 = vmatpush1.xpose.msra.mxu0 0.0
        %2513 = vmatprep.subr.mxu0 0.0
        %2514 = vmatpush1.xpose.msra.mxu0 0.0
        %2515 = vmatprep.subr.mxu0 0.0
        %2516 = vmatpush1.xpose.msra.mxu0 0.0
        %2517 = vmatprep.subr.mxu0 0.0
        %2518 = vmatpush1.xpose.msra.mxu0 0.0
        %2519 = vmatprep.subr.mxu0 0.0
        %2520 = vmatpush1.xpose.msra.mxu0 0.0
        %2521 = vmatprep.subr.mxu0 0.0
        %2522 = vmatpush1.xpose.msra.mxu0 0.0
        %2523 = vmatprep.subr.mxu0 0.0
        %2524 = vmatpush1.xpose.msra.mxu0 0.0
        %2525 = vmatprep.subr.mxu0 0.0
        %2526 = vmatpush1.xpose.msra.mxu0 0.0
        %2527 = vmatprep.subr.mxu0 0.0
        %2528 = vmatpush1.xpose.msra.mxu0 0.0
        %2529 = vmatprep.subr.mxu0 0.0
        %2530 = vmatpush1.xpose.msra.mxu0 0.0
        %2531 = vmatprep.subr.mxu0 0.0
        %2532 = vmatpush1.xpose.msra.mxu0 0.0
        %2533 = vmatprep.mubr.f32.mxu0 0.0
        %2534 = vmatmul.mubr.f32.gmra.mrb[0].mxu0 %v2435
        %v2535 = vpop.f32.mrb[0].mxu0
        %v2536 = vadd.f32 0.0, %v2535
        %v2537 = vpop.f32.mrb[0].mxu0
        %2538 = vdwg.mxu0
        %v2539 = vsel %vm474, %v2431, 0
        %v2541 = vsel %vm474, %v2399, 0
        %v2543 = vsel %vm474, %v2400, 0
        %v2545 = vsel %vm474, %v2401, 0
        %v2547 = vsel %vm474, %v2402, 0
        %v2549 = vsel %vm474, %v2403, 0
        %v2551 = vsel %vm474, %v2404, 0
        %v2553 = vsel %vm474, %v2405, 0
        %v2555 = vsel %vm474, %v2406, 0
        %v2557 = vsel %vm474, %v2407, 0
        %v2559 = vsel %vm474, %v2408, 0
        %v2561 = vsel %vm474, %v2409, 0
        %v2563 = vsel %vm474, %v2410, 0
        %v2565 = vsel %vm474, %v2411, 0
        %v2567 = vsel %vm474, %v2412, 0
        %v2569 = vsel %vm474, %v2413, 0
        %v2571 = vsel %vm474, %v2414, 0
        %2573 = vmatprep.subr.mxu0 0.0
        %2574 = vmatpush1.xpose.msra.mxu0 %v2541
        %2575 = vmatprep.subr.mxu0 0.0
        %2576 = vmatpush1.xpose.msra.mxu0 %v2543
        %2577 = vmatprep.subr.mxu0 0.0
        %2578 = vmatpush1.xpose.msra.mxu0 %v2545
        %2579 = vmatprep.subr.mxu0 0.0
        %2580 = vmatpush1.xpose.msra.mxu0 %v2547
        %2581 = vmatprep.subr.mxu0 0.0
        %2582 = vmatpush1.xpose.msra.mxu0 %v2549
        %2583 = vmatprep.subr.mxu0 0.0
        %2584 = vmatpush1.xpose.msra.mxu0 %v2551
        %2585 = vmatprep.subr.mxu0 0.0
        %2586 = vmatpush1.xpose.msra.mxu0 %v2553
        %2587 = vmatprep.subr.mxu0 0.0
        %2588 = vmatpush1.xpose.msra.mxu0 %v2555
        %2589 = vmatprep.subr.mxu0 0.0
        %2590 = vmatpush1.xpose.msra.mxu0 %v2557
        %2591 = vmatprep.subr.mxu0 0.0
        %2592 = vmatpush1.xpose.msra.mxu0 %v2559
        %2593 = vmatprep.subr.mxu0 0.0
        %2594 = vmatpush1.xpose.msra.mxu0 %v2561
        %2595 = vmatprep.subr.mxu0 0.0
        %2596 = vmatpush1.xpose.msra.mxu0 %v2563
        %2597 = vmatprep.subr.mxu0 0.0
        %2598 = vmatpush1.xpose.msra.mxu0 %v2565
        %2599 = vmatprep.subr.mxu0 0.0
        %2600 = vmatpush1.xpose.msra.mxu0 %v2567
        %2601 = vmatprep.subr.mxu0 0.0
        %2602 = vmatpush1.xpose.msra.mxu0 %v2569
        %2603 = vmatprep.subr.mxu0 0.0
        %2604 = vmatpush1.xpose.msra.mxu0 %v2571
        %2605 = vmatprep.subr.mxu0 0.0
        %2606 = vmatpush1.xpose.msra.mxu0 0.0
        %2607 = vmatprep.subr.mxu0 0.0
        %2608 = vmatpush1.xpose.msra.mxu0 0.0
        %2609 = vmatprep.subr.mxu0 0.0
        %2610 = vmatpush1.xpose.msra.mxu0 0.0
        %2611 = vmatprep.subr.mxu0 0.0
        %2612 = vmatpush1.xpose.msra.mxu0 0.0
        %2613 = vmatprep.subr.mxu0 0.0
        %2614 = vmatpush1.xpose.msra.mxu0 0.0
        %2615 = vmatprep.subr.mxu0 0.0
        %2616 = vmatpush1.xpose.msra.mxu0 0.0
        %2617 = vmatprep.subr.mxu0 0.0
        %2618 = vmatpush1.xpose.msra.mxu0 0.0
        %2619 = vmatprep.subr.mxu0 0.0
        %2620 = vmatpush1.xpose.msra.mxu0 0.0
        %2621 = vmatprep.subr.mxu0 0.0
        %2622 = vmatpush1.xpose.msra.mxu0 0.0
        %2623 = vmatprep.subr.mxu0 0.0
        %2624 = vmatpush1.xpose.msra.mxu0 0.0
        %2625 = vmatprep.subr.mxu0 0.0
        %2626 = vmatpush1.xpose.msra.mxu0 0.0
        %2627 = vmatprep.subr.mxu0 0.0
        %2628 = vmatpush1.xpose.msra.mxu0 0.0
        %2629 = vmatprep.subr.mxu0 0.0
        %2630 = vmatpush1.xpose.msra.mxu0 0.0
        %2631 = vmatprep.subr.mxu0 0.0
        %2632 = vmatpush1.xpose.msra.mxu0 0.0
        %2633 = vmatprep.subr.mxu0 0.0
        %2634 = vmatpush1.xpose.msra.mxu0 0.0
        %2635 = vmatprep.subr.mxu0 0.0
        %2636 = vmatpush1.xpose.msra.mxu0 0.0
        %2637 = vmatprep.mubr.f32.mxu0 0.0
        %2638 = vmatmul.mubr.f32.gmra.mrb[0].mxu0 %v2539
        %v2639 = vpop.f32.mrb[0].mxu0
        %v2640 = vadd.f32 %v2536, %v2639
        %v2641 = vpop.f32.mrb[0].mxu0
        %2642 = vdwg.mxu0
        %v2643 = vsel %vm147, %v2640, 0.0
        %2644 = vst [vmem:[%s139 + $0x5] sm:$0x1] %v2643
        %s2645 = sshll.u32 %s282, 4
        %2646 = dma.done [#allocation3], %s2645
        %s2647 = sadd.s32 %s144, 56
        %s2648 = sld [smem:[#allocation5 + %s2647]]
        %s2649 = sadd.s32 %s140, %s2648
        %s2650 = smul.addr %s2649, 16
        %s2651 = scalar_lea.hbm %s3, %s2650
        // Predicated region
        $region253: #{tpu_custom_call.1} parent=23 // pred_check
          _
        $region254: #{tpu_custom_call.1} parent=23 // pred_check_branch
          %2653 = sbr.rel target = $region256
        $region255: #{tpu_custom_call.1} parent=23 // pred_region
          %2654 = sst [smem:[#allocation13]] [#allocation126]
          %2655 = sst [smem:[#allocation14]] [#allocation125]
        $region256: #{tpu_custom_call.1} parent=23 // pred_fallthru
          _
        %2657 = shalt.err (0)
        %s2659 = sshll.u32 %s290, 4
        %s2660 = int_to_ptr.vmem [resolvable:$true] %s2659
        %2662 = dma.hbm_to_vmem [thread:$0]  %s2651, 16, %s2660, %s291
        %s2663 = sadd.s32 %s144, 57
        %s2664 = sld [smem:[#allocation5 + %s2663]]
        %s2665 = sadd.s32 %s140, %s2664
        %s2666 = smul.addr %s2665, 16
        %s2667 = scalar_lea.hbm %s3, %s2666
        // Predicated region
        $region257: #{tpu_custom_call.1} parent=23 // pred_check
          _
        $region258: #{tpu_custom_call.1} parent=23 // pred_check_branch
          %2669 = sbr.rel target = $region260
        $region259: #{tpu_custom_call.1} parent=23 // pred_region
          %2670 = sst [smem:[#allocation13]] [#allocation128]
          %2671 = sst [smem:[#allocation14]] [#allocation127]
        $region260: #{tpu_custom_call.1} parent=23 // pred_fallthru
          _
        %2673 = shalt.err (0)
        %s2675 = sshll.u32 %s308, 4
        %s2676 = int_to_ptr.vmem [resolvable:$true] %s2675
        %2678 = dma.hbm_to_vmem [thread:$0]  %s2667, 16, %s2676, %s291
        %s2679 = sadd.s32 %s144, 58
        %s2680 = sld [smem:[#allocation5 + %s2679]]
        %s2681 = sadd.s32 %s140, %s2680
        %s2682 = smul.addr %s2681, 16
        %s2683 = scalar_lea.hbm %s3, %s2682
        // Predicated region
        $region261: #{tpu_custom_call.1} parent=23 // pred_check
          _
        $region262: #{tpu_custom_call.1} parent=23 // pred_check_branch
          %2685 = sbr.rel target = $region264
        $region263: #{tpu_custom_call.1} parent=23 // pred_region
          %2686 = sst [smem:[#allocation13]] [#allocation130]
          %2687 = sst [smem:[#allocation14]] [#allocation129]
        $region264: #{tpu_custom_call.1} parent=23 // pred_fallthru
          _
        %2689 = shalt.err (0)
        %s2691 = sshll.u32 %s325, 4
        %s2692 = int_to_ptr.vmem [resolvable:$true] %s2691
        %2694 = dma.hbm_to_vmem [thread:$0]  %s2683, 16, %s2692, %s291
        %s2695 = sadd.s32 %s144, 59
        %s2696 = sld [smem:[#allocation5 + %s2695]]
        %s2697 = sadd.s32 %s140, %s2696
        %s2698 = smul.addr %s2697, 16
        %s2699 = scalar_lea.hbm %s3, %s2698
        // Predicated region
        $region265: #{tpu_custom_call.1} parent=23 // pred_check
          _
        $region266: #{tpu_custom_call.1} parent=23 // pred_check_branch
          %2701 = sbr.rel target = $region268
        $region267: #{tpu_custom_call.1} parent=23 // pred_region
          %2702 = sst [smem:[#allocation13]] [#allocation132]
          %2703 = sst [smem:[#allocation14]] [#allocation131]
        $region268: #{tpu_custom_call.1} parent=23 // pred_fallthru
          _
        %2705 = shalt.err (0)
        %s2707 = sshll.u32 %s342, 4
        %s2708 = int_to_ptr.vmem [resolvable:$true] %s2707
        %2710 = dma.hbm_to_vmem [thread:$0]  %s2699, 16, %s2708, %s291
        %s2711 = sadd.s32 %s144, 60
        %s2712 = sld [smem:[#allocation5 + %s2711]]
        %s2713 = sadd.s32 %s140, %s2712
        %s2714 = smul.addr %s2713, 16
        %s2715 = scalar_lea.hbm %s3, %s2714
        // Predicated region
        $region269: #{tpu_custom_call.1} parent=23 // pred_check
          _
        $region270: #{tpu_custom_call.1} parent=23 // pred_check_branch
          %2717 = sbr.rel target = $region272
        $region271: #{tpu_custom_call.1} parent=23 // pred_region
          %2718 = sst [smem:[#allocation13]] [#allocation134]
          %2719 = sst [smem:[#allocation14]] [#allocation133]
        $region272: #{tpu_custom_call.1} parent=23 // pred_fallthru
          _
        %2721 = shalt.err (0)
        %s2723 = sshll.u32 %s359, 4
        %s2724 = int_to_ptr.vmem [resolvable:$true] %s2723
        %2726 = dma.hbm_to_vmem [thread:$0]  %s2715, 16, %s2724, %s291
        %s2727 = sadd.s32 %s144, 61
        %s2728 = sld [smem:[#allocation5 + %s2727]]
        %s2729 = sadd.s32 %s140, %s2728
        %s2730 = smul.addr %s2729, 16
        %s2731 = scalar_lea.hbm %s3, %s2730
        // Predicated region
        $region273: #{tpu_custom_call.1} parent=23 // pred_check
          _
        $region274: #{tpu_custom_call.1} parent=23 // pred_check_branch
          %2733 = sbr.rel target = $region276
        $region275: #{tpu_custom_call.1} parent=23 // pred_region
          %2734 = sst [smem:[#allocation13]] [#allocation136]
          %2735 = sst [smem:[#allocation14]] [#allocation135]
        $region276: #{tpu_custom_call.1} parent=23 // pred_fallthru
          _
        %2737 = shalt.err (0)
        %s2739 = sshll.u32 %s376, 4
        %s2740 = int_to_ptr.vmem [resolvable:$true] %s2739
        %2742 = dma.hbm_to_vmem [thread:$0]  %s2731, 16, %s2740, %s291
        %s2743 = sadd.s32 %s144, 62
        %s2744 = sld [smem:[#allocation5 + %s2743]]
        %s2745 = sadd.s32 %s140, %s2744
        %s2746 = smul.addr %s2745, 16
        %s2747 = scalar_lea.hbm %s3, %s2746
        // Predicated region
        $region277: #{tpu_custom_call.1} parent=23 // pred_check
          _
        $region278: #{tpu_custom_call.1} parent=23 // pred_check_branch
          %2749 = sbr.rel target = $region280
        $region279: #{tpu_custom_call.1} parent=23 // pred_region
          %2750 = sst [smem:[#allocation13]] [#allocation138]
          %2751 = sst [smem:[#allocation14]] [#allocation137]
        $region280: #{tpu_custom_call.1} parent=23 // pred_fallthru
          _
        %2753 = shalt.err (0)
        %s2755 = sshll.u32 %s393, 4
        %s2756 = int_to_ptr.vmem [resolvable:$true] %s2755
        %2758 = dma.hbm_to_vmem [thread:$0]  %s2747, 16, %s2756, %s291
        %s2759 = sadd.s32 %s144, 63
        %s2760 = sld [smem:[#allocation5 + %s2759]]
        %s2761 = sadd.s32 %s140, %s2760
        %s2762 = smul.addr %s2761, 16
        %s2763 = scalar_lea.hbm %s3, %s2762
        // Predicated region
        $region281: #{tpu_custom_call.1} parent=23 // pred_check
          _
        $region282: #{tpu_custom_call.1} parent=23 // pred_check_branch
          %2765 = sbr.rel target = $region284
        $region283: #{tpu_custom_call.1} parent=23 // pred_region
          %2766 = sst [smem:[#allocation13]] [#allocation140]
          %2767 = sst [smem:[#allocation14]] [#allocation139]
        $region284: #{tpu_custom_call.1} parent=23 // pred_fallthru
          _
        %2769 = shalt.err (0)
        %s2771 = sshll.u32 %s410, 4
        %s2772 = int_to_ptr.vmem [resolvable:$true] %s2771
        %2774 = dma.hbm_to_vmem [thread:$0]  %s2763, 16, %s2772, %s291
        %v2775 = vld [vmem:[#allocation2] sm:$0xff]
        %v2776 = vld [vmem:[#allocation2 + $0x8] sm:$0xff]
        %v2777 = vld [vmem:[#allocation2 + $0x10] sm:$0xff]
        %v2778 = vld [vmem:[#allocation2 + $0x18] sm:$0xff]
        %v2779 = vld [vmem:[#allocation2 + $0x20] sm:$0xff]
        %v2780 = vld [vmem:[#allocation2 + $0x28] sm:$0xff]
        %v2781 = vld [vmem:[#allocation2 + $0x30] sm:$0xff]
        %v2782 = vld [vmem:[#allocation2 + $0x38] sm:$0xff]
        %v2783 = vld [vmem:[#allocation2 + $0x40] sm:$0xff]
        %v2784 = vld [vmem:[#allocation2 + $0x48] sm:$0xff]
        %v2785 = vld [vmem:[#allocation2 + $0x50] sm:$0xff]
        %v2786 = vld [vmem:[#allocation2 + $0x58] sm:$0xff]
        %v2787 = vld [vmem:[#allocation2 + $0x60] sm:$0xff]
        %v2788 = vld [vmem:[#allocation2 + $0x68] sm:$0xff]
        %v2789 = vld [vmem:[#allocation2 + $0x70] sm:$0xff]
        %v2790 = vld [vmem:[#allocation2 + $0x78] sm:$0xff]
        %v2791 = vshll.u32 %v2775, 16
        %v2792 = vshll.u32 %v2776, 16
        %v2793 = vshll.u32 %v2777, 16
        %v2794 = vshll.u32 %v2778, 16
        %v2795 = vshll.u32 %v2779, 16
        %v2796 = vshll.u32 %v2780, 16
        %v2797 = vshll.u32 %v2781, 16
        %v2798 = vshll.u32 %v2782, 16
        %v2799 = vshll.u32 %v2783, 16
        %v2800 = vshll.u32 %v2784, 16
        %v2801 = vshll.u32 %v2785, 16
        %v2802 = vshll.u32 %v2786, 16
        %v2803 = vshll.u32 %v2787, 16
        %v2804 = vshll.u32 %v2788, 16
        %v2805 = vshll.u32 %v2789, 16
        %v2806 = vshll.u32 %v2790, 16
        %v2807 = vand.u32 %v2775, 4294901760
        %v2808 = vand.u32 %v2776, 4294901760
        %v2809 = vand.u32 %v2777, 4294901760
        %v2810 = vand.u32 %v2778, 4294901760
        %v2811 = vand.u32 %v2779, 4294901760
        %v2812 = vand.u32 %v2780, 4294901760
        %v2813 = vand.u32 %v2781, 4294901760
        %v2814 = vand.u32 %v2782, 4294901760
        %v2815 = vand.u32 %v2783, 4294901760
        %v2816 = vand.u32 %v2784, 4294901760
        %v2817 = vand.u32 %v2785, 4294901760
        %v2818 = vand.u32 %v2786, 4294901760
        %v2819 = vand.u32 %v2787, 4294901760
        %v2820 = vand.u32 %v2788, 4294901760
        %v2821 = vand.u32 %v2789, 4294901760
        %v2822 = vand.u32 %v2790, 4294901760
        %v2823 = vld [vmem:[#allocation7 + $0x6] sm:$0x1]
        %2825 = vrot.lane.b32.xlu0 %v2823, 64
        %v2826 = vpop.permute.xlu0 %2825
        %v2827 = vsel %vm474, %v2826, 0
        %v2829 = vsel %vm474, %v2807, 0
        %v2831 = vsel %vm474, %v2808, 0
        %v2833 = vsel %vm474, %v2809, 0
        %v2835 = vsel %vm474, %v2810, 0
        %v2837 = vsel %vm474, %v2811, 0
        %v2839 = vsel %vm474, %v2812, 0
        %v2841 = vsel %vm474, %v2813, 0
        %v2843 = vsel %vm474, %v2814, 0
        %v2845 = vsel %vm474, %v2815, 0
        %v2847 = vsel %vm474, %v2816, 0
        %v2849 = vsel %vm474, %v2817, 0
        %v2851 = vsel %vm474, %v2818, 0
        %v2853 = vsel %vm474, %v2819, 0
        %v2855 = vsel %vm474, %v2820, 0
        %v2857 = vsel %vm474, %v2821, 0
        %v2859 = vsel %vm474, %v2822, 0
        %2861 = vmatprep.subr.mxu0 0.0
        %2862 = vmatpush1.xpose.msra.mxu0 %v2829
        %2863 = vmatprep.subr.mxu0 0.0
        %2864 = vmatpush1.xpose.msra.mxu0 %v2831
        %2865 = vmatprep.subr.mxu0 0.0
        %2866 = vmatpush1.xpose.msra.mxu0 %v2833
        %2867 = vmatprep.subr.mxu0 0.0
        %2868 = vmatpush1.xpose.msra.mxu0 %v2835
        %2869 = vmatprep.subr.mxu0 0.0
        %2870 = vmatpush1.xpose.msra.mxu0 %v2837
        %2871 = vmatprep.subr.mxu0 0.0
        %2872 = vmatpush1.xpose.msra.mxu0 %v2839
        %2873 = vmatprep.subr.mxu0 0.0
        %2874 = vmatpush1.xpose.msra.mxu0 %v2841
        %2875 = vmatprep.subr.mxu0 0.0
        %2876 = vmatpush1.xpose.msra.mxu0 %v2843
        %2877 = vmatprep.subr.mxu0 0.0
        %2878 = vmatpush1.xpose.msra.mxu0 %v2845
        %2879 = vmatprep.subr.mxu0 0.0
        %2880 = vmatpush1.xpose.msra.mxu0 %v2847
        %2881 = vmatprep.subr.mxu0 0.0
        %2882 = vmatpush1.xpose.msra.mxu0 %v2849
        %2883 = vmatprep.subr.mxu0 0.0
        %2884 = vmatpush1.xpose.msra.mxu0 %v2851
        %2885 = vmatprep.subr.mxu0 0.0
        %2886 = vmatpush1.xpose.msra.mxu0 %v2853
        %2887 = vmatprep.subr.mxu0 0.0
        %2888 = vmatpush1.xpose.msra.mxu0 %v2855
        %2889 = vmatprep.subr.mxu0 0.0
        %2890 = vmatpush1.xpose.msra.mxu0 %v2857
        %2891 = vmatprep.subr.mxu0 0.0
        %2892 = vmatpush1.xpose.msra.mxu0 %v2859
        %2893 = vmatprep.subr.mxu0 0.0
        %2894 = vmatpush1.xpose.msra.mxu0 0.0
        %2895 = vmatprep.subr.mxu0 0.0
        %2896 = vmatpush1.xpose.msra.mxu0 0.0
        %2897 = vmatprep.subr.mxu0 0.0
        %2898 = vmatpush1.xpose.msra.mxu0 0.0
        %2899 = vmatprep.subr.mxu0 0.0
        %2900 = vmatpush1.xpose.msra.mxu0 0.0
        %2901 = vmatprep.subr.mxu0 0.0
        %2902 = vmatpush1.xpose.msra.mxu0 0.0
        %2903 = vmatprep.subr.mxu0 0.0
        %2904 = vmatpush1.xpose.msra.mxu0 0.0
        %2905 = vmatprep.subr.mxu0 0.0
        %2906 = vmatpush1.xpose.msra.mxu0 0.0
        %2907 = vmatprep.subr.mxu0 0.0
        %2908 = vmatpush1.xpose.msra.mxu0 0.0
        %2909 = vmatprep.subr.mxu0 0.0
        %2910 = vmatpush1.xpose.msra.mxu0 0.0
        %2911 = vmatprep.subr.mxu0 0.0
        %2912 = vmatpush1.xpose.msra.mxu0 0.0
        %2913 = vmatprep.subr.mxu0 0.0
        %2914 = vmatpush1.xpose.msra.mxu0 0.0
        %2915 = vmatprep.subr.mxu0 0.0
        %2916 = vmatpush1.xpose.msra.mxu0 0.0
        %2917 = vmatprep.subr.mxu0 0.0
        %2918 = vmatpush1.xpose.msra.mxu0 0.0
        %2919 = vmatprep.subr.mxu0 0.0
        %2920 = vmatpush1.xpose.msra.mxu0 0.0
        %2921 = vmatprep.subr.mxu0 0.0
        %2922 = vmatpush1.xpose.msra.mxu0 0.0
        %2923 = vmatprep.subr.mxu0 0.0
        %2924 = vmatpush1.xpose.msra.mxu0 0.0
        %2925 = vmatprep.mubr.f32.mxu0 0.0
        %2926 = vmatmul.mubr.f32.gmra.mrb[0].mxu0 %v2827
        %v2927 = vpop.f32.mrb[0].mxu0
        %v2928 = vadd.f32 0.0, %v2927
        %v2929 = vpop.f32.mrb[0].mxu0
        %2930 = vdwg.mxu0
        %v2931 = vsel %vm474, %v2823, 0
        %v2933 = vsel %vm474, %v2791, 0
        %v2935 = vsel %vm474, %v2792, 0
        %v2937 = vsel %vm474, %v2793, 0
        %v2939 = vsel %vm474, %v2794, 0
        %v2941 = vsel %vm474, %v2795, 0
        %v2943 = vsel %vm474, %v2796, 0
        %v2945 = vsel %vm474, %v2797, 0
        %v2947 = vsel %vm474, %v2798, 0
        %v2949 = vsel %vm474, %v2799, 0
        %v2951 = vsel %vm474, %v2800, 0
        %v2953 = vsel %vm474, %v2801, 0
        %v2955 = vsel %vm474, %v2802, 0
        %v2957 = vsel %vm474, %v2803, 0
        %v2959 = vsel %vm474, %v2804, 0
        %v2961 = vsel %vm474, %v2805, 0
        %v2963 = vsel %vm474, %v2806, 0
        %2965 = vmatprep.subr.mxu0 0.0
        %2966 = vmatpush1.xpose.msra.mxu0 %v2933
        %2967 = vmatprep.subr.mxu0 0.0
        %2968 = vmatpush1.xpose.msra.mxu0 %v2935
        %2969 = vmatprep.subr.mxu0 0.0
        %2970 = vmatpush1.xpose.msra.mxu0 %v2937
        %2971 = vmatprep.subr.mxu0 0.0
        %2972 = vmatpush1.xpose.msra.mxu0 %v2939
        %2973 = vmatprep.subr.mxu0 0.0
        %2974 = vmatpush1.xpose.msra.mxu0 %v2941
        %2975 = vmatprep.subr.mxu0 0.0
        %2976 = vmatpush1.xpose.msra.mxu0 %v2943
        %2977 = vmatprep.subr.mxu0 0.0
        %2978 = vmatpush1.xpose.msra.mxu0 %v2945
        %2979 = vmatprep.subr.mxu0 0.0
        %2980 = vmatpush1.xpose.msra.mxu0 %v2947
        %2981 = vmatprep.subr.mxu0 0.0
        %2982 = vmatpush1.xpose.msra.mxu0 %v2949
        %2983 = vmatprep.subr.mxu0 0.0
        %2984 = vmatpush1.xpose.msra.mxu0 %v2951
        %2985 = vmatprep.subr.mxu0 0.0
        %2986 = vmatpush1.xpose.msra.mxu0 %v2953
        %2987 = vmatprep.subr.mxu0 0.0
        %2988 = vmatpush1.xpose.msra.mxu0 %v2955
        %2989 = vmatprep.subr.mxu0 0.0
        %2990 = vmatpush1.xpose.msra.mxu0 %v2957
        %2991 = vmatprep.subr.mxu0 0.0
        %2992 = vmatpush1.xpose.msra.mxu0 %v2959
        %2993 = vmatprep.subr.mxu0 0.0
        %2994 = vmatpush1.xpose.msra.mxu0 %v2961
        %2995 = vmatprep.subr.mxu0 0.0
        %2996 = vmatpush1.xpose.msra.mxu0 %v2963
        %2997 = vmatprep.subr.mxu0 0.0
        %2998 = vmatpush1.xpose.msra.mxu0 0.0
        %2999 = vmatprep.subr.mxu0 0.0
        %3000 = vmatpush1.xpose.msra.mxu0 0.0
        %3001 = vmatprep.subr.mxu0 0.0
        %3002 = vmatpush1.xpose.msra.mxu0 0.0
        %3003 = vmatprep.subr.mxu0 0.0
        %3004 = vmatpush1.xpose.msra.mxu0 0.0
        %3005 = vmatprep.subr.mxu0 0.0
        %3006 = vmatpush1.xpose.msra.mxu0 0.0
        %3007 = vmatprep.subr.mxu0 0.0
        %3008 = vmatpush1.xpose.msra.mxu0 0.0
        %3009 = vmatprep.subr.mxu0 0.0
        %3010 = vmatpush1.xpose.msra.mxu0 0.0
        %3011 = vmatprep.subr.mxu0 0.0
        %3012 = vmatpush1.xpose.msra.mxu0 0.0
        %3013 = vmatprep.subr.mxu0 0.0
        %3014 = vmatpush1.xpose.msra.mxu0 0.0
        %3015 = vmatprep.subr.mxu0 0.0
        %3016 = vmatpush1.xpose.msra.mxu0 0.0
        %3017 = vmatprep.subr.mxu0 0.0
        %3018 = vmatpush1.xpose.msra.mxu0 0.0
        %3019 = vmatprep.subr.mxu0 0.0
        %3020 = vmatpush1.xpose.msra.mxu0 0.0
        %3021 = vmatprep.subr.mxu0 0.0
        %3022 = vmatpush1.xpose.msra.mxu0 0.0
        %3023 = vmatprep.subr.mxu0 0.0
        %3024 = vmatpush1.xpose.msra.mxu0 0.0
        %3025 = vmatprep.subr.mxu0 0.0
        %3026 = vmatpush1.xpose.msra.mxu0 0.0
        %3027 = vmatprep.subr.mxu0 0.0
        %3028 = vmatpush1.xpose.msra.mxu0 0.0
        %3029 = vmatprep.mubr.f32.mxu0 0.0
        %3030 = vmatmul.mubr.f32.gmra.mrb[0].mxu0 %v2931
        %v3031 = vpop.f32.mrb[0].mxu0
        %v3032 = vadd.f32 %v2928, %v3031
        %v3033 = vpop.f32.mrb[0].mxu0
        %3034 = vdwg.mxu0
        %v3035 = vsel %vm147, %v3032, 0.0
        %3036 = vst [vmem:[%s139 + $0x6] sm:$0x1] %v3035
        %s3037 = sshll.u32 %s282, 4
        %3038 = dma.done %s291, %s3037
        %v3039 = vld [vmem:[#allocation2 + $0x80] sm:$0xff]
        %v3040 = vld [vmem:[#allocation2 + $0x88] sm:$0xff]
        %v3041 = vld [vmem:[#allocation2 + $0x90] sm:$0xff]
        %v3042 = vld [vmem:[#allocation2 + $0x98] sm:$0xff]
        %v3043 = vld [vmem:[#allocation2 + $0xa0] sm:$0xff]
        %v3044 = vld [vmem:[#allocation2 + $0xa8] sm:$0xff]
        %v3045 = vld [vmem:[#allocation2 + $0xb0] sm:$0xff]
        %v3046 = vld [vmem:[#allocation2 + $0xb8] sm:$0xff]
        %v3047 = vld [vmem:[#allocation2 + $0xc0] sm:$0xff]
        %v3048 = vld [vmem:[#allocation2 + $0xc8] sm:$0xff]
        %v3049 = vld [vmem:[#allocation2 + $0xd0] sm:$0xff]
        %v3050 = vld [vmem:[#allocation2 + $0xd8] sm:$0xff]
        %v3051 = vld [vmem:[#allocation2 + $0xe0] sm:$0xff]
        %v3052 = vld [vmem:[#allocation2 + $0xe8] sm:$0xff]
        %v3053 = vld [vmem:[#allocation2 + $0xf0] sm:$0xff]
        %v3054 = vld [vmem:[#allocation2 + $0xf8] sm:$0xff]
        %v3055 = vshll.u32 %v3039, 16
        %v3056 = vshll.u32 %v3040, 16
        %v3057 = vshll.u32 %v3041, 16
        %v3058 = vshll.u32 %v3042, 16
        %v3059 = vshll.u32 %v3043, 16
        %v3060 = vshll.u32 %v3044, 16
        %v3061 = vshll.u32 %v3045, 16
        %v3062 = vshll.u32 %v3046, 16
        %v3063 = vshll.u32 %v3047, 16
        %v3064 = vshll.u32 %v3048, 16
        %v3065 = vshll.u32 %v3049, 16
        %v3066 = vshll.u32 %v3050, 16
        %v3067 = vshll.u32 %v3051, 16
        %v3068 = vshll.u32 %v3052, 16
        %v3069 = vshll.u32 %v3053, 16
        %v3070 = vshll.u32 %v3054, 16
        %v3071 = vand.u32 %v3039, 4294901760
        %v3072 = vand.u32 %v3040, 4294901760
        %v3073 = vand.u32 %v3041, 4294901760
        %v3074 = vand.u32 %v3042, 4294901760
        %v3075 = vand.u32 %v3043, 4294901760
        %v3076 = vand.u32 %v3044, 4294901760
        %v3077 = vand.u32 %v3045, 4294901760
        %v3078 = vand.u32 %v3046, 4294901760
        %v3079 = vand.u32 %v3047, 4294901760
        %v3080 = vand.u32 %v3048, 4294901760
        %v3081 = vand.u32 %v3049, 4294901760
        %v3082 = vand.u32 %v3050, 4294901760
        %v3083 = vand.u32 %v3051, 4294901760
        %v3084 = vand.u32 %v3052, 4294901760
        %v3085 = vand.u32 %v3053, 4294901760
        %v3086 = vand.u32 %v3054, 4294901760
        %v3087 = vld [vmem:[#allocation7 + $0x7] sm:$0x1]
        %3089 = vrot.lane.b32.xlu0 %v3087, 64
        %v3090 = vpop.permute.xlu0 %3089
        %v3091 = vsel %vm474, %v3090, 0
        %v3093 = vsel %vm474, %v3071, 0
        %v3095 = vsel %vm474, %v3072, 0
        %v3097 = vsel %vm474, %v3073, 0
        %v3099 = vsel %vm474, %v3074, 0
        %v3101 = vsel %vm474, %v3075, 0
        %v3103 = vsel %vm474, %v3076, 0
        %v3105 = vsel %vm474, %v3077, 0
        %v3107 = vsel %vm474, %v3078, 0
        %v3109 = vsel %vm474, %v3079, 0
        %v3111 = vsel %vm474, %v3080, 0
        %v3113 = vsel %vm474, %v3081, 0
        %v3115 = vsel %vm474, %v3082, 0
        %v3117 = vsel %vm474, %v3083, 0
        %v3119 = vsel %vm474, %v3084, 0
        %v3121 = vsel %vm474, %v3085, 0
        %v3123 = vsel %vm474, %v3086, 0
        %3125 = vmatprep.subr.mxu0 0.0
        %3126 = vmatpush1.xpose.msra.mxu0 %v3093
        %3127 = vmatprep.subr.mxu0 0.0
        %3128 = vmatpush1.xpose.msra.mxu0 %v3095
        %3129 = vmatprep.subr.mxu0 0.0
        %3130 = vmatpush1.xpose.msra.mxu0 %v3097
        %3131 = vmatprep.subr.mxu0 0.0
        %3132 = vmatpush1.xpose.msra.mxu0 %v3099
        %3133 = vmatprep.subr.mxu0 0.0
        %3134 = vmatpush1.xpose.msra.mxu0 %v3101
        %3135 = vmatprep.subr.mxu0 0.0
        %3136 = vmatpush1.xpose.msra.mxu0 %v3103
        %3137 = vmatprep.subr.mxu0 0.0
        %3138 = vmatpush1.xpose.msra.mxu0 %v3105
        %3139 = vmatprep.subr.mxu0 0.0
        %3140 = vmatpush1.xpose.msra.mxu0 %v3107
        %3141 = vmatprep.subr.mxu0 0.0
        %3142 = vmatpush1.xpose.msra.mxu0 %v3109
        %3143 = vmatprep.subr.mxu0 0.0
        %3144 = vmatpush1.xpose.msra.mxu0 %v3111
        %3145 = vmatprep.subr.mxu0 0.0
        %3146 = vmatpush1.xpose.msra.mxu0 %v3113
        %3147 = vmatprep.subr.mxu0 0.0
        %3148 = vmatpush1.xpose.msra.mxu0 %v3115
        %3149 = vmatprep.subr.mxu0 0.0
        %3150 = vmatpush1.xpose.msra.mxu0 %v3117
        %3151 = vmatprep.subr.mxu0 0.0
        %3152 = vmatpush1.xpose.msra.mxu0 %v3119
        %3153 = vmatprep.subr.mxu0 0.0
        %3154 = vmatpush1.xpose.msra.mxu0 %v3121
        %3155 = vmatprep.subr.mxu0 0.0
        %3156 = vmatpush1.xpose.msra.mxu0 %v3123
        %3157 = vmatprep.subr.mxu0 0.0
        %3158 = vmatpush1.xpose.msra.mxu0 0.0
        %3159 = vmatprep.subr.mxu0 0.0
        %3160 = vmatpush1.xpose.msra.mxu0 0.0
        %3161 = vmatprep.subr.mxu0 0.0
        %3162 = vmatpush1.xpose.msra.mxu0 0.0
        %3163 = vmatprep.subr.mxu0 0.0
        %3164 = vmatpush1.xpose.msra.mxu0 0.0
        %3165 = vmatprep.subr.mxu0 0.0
        %3166 = vmatpush1.xpose.msra.mxu0 0.0
        %3167 = vmatprep.subr.mxu0 0.0
        %3168 = vmatpush1.xpose.msra.mxu0 0.0
        %3169 = vmatprep.subr.mxu0 0.0
        %3170 = vmatpush1.xpose.msra.mxu0 0.0
        %3171 = vmatprep.subr.mxu0 0.0
        %3172 = vmatpush1.xpose.msra.mxu0 0.0
        %3173 = vmatprep.subr.mxu0 0.0
        %3174 = vmatpush1.xpose.msra.mxu0 0.0
        %3175 = vmatprep.subr.mxu0 0.0
        %3176 = vmatpush1.xpose.msra.mxu0 0.0
        %3177 = vmatprep.subr.mxu0 0.0
        %3178 = vmatpush1.xpose.msra.mxu0 0.0
        %3179 = vmatprep.subr.mxu0 0.0
        %3180 = vmatpush1.xpose.msra.mxu0 0.0
        %3181 = vmatprep.subr.mxu0 0.0
        %3182 = vmatpush1.xpose.msra.mxu0 0.0
        %3183 = vmatprep.subr.mxu0 0.0
        %3184 = vmatpush1.xpose.msra.mxu0 0.0
        %3185 = vmatprep.subr.mxu0 0.0
        %3186 = vmatpush1.xpose.msra.mxu0 0.0
        %3187 = vmatprep.subr.mxu0 0.0
        %3188 = vmatpush1.xpose.msra.mxu0 0.0
        %3189 = vmatprep.mubr.f32.mxu0 0.0
        %3190 = vmatmul.mubr.f32.gmra.mrb[0].mxu0 %v3091
        %v3191 = vpop.f32.mrb[0].mxu0
        %v3192 = vadd.f32 0.0, %v3191
        %v3193 = vpop.f32.mrb[0].mxu0
        %3194 = vdwg.mxu0
        %v3195 = vsel %vm474, %v3087, 0
        %v3197 = vsel %vm474, %v3055, 0
        %v3199 = vsel %vm474, %v3056, 0
        %v3201 = vsel %vm474, %v3057, 0
        %v3203 = vsel %vm474, %v3058, 0
        %v3205 = vsel %vm474, %v3059, 0
        %v3207 = vsel %vm474, %v3060, 0
        %v3209 = vsel %vm474, %v3061, 0
        %v3211 = vsel %vm474, %v3062, 0
        %v3213 = vsel %vm474, %v3063, 0
        %v3215 = vsel %vm474, %v3064, 0
        %v3217 = vsel %vm474, %v3065, 0
        %v3219 = vsel %vm474, %v3066, 0
        %v3221 = vsel %vm474, %v3067, 0
        %v3223 = vsel %vm474, %v3068, 0
        %v3225 = vsel %vm474, %v3069, 0
        %v3227 = vsel %vm474, %v3070, 0
        %3229 = vmatprep.subr.mxu0 0.0
        %3230 = vmatpush1.xpose.msra.mxu0 %v3197
        %3231 = vmatprep.subr.mxu0 0.0
        %3232 = vmatpush1.xpose.msra.mxu0 %v3199
        %3233 = vmatprep.subr.mxu0 0.0
        %3234 = vmatpush1.xpose.msra.mxu0 %v3201
        %3235 = vmatprep.subr.mxu0 0.0
        %3236 = vmatpush1.xpose.msra.mxu0 %v3203
        %3237 = vmatprep.subr.mxu0 0.0
        %3238 = vmatpush1.xpose.msra.mxu0 %v3205
        %3239 = vmatprep.subr.mxu0 0.0
        %3240 = vmatpush1.xpose.msra.mxu0 %v3207
        %3241 = vmatprep.subr.mxu0 0.0
        %3242 = vmatpush1.xpose.msra.mxu0 %v3209
        %3243 = vmatprep.subr.mxu0 0.0
        %3244 = vmatpush1.xpose.msra.mxu0 %v3211
        %3245 = vmatprep.subr.mxu0 0.0
        %3246 = vmatpush1.xpose.msra.mxu0 %v3213
        %3247 = vmatprep.subr.mxu0 0.0
        %3248 = vmatpush1.xpose.msra.mxu0 %v3215
        %3249 = vmatprep.subr.mxu0 0.0
        %3250 = vmatpush1.xpose.msra.mxu0 %v3217
        %3251 = vmatprep.subr.mxu0 0.0
        %3252 = vmatpush1.xpose.msra.mxu0 %v3219
        %3253 = vmatprep.subr.mxu0 0.0
        %3254 = vmatpush1.xpose.msra.mxu0 %v3221
        %3255 = vmatprep.subr.mxu0 0.0
        %3256 = vmatpush1.xpose.msra.mxu0 %v3223
        %3257 = vmatprep.subr.mxu0 0.0
        %3258 = vmatpush1.xpose.msra.mxu0 %v3225
        %3259 = vmatprep.subr.mxu0 0.0
        %3260 = vmatpush1.xpose.msra.mxu0 %v3227
        %3261 = vmatprep.subr.mxu0 0.0
        %3262 = vmatpush1.xpose.msra.mxu0 0.0
        %3263 = vmatprep.subr.mxu0 0.0
        %3264 = vmatpush1.xpose.msra.mxu0 0.0
        %3265 = vmatprep.subr.mxu0 0.0
        %3266 = vmatpush1.xpose.msra.mxu0 0.0
        %3267 = vmatprep.subr.mxu0 0.0
        %3268 = vmatpush1.xpose.msra.mxu0 0.0
        %3269 = vmatprep.subr.mxu0 0.0
        %3270 = vmatpush1.xpose.msra.mxu0 0.0
        %3271 = vmatprep.subr.mxu0 0.0
        %3272 = vmatpush1.xpose.msra.mxu0 0.0
        %3273 = vmatprep.subr.mxu0 0.0
        %3274 = vmatpush1.xpose.msra.mxu0 0.0
        %3275 = vmatprep.subr.mxu0 0.0
        %3276 = vmatpush1.xpose.msra.mxu0 0.0
        %3277 = vmatprep.subr.mxu0 0.0
        %3278 = vmatpush1.xpose.msra.mxu0 0.0
        %3279 = vmatprep.subr.mxu0 0.0
        %3280 = vmatpush1.xpose.msra.mxu0 0.0
        %3281 = vmatprep.subr.mxu0 0.0
        %3282 = vmatpush1.xpose.msra.mxu0 0.0
        %3283 = vmatprep.subr.mxu0 0.0
        %3284 = vmatpush1.xpose.msra.mxu0 0.0
        %3285 = vmatprep.subr.mxu0 0.0
        %3286 = vmatpush1.xpose.msra.mxu0 0.0
        %3287 = vmatprep.subr.mxu0 0.0
        %3288 = vmatpush1.xpose.msra.mxu0 0.0
        %3289 = vmatprep.subr.mxu0 0.0
        %3290 = vmatpush1.xpose.msra.mxu0 0.0
        %3291 = vmatprep.subr.mxu0 0.0
        %3292 = vmatpush1.xpose.msra.mxu0 0.0
        %3293 = vmatprep.mubr.f32.mxu0 0.0
        %3294 = vmatmul.mubr.f32.gmra.mrb[0].mxu0 %v3195
        %v3295 = vpop.f32.mrb[0].mxu0
        %v3296 = vadd.f32 %v3192, %v3295
        %v3297 = vpop.f32.mrb[0].mxu0
        %3298 = vdwg.mxu0
        %v3299 = vsel %vm147, %v3296, 0.0
        %3300 = vst [vmem:[%s139 + $0x7] sm:$0x1] %v3299
        %s3301 = sand.u32 %s75, 1
        %s3302 = scalar_lea.sflag [#allocation9], %s3301
        %s3303 = sand.u32 %s75, 1
        %s3304 = smul.addr %s3303, 8
        %s3305 = scalar_lea.vmem [#allocation10], %s3304
        // Predicated region
        $region285: #{tpu_custom_call.1} parent=23 // pred_check
          %p3306 = pneg %p85
        $region286: #{tpu_custom_call.1} parent=23 // pred_check_branch
          %3308 = sbr.rel (%p3306) target = $region288
        $region287: #{tpu_custom_call.1} parent=23 // pred_region
          %s3310 = ssub.s32 128, 128
          %3311 = vsyncadd %s3302, %s3310
          %s3312 = sadd.s32 %s31, %s32
          %s3313 = smul.addr %s3312, 128
          %s3314 = scalar_lea.hbm %s4, %s3313
          %s3316 = sshll.u32 %s3305, 4
          %s3317 = int_to_ptr.vmem [resolvable:$true] %s3316
          %3319 = dma.vmem_to_hbm [thread:$0]  %s3317, 128, %s3314, %s3302
        $region288: #{tpu_custom_call.1} parent=23 // pred_fallthru
          _
      $region24: #{tpu_custom_call.1} parent=5 // pred_fallthru
        _
      %p3320 = scmp.le.s32.totalorder 2, %s22
      // Predicated region
      $region289: #{tpu_custom_call.1} parent=5 // pred_check
        %p3321 = pneg %p3320
      $region290: #{tpu_custom_call.1} parent=5 // pred_check_branch
        %3323 = sbr.rel (%p3321) target = $region292
      $region291: #{tpu_custom_call.1} parent=5 // pred_region
        %s3324 = ssub.s32 %s22, 2
        // Predicated region
        $region293: #{tpu_custom_call.1} parent=291 // pred_check
          %p3325 = pneg %p91
        $region294: #{tpu_custom_call.1} parent=291 // pred_check_branch
          %3327 = sbr.rel (%p3325) target = $region296
        $region295: #{tpu_custom_call.1} parent=291 // pred_region
          %s3328 = sand.u32 %s76, 1
          %s3329 = scalar_lea.sflag [#allocation9], %s3328
          %s3330 = sand.u32 %s76, 1
          %s3331 = smul.addr %s3330, 8
          %s3332 = scalar_lea.vmem [#allocation10], %s3331
          %3333 = dma.done %s3329, 128
        $region296: #{tpu_custom_call.1} parent=291 // pred_fallthru
          _
      $region292: #{tpu_custom_call.1} parent=5 // pred_fallthru
        _
    $region6: #{tpu_custom_call.1} parent=1 // loop_footer
      %s26 = sadd.s32 1, %s22
    $region7: #{tpu_custom_call.1} parent=1 // loop_footer_branch
      %21 = sbr.rel target = $region3
    $region8: #{tpu_custom_call.1} parent=1 // loop_exit
      _
    %3334 = vsyncpa [#allocation8], 1
    %s3335 = scalar_lea.sflag [#allocation8], 1
    %3336 = vsyncpa %s3335, 1
    %3337 = vsyncpa [#allocation9], 1
    %s3338 = scalar_lea.sflag [#allocation9], 1
    %3339 = vsyncpa %s3338, 1
  %3340 = vsyncmov [#allocation3]
  %s3341 = vpop.sfrf %3340
  %p3342 = scmp.eq.s32.totalorder %s3341, 0
  %p3343 = pneg %p3342
  %3345 = shalt.err (%p3343)
  %s3346 = scalar_lea.sflag [#allocation3], 1
  %3347 = vsyncmov %s3346
  %s3348 = vpop.sfrf %3347
  %p3349 = scmp.eq.s32.totalorder %s3348, 0
  %p3350 = pneg %p3349
  %3352 = shalt.err (%p3350)

</llo_original>
